<compile_context>
chip_gen: v5e
topology: v5e:2x2
jax: 0.10.0
libtpu: 0.0.40
codegen_flags: <defaults>
</compile_context>

<pallas_src>
import functools

import jax
import jax.numpy as jnp
from jax.experimental import pallas as pl
from jax.experimental.pallas import tpu as pltpu


# ----------------------------------------------------------------------------
# small helpers
# ----------------------------------------------------------------------------
def _round_up(x, m):
    return ((x + m - 1) // m) * m


def _pad2d(x, rows, cols):
    r, c = x.shape
    if r == rows and c == cols:
        return x
    return jnp.pad(x, ((0, rows - r), (0, cols - c)))


# ----------------------------------------------------------------------------
# Pallas kernels
# ----------------------------------------------------------------------------
def _gemm_bn_kernel(a_ref, b_ref, s_ref, c_ref, o_ref, acc_ref, *, relu):
    """Tiled GEMM with folded-BN epilogue; K is the innermost 'arbitrary' axis."""
    @pl.when(pl.program_id(2) == 0)
    def _():
        acc_ref[...] = jnp.zeros_like(acc_ref)

    acc_ref[...] += jnp.dot(a_ref[...], b_ref[...],
                            preferred_element_type=jnp.float32)

    @pl.when(pl.program_id(2) == pl.num_programs(2) - 1)
    def _():
        out = acc_ref[...] * s_ref[...] + c_ref[...]
        if relu:
            out = jnp.maximum(out, 0.0)
        o_ref[...] = out.astype(o_ref.dtype)


def _gemm_bn_res_kernel(a_ref, b_ref, s_ref, c_ref, r_ref, o_ref, acc_ref, *,
                        relu):
    """Same as _gemm_bn_kernel but adds a bf16 residual after the f32 accumulate."""
    @pl.when(pl.program_id(2) == 0)
    def _():
        acc_ref[...] = jnp.zeros_like(acc_ref)

    acc_ref[...] += jnp.dot(a_ref[...], b_ref[...],
                            preferred_element_type=jnp.float32)

    @pl.when(pl.program_id(2) == pl.num_programs(2) - 1)
    def _():
        out = acc_ref[...] * s_ref[...] + c_ref[...] \
            + r_ref[...].astype(jnp.float32)
        if relu:
            out = jnp.maximum(out, 0.0)
        o_ref[...] = out.astype(o_ref.dtype)


def _maxpool_kernel(x_ref, o_ref):
    # x: (9, tm, C) -> max over the 9 window taps for a tile of output pixels
    o_ref[...] = jnp.max(x_ref[...], axis=0)


def _gap_fc_kernel(x_ref, w_ref, b_ref, o_ref):
    # x: (1, HW, C) bf16 ; w: (C, NP) f32 ; b: (1, NP) f32 ; o: (1, 1, NP) f32
    pooled = jnp.mean(x_ref[0].astype(jnp.float32), axis=0, keepdims=True)
    out = jnp.dot(pooled, w_ref[...],
                  preferred_element_type=jnp.float32) + b_ref[...]
    o_ref[...] = out[None].astype(o_ref.dtype)


# ----------------------------------------------------------------------------
# Pallas wrappers
# ----------------------------------------------------------------------------
def matmul_affine(a, b, scale, bias, residual=None, relu=False,
                  out_dtype=jnp.bfloat16):
    """out = act((a @ b) * scale + bias [+ residual]) via a tiled Pallas GEMM.

    Operands are cast to bf16 (MXU-native); accumulation stays in f32 in a VMEM
    scratch across the K grid axis.  M, N, K are zero-padded to tile multiples.
    """
    M, K = a.shape
    K2, N = b.shape
    assert K2 == K

    tm = min(256, _round_up(M, 128))
    tn = min(256, _round_up(N, 128))
    tk = min(512, _round_up(K, 128))
    Mp, Np, Kp = _round_up(M, tm), _round_up(N, tn), _round_up(K, tk)

    a_p = _pad2d(a.astype(jnp.bfloat16), Mp, Kp)
    b_p = _pad2d(b.astype(jnp.bfloat16), Kp, Np)
    s_p = _pad2d(scale.reshape(1, N).astype(jnp.float32), 1, Np)
    c_p = _pad2d(bias.reshape(1, N).astype(jnp.float32), 1, Np)

    grid = (Mp // tm, Np // tn, Kp // tk)

    in_specs = [
        pl.BlockSpec((tm, tk), lambda i, j, k: (i, k)),
        pl.BlockSpec((tk, tn), lambda i, j, k: (k, j)),
        pl.BlockSpec((1, tn), lambda i, j, k: (0, j)),   # scale per N-tile
        pl.BlockSpec((1, tn), lambda i, j, k: (0, j)),   # bias per N-tile
    ]
    args = [a_p, b_p, s_p, c_p]
    if residual is not None:
        r_p = _pad2d(residual.astype(jnp.bfloat16), Mp, Np)
        in_specs.append(pl.BlockSpec((tm, tn), lambda i, j, k: (i, j)))
        args.append(r_p)
        kernel = functools.partial(_gemm_bn_res_kernel, relu=relu)
    else:
        kernel = functools.partial(_gemm_bn_kernel, relu=relu)

    out = pl.pallas_call(
        kernel,
        out_shape=jax.ShapeDtypeStruct((Mp, Np), out_dtype),
        grid=grid,
        in_specs=in_specs,
        out_specs=pl.BlockSpec((tm, tn), lambda i, j, k: (i, j)),
        scratch_shapes=[pltpu.VMEM((tm, tn), jnp.float32)],
        compiler_params=pltpu.CompilerParams(
            dimension_semantics=("parallel", "parallel", "arbitrary"),
            vmem_limit_bytes=32 * 1024 * 1024,
        ),
    )(*args)
    return out[:M, :N]


def im2col(x_nhwc, kh, kw, stride, pad):
    """Glue: extract (kh*kw*C) patches per output pixel (plain JAX slicing)."""
    N, H, W, C = x_nhwc.shape
    xp = jnp.pad(x_nhwc, ((0, 0), (pad, pad), (pad, pad), (0, 0)))
    Ho = (H + 2 * pad - kh) // stride + 1
    Wo = (W + 2 * pad - kw) // stride + 1
    cols = []
    for i in range(kh):
        for j in range(kw):
            cols.append(xp[:, i:i + stride * (Ho - 1) + 1:stride,
                           j:j + stride * (Wo - 1) + 1:stride, :])
    patches = jnp.stack(cols, axis=3)            # (N, Ho, Wo, kh*kw, C)
    return patches.reshape(N * Ho * Wo, kh * kw * C), (N, Ho, Wo)


def conv_bn_act(x_nhwc, w_oihw, bn_scale, bn_shift, stride, pad,
                relu=True, residual=None):
    """Conv2d + folded BatchNorm + optional residual + optional ReLU."""
    Cout, Cin, kh, kw = w_oihw.shape
    if kh == 1 and kw == 1 and stride == 1 and pad == 0:
        # 1x1 conv: pure GEMM, no patch extraction needed.
        N, H, W, _ = x_nhwc.shape
        a = x_nhwc.reshape(N * H * W, Cin)
        N_, Ho, Wo = N, H, W
    else:
        # TODO(synk): read the zero-padded input directly inside the GEMM
        # kernel (halo row-tiles + in-kernel tap shifts) to eliminate the
        # kh*kw patch materialization in HBM for 3x3 convolutions.
        a, (N_, Ho, Wo) = im2col(x_nhwc, kh, kw, stride, pad)
    # torch conv weight (Cout, Cin, kh, kw) -> (kh*kw*Cin, Cout), tap-major
    b = jnp.transpose(w_oihw, (2, 3, 1, 0)).reshape(kh * kw * Cin, Cout)
    res = None
    if residual is not None:
        res = residual.reshape(N_ * Ho * Wo, Cout)
    out = matmul_affine(a, b, bn_scale, bn_shift, residual=res, relu=relu)
    return out.reshape(N_, Ho, Wo, Cout)


def maxpool_3x3_s2_p1(x_nhwc):
    """nn.MaxPool2d(kernel_size=3, stride=2, padding=1), tiled over pixels."""
    N, H, W, C = x_nhwc.shape
    k, stride, pad = 3, 2, 1
    neg = jnp.finfo(x_nhwc.dtype).min
    xp = jnp.pad(x_nhwc, ((0, 0), (pad, pad), (pad, pad), (0, 0)),
                 constant_values=neg)
    Ho = (H + 2 * pad - k) // stride + 1
    Wo = (W + 2 * pad - k) // stride + 1
    views = []
    for i in range(k):
        for j in range(k):
            views.append(xp[:, i:i + stride * (Ho - 1) + 1:stride,
                            j:j + stride * (Wo - 1) + 1:stride, :])
    M = N * Ho * Wo
    stacked = jnp.stack(views, axis=0).reshape(k * k, M, C)

    tm = min(512, _round_up(M, 128))
    Mp = _round_up(M, tm)
    if Mp != M:
        stacked = jnp.pad(stacked, ((0, 0), (0, Mp - M), (0, 0)))

    out = pl.pallas_call(
        _maxpool_kernel,
        out_shape=jax.ShapeDtypeStruct((Mp, C), x_nhwc.dtype),
        grid=(Mp // tm,),
        in_specs=[pl.BlockSpec((k * k, tm, C), lambda i: (0, i, 0))],
        out_specs=pl.BlockSpec((tm, C), lambda i: (i, 0)),
        compiler_params=pltpu.CompilerParams(
            dimension_semantics=("parallel",)),
    )(stacked)
    return out[:M].reshape(N, Ho, Wo, C)


def global_avg_pool_classifier(x_nhwc, w, b, num_classes):
    """Fused MyGlobalAvgPool2d(keep_dim=False) + Linear, class dim lane-padded."""
    N, H, W, C = x_nhwc.shape
    HW = H * W
    x = x_nhwc.reshape(N, HW, C)
    NP = _round_up(num_classes, 128)
    w_p = _pad2d(jnp.transpose(w).astype(jnp.float32), C, NP)      # (C, NP)
    b_p = _pad2d(b.reshape(1, num_classes).astype(jnp.float32), 1, NP)

    out = pl.pallas_call(
        _gap_fc_kernel,
        out_shape=jax.ShapeDtypeStruct((N, 1, NP), jnp.float32),
        grid=(N,),
        in_specs=[
            pl.BlockSpec((1, HW, C), lambda n: (n, 0, 0)),
            pl.BlockSpec((C, NP), lambda n: (0, 0)),
            pl.BlockSpec((1, NP), lambda n: (0, 0)),
        ],
        out_specs=pl.BlockSpec((1, 1, NP), lambda n: (n, 0, 0)),
        compiler_params=pltpu.CompilerParams(
            dimension_semantics=("parallel",)),
    )(x, w_p, b_p)
    return out[:, 0, :num_classes]


# ----------------------------------------------------------------------------
# Parameter initialization (deterministic, synthetic)
# ----------------------------------------------------------------------------
def fold_bn(gamma, beta, mean, var, eps=1e-5):
    scale = gamma / jnp.sqrt(var + eps)
    shift = beta - mean * scale
    return scale, shift


def init_conv_bn(key, cin, cout, k):
    kw_, kg, kb, km, kv = jax.random.split(key, 5)
    w = jax.random.normal(kw_, (cout, cin, k, k), jnp.float32) * 0.1
    gamma = jax.random.uniform(kg, (cout,), jnp.float32, 0.5, 1.5)
    beta = jax.random.normal(kb, (cout,), jnp.float32) * 0.1
    mean = jax.random.normal(km, (cout,), jnp.float32) * 0.1
    var = jax.random.uniform(kv, (cout,), jnp.float32, 0.5, 1.5)
    scale, shift = fold_bn(gamma, beta, mean, var)
    return dict(w=w, scale=scale, shift=shift)


# ----------------------------------------------------------------------------
# ResNets.forward
# ----------------------------------------------------------------------------
def resnets_forward(x_nchw, params):
    x = jnp.transpose(x_nchw, (0, 2, 3, 1)).astype(jnp.bfloat16)   # NCHW -> NHWC
    # --- input stem (first conv has stride 2, like the ResNet stem) ---
    for i, stem in enumerate(params["input_stem"]):
        stride = 2 if i == 0 else 1
        x = conv_bn_act(x, stem["w"], stem["scale"], stem["shift"],
                        stride=stride, pad=1, relu=True)
    # --- max pooling ---
    x = maxpool_3x3_s2_p1(x)
    # --- bottleneck residual blocks ---
    for blk in params["blocks"]:
        identity = x
        h = conv_bn_act(x, blk["c1"]["w"], blk["c1"]["scale"], blk["c1"]["shift"],
                        stride=1, pad=0, relu=True)
        h = conv_bn_act(h, blk["c2"]["w"], blk["c2"]["scale"], blk["c2"]["shift"],
                        stride=1, pad=1, relu=True)
        x = conv_bn_act(h, blk["c3"]["w"], blk["c3"]["scale"], blk["c3"]["shift"],
                        stride=1, pad=0, relu=True, residual=identity)
    # --- global average pool (keep_dim=False) + linear classifier, fused ---
    w, b = params["classifier"]["w"], params["classifier"]["b"]
    return global_avg_pool_classifier(x, w, b, w.shape[0])


if __name__ == "__main__":
    key = jax.random.PRNGKey(0)
    keys = jax.random.split(key, 13)

    # Small synthetic configuration consistent with the module structure:
    # input_stem = 2 conv layers, 2 bottleneck blocks, linear classifier.
    stem1 = init_conv_bn(keys[0], 3, 8, 3)     # 3 -> 8, stride 2
    stem2 = init_conv_bn(keys[1], 8, 16, 3)    # 8 -> 16
    blocks = []
    for bi in range(2):
        c1 = init_conv_bn(keys[2 + 3 * bi], 16, 8, 1)   # reduce
        c2 = init_conv_bn(keys[3 + 3 * bi], 8, 8, 3)    # spatial
        c3 = init_conv_bn(keys[4 + 3 * bi], 8, 16, 1)   # expand (+ identity)
        blocks.append(dict(c1=c1, c2=c2, c3=c3))
    cls_w = jax.random.normal(keys[10], (10, 16), jnp.float32) * 0.1
    cls_b = jax.random.normal(keys[11], (10,), jnp.float32) * 0.1

    params = dict(input_stem=[stem1, stem2], blocks=blocks,
                  classifier=dict(w=cls_w, b=cls_b))

    x = jax.random.normal(keys[12], (2, 3, 32, 32), jnp.float32)  # NCHW input

    out = jax.jit(resnets_forward)(x, params)
    out = jax.block_until_ready(out)
    assert out.shape == (2, 10)
    assert bool(jnp.all(jnp.isfinite(out)))
    print("KERNEL_OK")
</pallas_src>

<mosaic_0001>
module attributes {stable_mosaic.version = 11 : i64} {
  func.func @_gemm_bn_kernel(%arg0: i32, %arg1: i32, %arg2: i32, %arg3: memref<256x128xbf16, #tpu.memory_space<vmem>>, %arg4: memref<128x128xbf16, #tpu.memory_space<vmem>>, %arg5: memref<1x128xf32, #tpu.memory_space<vmem>>, %arg6: memref<1x128xf32, #tpu.memory_space<vmem>>, %arg7: memref<256x128xbf16, #tpu.memory_space<vmem>>, %arg8: memref<256x128xf32, #tpu.memory_space<vmem>>) attributes {dimension_semantics = [#tpu.dimension_semantics<parallel>, #tpu.dimension_semantics<parallel>, #tpu.dimension_semantics<arbitrary>], iteration_bounds = array<i64: 2, 1, 1>, scalar_prefetch = 0 : i64, scratch_operands = 1 : i64, tpu.core_type = #tpu.core_type<tc>, window_params = [{transform_indices = @transform_0, window_bounds = array<i64: 256, 128>}, {transform_indices = @transform_1, window_bounds = array<i64: 128, 128>}, {transform_indices = @transform_2, window_bounds = array<i64: 1, 128>}, {transform_indices = @transform_3, window_bounds = array<i64: 1, 128>}, {transform_indices = @transform_4, window_bounds = array<i64: 256, 128>}]} {
    %c0_i32 = arith.constant 0 : i32
    %0 = arith.cmpi eq, %arg2, %c0_i32 : i32
    %1 = arith.extui %0 : i1 to i32
    %c0_i32_0 = arith.constant 0 : i32
    %2 = arith.cmpi ne, %1, %c0_i32_0 : i32
    scf.if %2 {
      %cst_10 = arith.constant 0.000000e+00 : f32
      %12 = vector.broadcast %cst_10 : f32 to vector<256x128xf32>
      %c0_11 = arith.constant 0 : index
      %c0_12 = arith.constant 0 : index
      %13 = vector.load %arg8[%c0_11, %c0_12] : memref<256x128xf32, #tpu.memory_space<vmem>>, vector<256x128xf32>
      tpu.vector_store %arg8[%c0_11, %c0_12], %12 {strides = array<i32>} : memref<256x128xf32, #tpu.memory_space<vmem>>, vector<256x128xf32>,
    } else {
    }
    %c0 = arith.constant 0 : index
    %c0_1 = arith.constant 0 : index
    %3 = vector.load %arg8[%c0, %c0_1] : memref<256x128xf32, #tpu.memory_space<vmem>>, vector<256x128xf32>
    %c0_2 = arith.constant 0 : index
    %c0_3 = arith.constant 0 : index
    %4 = vector.load %arg3[%c0_2, %c0_3] : memref<256x128xbf16, #tpu.memory_space<vmem>>, vector<256x128xbf16>
    %c0_4 = arith.constant 0 : index
    %c0_5 = arith.constant 0 : index
    %5 = vector.load %arg4[%c0_4, %c0_5] : memref<128x128xbf16, #tpu.memory_space<vmem>>, vector<128x128xbf16>
    %cst = arith.constant dense<0.000000e+00> : vector<256x128xf32>
    %6 = tpu.matmul %4, %5, %cst {dimension_numbers = #tpu.dot_dimension_numbers<[1], [0], [0], [1], [0, 0, 1, 1], [], []>} : vector<256x128xbf16>, vector<128x128xbf16>, vector<256x128xf32> -> vector<256x128xf32>
    %7 = arith.addf %3, %6 : vector<256x128xf32>
    %c0_6 = arith.constant 0 : index
    %c0_7 = arith.constant 0 : index
    %8 = vector.load %arg8[%c0_6, %c0_7] : memref<256x128xf32, #tpu.memory_space<vmem>>, vector<256x128xf32>
    tpu.vector_store %arg8[%c0_6, %c0_7], %7 {strides = array<i32>} : memref<256x128xf32, #tpu.memory_space<vmem>>, vector<256x128xf32>,
    %c0_i32_8 = arith.constant 0 : i32
    %9 = arith.cmpi eq, %arg2, %c0_i32_8 : i32
    %10 = arith.extui %9 : i1 to i32
    %c0_i32_9 = arith.constant 0 : i32
    %11 = arith.cmpi ne, %10, %c0_i32_9 : i32
    scf.if %11 {
      %c0_10 = arith.constant 0 : index
      %c0_11 = arith.constant 0 : index
      %12 = vector.load %arg8[%c0_10, %c0_11] : memref<256x128xf32, #tpu.memory_space<vmem>>, vector<256x128xf32>
      %c0_12 = arith.constant 0 : index
      %c0_13 = arith.constant 0 : index
      %13 = vector.load %arg5[%c0_12, %c0_13] : memref<1x128xf32, #tpu.memory_space<vmem>>, vector<1x128xf32>
      %14 = vector.broadcast %13 : vector<1x128xf32> to vector<256x128xf32>
      %15 = arith.mulf %12, %14 : vector<256x128xf32>
      %c0_14 = arith.constant 0 : index
      %c0_15 = arith.constant 0 : index
      %16 = vector.load %arg6[%c0_14, %c0_15] : memref<1x128xf32, #tpu.memory_space<vmem>>, vector<1x128xf32>
      %17 = vector.broadcast %16 : vector<1x128xf32> to vector<256x128xf32>
      %18 = arith.addf %15, %17 : vector<256x128xf32>
      %cst_16 = arith.constant 0.000000e+00 : f32
      %19 = vector.broadcast %cst_16 : f32 to vector<256x128xf32>
      %20 = arith.maximumf %18, %19 : vector<256x128xf32>
      %21 = arith.truncf %20 : vector<256x128xf32> to vector<256x128xbf16>
      %c0_17 = arith.constant 0 : index
      %c0_18 = arith.constant 0 : index
      %22 = vector.load %arg7[%c0_17, %c0_18] : memref<256x128xbf16, #tpu.memory_space<vmem>>, vector<256x128xbf16>
      tpu.vector_store %arg7[%c0_17, %c0_18], %21 {strides = array<i32>} : memref<256x128xbf16, #tpu.memory_space<vmem>>, vector<256x128xbf16>,
    } else {
    }
    return
  }
  func.func @transform_0(%arg0: i32, %arg1: i32, %arg2: i32) -> (i32, i32) {
    %c0_i32 = arith.constant 0 : i32
    return %arg0, %arg2 : i32, i32
  }
  func.func @transform_1(%arg0: i32, %arg1: i32, %arg2: i32) -> (i32, i32) {
    %c0_i32 = arith.constant 0 : i32
    return %arg2, %arg1 : i32, i32
  }
  func.func @transform_2(%arg0: i32, %arg1: i32, %arg2: i32) -> (i32, i32) {
    %c0_i32 = arith.constant 0 : i32
    %c0_i32_0 = arith.constant 0 : i32
    return %c0_i32, %arg1 : i32, i32
  }
  func.func @transform_3(%arg0: i32, %arg1: i32, %arg2: i32) -> (i32, i32) {
    %c0_i32 = arith.constant 0 : i32
    %c0_i32_0 = arith.constant 0 : i32
    return %c0_i32, %arg1 : i32, i32
  }
  func.func @transform_4(%arg0: i32, %arg1: i32, %arg2: i32) -> (i32, i32) {
    %c0_i32 = arith.constant 0 : i32
    return %arg0, %arg1 : i32, i32
  }
}

module attributes {stable_mosaic.version = 11 : i64} {
  func.func @_maxpool_kernel(%arg0: i32, %arg1: memref<9x128x16xbf16, #tpu.memory_space<vmem>>, %arg2: memref<128x16xbf16, #tpu.memory_space<vmem>>) attributes {dimension_semantics = [#tpu.dimension_semantics<parallel>], iteration_bounds = array<i64: 1>, scalar_prefetch = 0 : i64, scratch_operands = 0 : i64, tpu.core_type = #tpu.core_type<tc>, window_params = [{transform_indices = @transform_0, window_bounds = array<i64: 9, 128, 16>}, {transform_indices = @transform_1, window_bounds = array<i64: 128, 16>}]} {
    %c0 = arith.constant 0 : index
    %c0_0 = arith.constant 0 : index
    %c0_1 = arith.constant 0 : index
    %0 = vector.load %arg1[%c0, %c0_0, %c0_1] : memref<9x128x16xbf16, #tpu.memory_space<vmem>>, vector<9x128x16xbf16>
    %cst = arith.constant dense<0xFF80> : vector<128x16xbf16>
    %1 = vector.multi_reduction <maximumf>, %0, %cst [0] : vector<9x128x16xbf16> to vector<128x16xbf16>
    %c0_2 = arith.constant 0 : index
    %c0_3 = arith.constant 0 : index
    %2 = vector.load %arg2[%c0_2, %c0_3] : memref<128x16xbf16, #tpu.memory_space<vmem>>, vector<128x16xbf16>
    tpu.vector_store %arg2[%c0_2, %c0_3], %1 {strides = array<i32>} : memref<128x16xbf16, #tpu.memory_space<vmem>>, vector<128x16xbf16>,
    return
  }
  func.func @transform_0(%arg0: i32) -> (i32, i32, i32) {
    %c0_i32 = arith.constant 0 : i32
    %c0_i32_0 = arith.constant 0 : i32
    %c0_i32_1 = arith.constant 0 : i32
    return %c0_i32, %arg0, %c0_i32_0 : i32, i32, i32
  }
  func.func @transform_1(%arg0: i32) -> (i32, i32) {
    %c0_i32 = arith.constant 0 : i32
    %c0_i32_0 = arith.constant 0 : i32
    return %arg0, %c0_i32 : i32, i32
  }
}

module attributes {stable_mosaic.version = 11 : i64} {
  func.func @_gemm_bn_kernel(%arg0: i32, %arg1: i32, %arg2: i32, %arg3: memref<128x128xbf16, #tpu.memory_space<vmem>>, %arg4: memref<128x128xbf16, #tpu.memory_space<vmem>>, %arg5: memref<1x128xf32, #tpu.memory_space<vmem>>, %arg6: memref<1x128xf32, #tpu.memory_space<vmem>>, %arg7: memref<128x128xbf16, #tpu.memory_space<vmem>>, %arg8: memref<128x128xf32, #tpu.memory_space<vmem>>) attributes {dimension_semantics = [#tpu.dimension_semantics<parallel>, #tpu.dimension_semantics<parallel>, #tpu.dimension_semantics<arbitrary>], iteration_bounds = array<i64: 1, 1, 1>, scalar_prefetch = 0 : i64, scratch_operands = 1 : i64, tpu.core_type = #tpu.core_type<tc>, window_params = [{transform_indices = @transform_0, window_bounds = array<i64: 128, 128>}, {transform_indices = @transform_1, window_bounds = array<i64: 128, 128>}, {transform_indices = @transform_2, window_bounds = array<i64: 1, 128>}, {transform_indices = @transform_3, window_bounds = array<i64: 1, 128>}, {transform_indices = @transform_4, window_bounds = array<i64: 128, 128>}]} {
    %c0_i32 = arith.constant 0 : i32
    %0 = arith.cmpi eq, %arg2, %c0_i32 : i32
    %1 = arith.extui %0 : i1 to i32
    %c0_i32_0 = arith.constant 0 : i32
    %2 = arith.cmpi ne, %1, %c0_i32_0 : i32
    scf.if %2 {
      %cst_10 = arith.constant 0.000000e+00 : f32
      %12 = vector.broadcast %cst_10 : f32 to vector<128x128xf32>
      %c0_11 = arith.constant 0 : index
      %c0_12 = arith.constant 0 : index
      %13 = vector.load %arg8[%c0_11, %c0_12] : memref<128x128xf32, #tpu.memory_space<vmem>>, vector<128x128xf32>
      tpu.vector_store %arg8[%c0_11, %c0_12], %12 {strides = array<i32>} : memref<128x128xf32, #tpu.memory_space<vmem>>, vector<128x128xf32>,
    } else {
    }
    %c0 = arith.constant 0 : index
    %c0_1 = arith.constant 0 : index
    %3 = vector.load %arg8[%c0, %c0_1] : memref<128x128xf32, #tpu.memory_space<vmem>>, vector<128x128xf32>
    %c0_2 = arith.constant 0 : index
    %c0_3 = arith.constant 0 : index
    %4 = vector.load %arg3[%c0_2, %c0_3] : memref<128x128xbf16, #tpu.memory_space<vmem>>, vector<128x128xbf16>
    %c0_4 = arith.constant 0 : index
    %c0_5 = arith.constant 0 : index
    %5 = vector.load %arg4[%c0_4, %c0_5] : memref<128x128xbf16, #tpu.memory_space<vmem>>, vector<128x128xbf16>
    %cst = arith.constant dense<0.000000e+00> : vector<128x128xf32>
    %6 = tpu.matmul %4, %5, %cst {dimension_numbers = #tpu.dot_dimension_numbers<[1], [0], [0], [1], [0, 0, 1, 1], [], []>} : vector<128x128xbf16>, vector<128x128xbf16>, vector<128x128xf32> -> vector<128x128xf32>
    %7 = arith.addf %3, %6 : vector<128x128xf32>
    %c0_6 = arith.constant 0 : index
    %c0_7 = arith.constant 0 : index
    %8 = vector.load %arg8[%c0_6, %c0_7] : memref<128x128xf32, #tpu.memory_space<vmem>>, vector<128x128xf32>
    tpu.vector_store %arg8[%c0_6, %c0_7], %7 {strides = array<i32>} : memref<128x128xf32, #tpu.memory_space<vmem>>, vector<128x128xf32>,
    %c0_i32_8 = arith.constant 0 : i32
    %9 = arith.cmpi eq, %arg2, %c0_i32_8 : i32
    %10 = arith.extui %9 : i1 to i32
    %c0_i32_9 = arith.constant 0 : i32
    %11 = arith.cmpi ne, %10, %c0_i32_9 : i32
    scf.if %11 {
      %c0_10 = arith.constant 0 : index
      %c0_11 = arith.constant 0 : index
      %12 = vector.load %arg8[%c0_10, %c0_11] : memref<128x128xf32, #tpu.memory_space<vmem>>, vector<128x128xf32>
      %c0_12 = arith.constant 0 : index
      %c0_13 = arith.constant 0 : index
      %13 = vector.load %arg5[%c0_12, %c0_13] : memref<1x128xf32, #tpu.memory_space<vmem>>, vector<1x128xf32>
      %14 = vector.broadcast %13 : vector<1x128xf32> to vector<128x128xf32>
      %15 = arith.mulf %12, %14 : vector<128x128xf32>
      %c0_14 = arith.constant 0 : index
      %c0_15 = arith.constant 0 : index
      %16 = vector.load %arg6[%c0_14, %c0_15] : memref<1x128xf32, #tpu.memory_space<vmem>>, vector<1x128xf32>
      %17 = vector.broadcast %16 : vector<1x128xf32> to vector<128x128xf32>
      %18 = arith.addf %15, %17 : vector<128x128xf32>
      %cst_16 = arith.constant 0.000000e+00 : f32
      %19 = vector.broadcast %cst_16 : f32 to vector<128x128xf32>
      %20 = arith.maximumf %18, %19 : vector<128x128xf32>
      %21 = arith.truncf %20 : vector<128x128xf32> to vector<128x128xbf16>
      %c0_17 = arith.constant 0 : index
      %c0_18 = arith.constant 0 : index
      %22 = vector.load %arg7[%c0_17, %c0_18] : memref<128x128xbf16, #tpu.memory_space<vmem>>, vector<128x128xbf16>
      tpu.vector_store %arg7[%c0_17, %c0_18], %21 {strides = array<i32>} : memref<128x128xbf16, #tpu.memory_space<vmem>>, vector<128x128xbf16>,
    } else {
    }
    return
  }
  func.func @transform_0(%arg0: i32, %arg1: i32, %arg2: i32) -> (i32, i32) {
    %c0_i32 = arith.constant 0 : i32
    return %arg0, %arg2 : i32, i32
  }
  func.func @transform_1(%arg0: i32, %arg1: i32, %arg2: i32) -> (i32, i32) {
    %c0_i32 = arith.constant 0 : i32
    return %arg2, %arg1 : i32, i32
  }
  func.func @transform_2(%arg0: i32, %arg1: i32, %arg2: i32) -> (i32, i32) {
    %c0_i32 = arith.constant 0 : i32
    %c0_i32_0 = arith.constant 0 : i32
    return %c0_i32, %arg1 : i32, i32
  }
  func.func @transform_3(%arg0: i32, %arg1: i32, %arg2: i32) -> (i32, i32) {
    %c0_i32 = arith.constant 0 : i32
    %c0_i32_0 = arith.constant 0 : i32
    return %c0_i32, %arg1 : i32, i32
  }
  func.func @transform_4(%arg0: i32, %arg1: i32, %arg2: i32) -> (i32, i32) {
    %c0_i32 = arith.constant 0 : i32
    return %arg0, %arg1 : i32, i32
  }
}

module attributes {stable_mosaic.version = 11 : i64} {
  func.func @_gemm_bn_res_kernel(%arg0: i32, %arg1: i32, %arg2: i32, %arg3: memref<128x128xbf16, #tpu.memory_space<vmem>>, %arg4: memref<128x128xbf16, #tpu.memory_space<vmem>>, %arg5: memref<1x128xf32, #tpu.memory_space<vmem>>, %arg6: memref<1x128xf32, #tpu.memory_space<vmem>>, %arg7: memref<128x128xbf16, #tpu.memory_space<vmem>>, %arg8: memref<128x128xbf16, #tpu.memory_space<vmem>>, %arg9: memref<128x128xf32, #tpu.memory_space<vmem>>) attributes {dimension_semantics = [#tpu.dimension_semantics<parallel>, #tpu.dimension_semantics<parallel>, #tpu.dimension_semantics<arbitrary>], iteration_bounds = array<i64: 1, 1, 1>, scalar_prefetch = 0 : i64, scratch_operands = 1 : i64, tpu.core_type = #tpu.core_type<tc>, window_params = [{transform_indices = @transform_0, window_bounds = array<i64: 128, 128>}, {transform_indices = @transform_1, window_bounds = array<i64: 128, 128>}, {transform_indices = @transform_2, window_bounds = array<i64: 1, 128>}, {transform_indices = @transform_3, window_bounds = array<i64: 1, 128>}, {transform_indices = @transform_4, window_bounds = array<i64: 128, 128>}, {transform_indices = @transform_5, window_bounds = array<i64: 128, 128>}]} {
    %c0_i32 = arith.constant 0 : i32
    %0 = arith.cmpi eq, %arg2, %c0_i32 : i32
    %1 = arith.extui %0 : i1 to i32
    %c0_i32_0 = arith.constant 0 : i32
    %2 = arith.cmpi ne, %1, %c0_i32_0 : i32
    scf.if %2 {
      %cst_10 = arith.constant 0.000000e+00 : f32
      %12 = vector.broadcast %cst_10 : f32 to vector<128x128xf32>
      %c0_11 = arith.constant 0 : index
      %c0_12 = arith.constant 0 : index
      %13 = vector.load %arg9[%c0_11, %c0_12] : memref<128x128xf32, #tpu.memory_space<vmem>>, vector<128x128xf32>
      tpu.vector_store %arg9[%c0_11, %c0_12], %12 {strides = array<i32>} : memref<128x128xf32, #tpu.memory_space<vmem>>, vector<128x128xf32>,
    } else {
    }
    %c0 = arith.constant 0 : index
    %c0_1 = arith.constant 0 : index
    %3 = vector.load %arg9[%c0, %c0_1] : memref<128x128xf32, #tpu.memory_space<vmem>>, vector<128x128xf32>
    %c0_2 = arith.constant 0 : index
    %c0_3 = arith.constant 0 : index
    %4 = vector.load %arg3[%c0_2, %c0_3] : memref<128x128xbf16, #tpu.memory_space<vmem>>, vector<128x128xbf16>
    %c0_4 = arith.constant 0 : index
    %c0_5 = arith.constant 0 : index
    %5 = vector.load %arg4[%c0_4, %c0_5] : memref<128x128xbf16, #tpu.memory_space<vmem>>, vector<128x128xbf16>
    %cst = arith.constant dense<0.000000e+00> : vector<128x128xf32>
    %6 = tpu.matmul %4, %5, %cst {dimension_numbers = #tpu.dot_dimension_numbers<[1], [0], [0], [1], [0, 0, 1, 1], [], []>} : vector<128x128xbf16>, vector<128x128xbf16>, vector<128x128xf32> -> vector<128x128xf32>
    %7 = arith.addf %3, %6 : vector<128x128xf32>
    %c0_6 = arith.constant 0 : index
    %c0_7 = arith.constant 0 : index
    %8 = vector.load %arg9[%c0_6, %c0_7] : memref<128x128xf32, #tpu.memory_space<vmem>>, vector<128x128xf32>
    tpu.vector_store %arg9[%c0_6, %c0_7], %7 {strides = array<i32>} : memref<128x128xf32, #tpu.memory_space<vmem>>, vector<128x128xf32>,
    %c0_i32_8 = arith.constant 0 : i32
    %9 = arith.cmpi eq, %arg2, %c0_i32_8 : i32
    %10 = arith.extui %9 : i1 to i32
    %c0_i32_9 = arith.constant 0 : i32
    %11 = arith.cmpi ne, %10, %c0_i32_9 : i32
    scf.if %11 {
      %c0_10 = arith.constant 0 : index
      %c0_11 = arith.constant 0 : index
      %12 = vector.load %arg9[%c0_10, %c0_11] : memref<128x128xf32, #tpu.memory_space<vmem>>, vector<128x128xf32>
      %c0_12 = arith.constant 0 : index
      %c0_13 = arith.constant 0 : index
      %13 = vector.load %arg5[%c0_12, %c0_13] : memref<1x128xf32, #tpu.memory_space<vmem>>, vector<1x128xf32>
      %14 = vector.broadcast %13 : vector<1x128xf32> to vector<128x128xf32>
      %15 = arith.mulf %12, %14 : vector<128x128xf32>
      %c0_14 = arith.constant 0 : index
      %c0_15 = arith.constant 0 : index
      %16 = vector.load %arg6[%c0_14, %c0_15] : memref<1x128xf32, #tpu.memory_space<vmem>>, vector<1x128xf32>
      %17 = vector.broadcast %16 : vector<1x128xf32> to vector<128x128xf32>
      %18 = arith.addf %15, %17 : vector<128x128xf32>
      %c0_16 = arith.constant 0 : index
      %c0_17 = arith.constant 0 : index
      %19 = vector.load %arg7[%c0_16, %c0_17] : memref<128x128xbf16, #tpu.memory_space<vmem>>, vector<128x128xbf16>
      %20 = arith.extf %19 : vector<128x128xbf16> to vector<128x128xf32>
      %21 = arith.addf %18, %20 : vector<128x128xf32>
      %cst_18 = arith.constant 0.000000e+00 : f32
      %22 = vector.broadcast %cst_18 : f32 to vector<128x128xf32>
      %23 = arith.maximumf %21, %22 : vector<128x128xf32>
      %24 = arith.truncf %23 : vector<128x128xf32> to vector<128x128xbf16>
      %c0_19 = arith.constant 0 : index
      %c0_20 = arith.constant 0 : index
      %25 = vector.load %arg8[%c0_19, %c0_20] : memref<128x128xbf16, #tpu.memory_space<vmem>>, vector<128x128xbf16>
      tpu.vector_store %arg8[%c0_19, %c0_20], %24 {strides = array<i32>} : memref<128x128xbf16, #tpu.memory_space<vmem>>, vector<128x128xbf16>,
    } else {
    }
    return
  }
  func.func @transform_0(%arg0: i32, %arg1: i32, %arg2: i32) -> (i32, i32) {
    %c0_i32 = arith.constant 0 : i32
    return %arg0, %arg2 : i32, i32
  }
  func.func @transform_1(%arg0: i32, %arg1: i32, %arg2: i32) -> (i32, i32) {
    %c0_i32 = arith.constant 0 : i32
    return %arg2, %arg1 : i32, i32
  }
  func.func @transform_2(%arg0: i32, %arg1: i32, %arg2: i32) -> (i32, i32) {
    %c0_i32 = arith.constant 0 : i32
    %c0_i32_0 = arith.constant 0 : i32
    return %c0_i32, %arg1 : i32, i32
  }
  func.func @transform_3(%arg0: i32, %arg1: i32, %arg2: i32) -> (i32, i32) {
    %c0_i32 = arith.constant 0 : i32
    %c0_i32_0 = arith.constant 0 : i32
    return %c0_i32, %arg1 : i32, i32
  }
  func.func @transform_4(%arg0: i32, %arg1: i32, %arg2: i32) -> (i32, i32) {
    %c0_i32 = arith.constant 0 : i32
    return %arg0, %arg1 : i32, i32
  }
  func.func @transform_5(%arg0: i32, %arg1: i32, %arg2: i32) -> (i32, i32) {
    %c0_i32 = arith.constant 0 : i32
    return %arg0, %arg1 : i32, i32
  }
}

module attributes {stable_mosaic.version = 11 : i64} {
  func.func @_gap_fc_kernel(%arg0: i32, %arg1: memref<1x64x16xbf16, #tpu.memory_space<vmem>>, %arg2: memref<16x128xf32, #tpu.memory_space<vmem>>, %arg3: memref<1x128xf32, #tpu.memory_space<vmem>>, %arg4: memref<1x1x128xf32, #tpu.memory_space<vmem>>) attributes {dimension_semantics = [#tpu.dimension_semantics<parallel>], iteration_bounds = array<i64: 2>, scalar_prefetch = 0 : i64, scratch_operands = 0 : i64, tpu.core_type = #tpu.core_type<tc>, window_params = [{transform_indices = @transform_0, window_bounds = array<i64: 1, 64, 16>}, {pipeline_mode = #tpu.pipeline_mode<synchronous>, transform_indices = @transform_1, window_bounds = array<i64: 16, 128>}, {pipeline_mode = #tpu.pipeline_mode<synchronous>, transform_indices = @transform_2, window_bounds = array<i64: 1, 128>}, {transform_indices = @transform_3, window_bounds = array<i64: 1, 1, 128>}]} {
    %c0 = arith.constant 0 : index
    %c0_0 = arith.constant 0 : index
    %c0_1 = arith.constant 0 : index
    %0 = vector.load %arg1[%c0, %c0_0, %c0_1] : memref<1x64x16xbf16, #tpu.memory_space<vmem>>, vector<1x64x16xbf16>
    %1 = vector.shape_cast %0 : vector<1x64x16xbf16> to vector<64x16xbf16>
    %2 = arith.extf %1 : vector<64x16xbf16> to vector<64x16xf32>
    %cst = arith.constant dense<0.000000e+00> : vector<16xf32>
    %3 = vector.multi_reduction <add>, %2, %cst [0] : vector<64x16xf32> to vector<16xf32>
    %4 = vector.shape_cast %3 : vector<16xf32> to vector<1x16xf32>
    %cst_2 = arith.constant 6.400000e+01 : f32
    %5 = vector.broadcast %cst_2 : f32 to vector<1x16xf32>
    %6 = arith.divf %4, %5 : vector<1x16xf32>
    %c0_3 = arith.constant 0 : index
    %c0_4 = arith.constant 0 : index
    %7 = vector.load %arg2[%c0_3, %c0_4] : memref<16x128xf32, #tpu.memory_space<vmem>>, vector<16x128xf32>
    %cst_5 = arith.constant dense<0.000000e+00> : vector<1x128xf32>
    %8 = tpu.matmul %6, %7, %cst_5 {dimension_numbers = #tpu.dot_dimension_numbers<[1], [0], [0], [1], [0, 0, 1, 1], [], []>} : vector<1x16xf32>, vector<16x128xf32>, vector<1x128xf32> -> vector<1x128xf32>
    %c0_6 = arith.constant 0 : index
    %c0_7 = arith.constant 0 : index
    %9 = vector.load %arg3[%c0_6, %c0_7] : memref<1x128xf32, #tpu.memory_space<vmem>>, vector<1x128xf32>
    %10 = arith.addf %8, %9 : vector<1x128xf32>
    %11 = vector.shape_cast %10 : vector<1x128xf32> to vector<1x1x128xf32>
    %c0_8 = arith.constant 0 : index
    %c0_9 = arith.constant 0 : index
    %c0_10 = arith.constant 0 : index
    %12 = vector.load %arg4[%c0_8, %c0_9, %c0_10] : memref<1x1x128xf32, #tpu.memory_space<vmem>>, vector<1x1x128xf32>
    tpu.vector_store %arg4[%c0_8, %c0_9, %c0_10], %11 {strides = array<i32>} : memref<1x1x128xf32, #tpu.memory_space<vmem>>, vector<1x1x128xf32>,
    return
  }
  func.func @transform_0(%arg0: i32) -> (i32, i32, i32) {
    %c0_i32 = arith.constant 0 : i32
    %c0_i32_0 = arith.constant 0 : i32
    %c0_i32_1 = arith.constant 0 : i32
    return %arg0, %c0_i32, %c0_i32_0 : i32, i32, i32
  }
  func.func @transform_1(%arg0: i32) -> (i32, i32) {
    %c0_i32 = arith.constant 0 : i32
    %c0_i32_0 = arith.constant 0 : i32
    %c0_i32_1 = arith.constant 0 : i32
    return %c0_i32, %c0_i32_0 : i32, i32
  }
  func.func @transform_2(%arg0: i32) -> (i32, i32) {
    %c0_i32 = arith.constant 0 : i32
    %c0_i32_0 = arith.constant 0 : i32
    %c0_i32_1 = arith.constant 0 : i32
    return %c0_i32, %c0_i32_0 : i32, i32
  }
  func.func @transform_3(%arg0: i32) -> (i32, i32, i32) {
    %c0_i32 = arith.constant 0 : i32
    %c0_i32_0 = arith.constant 0 : i32
    %c0_i32_1 = arith.constant 0 : i32
    return %arg0, %c0_i32, %c0_i32_0 : i32, i32, i32
  }
}

</mosaic_0001>

<llo_original>
// kernel: resnets_forward.10
$region0: #{resnets_forward.10}
  #allocation0 [shape = 'u32[]', space=smem, size = 0x4, offset = 0x4, fixed_abs, tag = 'smem constant byte address 0x4 - core index']
  #allocation1 [shape = 'u32[72,128]{1,0:T(1,128)}', space=vmem, size = 0x9000, scoped, tag = 'internal scratch']
  #allocation2 [shape = 'f32[256,128]{1,0:T(8,128)}', space=vmem, size = 0x20000, scoped, tag = 'scratch operand']
  %s0 = inlined_call_operand.vmem [shape: bf16[512,128], index: 0, kind: input, shape index: {}]
  %s1 = inlined_call_operand.vmem [shape: bf16[128,128], index: 1, kind: input, shape index: {}]
  %s2 = inlined_call_operand.vmem [shape: f32[1,128], index: 2, kind: input, shape index: {}]
  %s3 = inlined_call_operand.vmem [shape: f32[1,128], index: 3, kind: input, shape index: {}]
  %s4 = inlined_call_operand.vmem [shape: bf16[512,128], index: 4, kind: output, shape index: {}]
  %s5 = sld [smem:[#allocation0]]
  $region57: #{resnets_forward.10} parent=0
    _
  %s7 = ssub.s32 1, %s5
  %s8 = scalar_select 0, %s7, %s5
  loop: start=0, step=1, limit=4
  $region2: #{resnets_forward.10} parent=0 // loop_pre_header
    _
  $region3: #{resnets_forward.10} parent=0 // loop_header
    %s10 = sphi 0, %s14
    %p11 = scmp.ge.s32.totalorder %s10, 4
    %s17 = sphi 0, %s36
    %s18 = sphi 0, %s32
    %s19 = sphi 0, %s28
    %s20 = sphi 0, %s17
    %s21 = sphi 0, %s18
    %s22 = sphi 0, %s19
    %s23 = sphi 0, %s20
    %s24 = sphi 0, %s21
    %s25 = sphi 0, %s22
    %s41 = sphi 0, %s43
    %s44 = sphi 0, %s41
    %s45 = sphi 0, %s44
    %s61 = sphi 0, %s45
    %s69 = sphi 0, %s71
    %s72 = sphi 0, %s69
    %s73 = sphi 0, %s72
    %s89 = sphi 0, %s73
    %s95 = sphi 0, %s97
    %s98 = sphi 0, %s95
    %s99 = sphi 0, %s98
    %s115 = sphi 0, %s99
    %s121 = sphi 0, %s123
    %s124 = sphi 0, %s121
    %s125 = sphi 0, %s124
    %s141 = sphi 0, %s125
    %s149 = sphi 0, %s151
    %s152 = sphi 0, %s149
    %s153 = sphi 0, %s152
    %s169 = sphi 0, %s153
  $region4: #{resnets_forward.10} parent=0 // loop_header_branch
    %13 = sbr.rel (%p11) target = $region8
  $region5: #{resnets_forward.10} parent=0 // loop_body
    %s15 = ssub.s32 %s10, 1
    %s16 = ssub.s32 %s10, 2
    %s26 = sadd.s32 1, %s19
    %p27 = scmp.ge.s32.totalorder %s26, 1
    %s28 = scalar_select %p27, 0, %s26
    %s29 = sadd.s32 1, %s18
    %s30 = scalar_select %p27, %s29, %s18
    %p31 = scmp.ge.s32.totalorder %s30, 1
    %s32 = scalar_select %p31, 0, %s30
    %s33 = sadd.s32 1, %s17
    %s34 = scalar_select %p31, %s33, %s17
    %p35 = scmp.ge.s32.totalorder %s34, 2
    %s36 = scalar_select %p35, 0, %s34
    %s37 = ssub.s32 %s17, %s36
    %s38 = ssub.s32 %s19, %s28
    %s39 = sor.u32 %s37, %s38
    %p40 = scmp.eq.s32.totalorder %s39, 0
    %s42 = sadd.s32 %s41, 1
    %s43 = scalar_select %p40, %s41, %s42
    %p46 = pneg %p40
    %p47 = scmp.eq.s32.totalorder %s10, 1
    %p48 = por %p46, %p47
    %p49 = scmp.ne.s32.totalorder %s41, %s44
    %p50 = scmp.eq.s32.totalorder %s10, 0
    %p51 = por %p49, %p50
    %p52 = scmp.ne.s32.totalorder %s41, %s44
    %p53 = scmp.eq.s32.totalorder %s15, 1
    %p54 = por %p52, %p53
    %p55 = scmp.ne.s32.totalorder %s44, %s45
    %p56 = scmp.eq.s32.totalorder %s15, 0
    %p57 = por %p55, %p56
    %p58 = scmp.ne.s32.totalorder %s44, %s45
    %p59 = scmp.eq.s32.totalorder %s16, 1
    %p60 = por %p58, %p59
    %p62 = scmp.ne.s32.totalorder %s45, %s61
    %p63 = scmp.eq.s32.totalorder %s16, 0
    %p64 = por %p62, %p63
    %s65 = ssub.s32 %s19, %s28
    %s66 = ssub.s32 %s18, %s32
    %s67 = sor.u32 %s65, %s66
    %p68 = scmp.eq.s32.totalorder %s67, 0
    %s70 = sadd.s32 %s69, 1
    %s71 = scalar_select %p68, %s69, %s70
    %p74 = pneg %p68
    %p75 = scmp.eq.s32.totalorder %s10, 1
    %p76 = por %p74, %p75
    %p77 = scmp.ne.s32.totalorder %s69, %s72
    %p78 = scmp.eq.s32.totalorder %s10, 0
    %p79 = por %p77, %p78
    %p80 = scmp.ne.s32.totalorder %s69, %s72
    %p81 = scmp.eq.s32.totalorder %s15, 1
    %p82 = por %p80, %p81
    %p83 = scmp.ne.s32.totalorder %s72, %s73
    %p84 = scmp.eq.s32.totalorder %s15, 0
    %p85 = por %p83, %p84
    %p86 = scmp.ne.s32.totalorder %s72, %s73
    %p87 = scmp.eq.s32.totalorder %s16, 1
    %p88 = por %p86, %p87
    %p90 = scmp.ne.s32.totalorder %s73, %s89
    %p91 = scmp.eq.s32.totalorder %s16, 0
    %p92 = por %p90, %p91
    %s93 = ssub.s32 %s18, %s32
    %p94 = scmp.eq.s32.totalorder %s93, 0
    %s96 = sadd.s32 %s95, 1
    %s97 = scalar_select %p94, %s95, %s96
    %p100 = pneg %p94
    %p101 = scmp.eq.s32.totalorder %s10, 1
    %p102 = por %p100, %p101
    %p103 = scmp.ne.s32.totalorder %s95, %s98
    %p104 = scmp.eq.s32.totalorder %s10, 0
    %p105 = por %p103, %p104
    %p106 = scmp.ne.s32.totalorder %s95, %s98
    %p107 = scmp.eq.s32.totalorder %s15, 1
    %p108 = por %p106, %p107
    %p109 = scmp.ne.s32.totalorder %s98, %s99
    %p110 = scmp.eq.s32.totalorder %s15, 0
    %p111 = por %p109, %p110
    %p112 = scmp.ne.s32.totalorder %s98, %s99
    %p113 = scmp.eq.s32.totalorder %s16, 1
    %p114 = por %p112, %p113
    %p116 = scmp.ne.s32.totalorder %s99, %s115
    %p117 = scmp.eq.s32.totalorder %s16, 0
    %p118 = por %p116, %p117
    %s119 = ssub.s32 %s18, %s32
    %p120 = scmp.eq.s32.totalorder %s119, 0
    %s122 = sadd.s32 %s121, 1
    %s123 = scalar_select %p120, %s121, %s122
    %p126 = pneg %p120
    %p127 = scmp.eq.s32.totalorder %s10, 1
    %p128 = por %p126, %p127
    %p129 = scmp.ne.s32.totalorder %s121, %s124
    %p130 = scmp.eq.s32.totalorder %s10, 0
    %p131 = por %p129, %p130
    %p132 = scmp.ne.s32.totalorder %s121, %s124
    %p133 = scmp.eq.s32.totalorder %s15, 1
    %p134 = por %p132, %p133
    %p135 = scmp.ne.s32.totalorder %s124, %s125
    %p136 = scmp.eq.s32.totalorder %s15, 0
    %p137 = por %p135, %p136
    %p138 = scmp.ne.s32.totalorder %s124, %s125
    %p139 = scmp.eq.s32.totalorder %s16, 1
    %p140 = por %p138, %p139
    %p142 = scmp.ne.s32.totalorder %s125, %s141
    %p143 = scmp.eq.s32.totalorder %s16, 0
    %p144 = por %p142, %p143
    %s145 = ssub.s32 %s17, %s36
    %s146 = ssub.s32 %s18, %s32
    %s147 = sor.u32 %s145, %s146
    %p148 = scmp.eq.s32.totalorder %s147, 0
    %s150 = sadd.s32 %s149, 1
    %s151 = scalar_select %p148, %s149, %s150
    %p154 = pneg %p148
    %p155 = scmp.eq.s32.totalorder %s10, 1
    %p156 = por %p154, %p155
    %p157 = scmp.ne.s32.totalorder %s149, %s152
    %p158 = scmp.eq.s32.totalorder %s10, 0
    %p159 = por %p157, %p158
    %p160 = scmp.ne.s32.totalorder %s149, %s152
    %p161 = scmp.eq.s32.totalorder %s15, 1
    %p162 = por %p160, %p161
    %p163 = scmp.ne.s32.totalorder %s152, %s153
    %p164 = scmp.eq.s32.totalorder %s15, 0
    %p165 = por %p163, %p164
    %p166 = scmp.ne.s32.totalorder %s152, %s153
    %p167 = scmp.eq.s32.totalorder %s16, 1
    %p168 = por %p166, %p167
    %p170 = scmp.ne.s32.totalorder %s153, %s169
    %p171 = scmp.eq.s32.totalorder %s16, 0
    %p172 = por %p170, %p171
    %p173 = scmp.le.s32.totalorder 1, %s10
    %p174 = scmp.lt.s32.totalorder %s10, 3
    %p175 = pnand %p173, %p174
    %p176 = pneg %p175
    // Predicated region
    $region9: #{resnets_forward.10} parent=5 // pred_check
      _
    $region10: #{resnets_forward.10} parent=5 // pred_check_branch
      %178 = sbr.rel (%p175) target = $region12
    $region11: #{resnets_forward.10} parent=5 // pred_region
      %s179 = ssub.s32 %s10, 1
      // Predicated region
      $region13: #{resnets_forward.10} parent=11 // pred_check
        %p180 = pneg %p85
      $region14: #{resnets_forward.10} parent=11 // pred_check_branch
        %182 = sbr.rel (%p180) target = $region16
      $region15: #{resnets_forward.10} parent=11 // pred_region
        %s183 = smul.u32 16, %s22
        %p184 = scmp.lt.s32.totalorder %s183, 15
        %s185 = scalar_select %p184, %s183, 15
        %p186 = scmp.lt.s32.totalorder %s21, 0
        %s187 = scalar_select %p186, %s21, 0
        %s188 = sadd.s32 %s187, %s185
        %s189 = smul.addr %s188, 4
        %s190 = scalar_lea.vmem %s1, %s189
        %s191 = smul.u32 16, %s22
      $region16: #{resnets_forward.10} parent=11 // pred_fallthru
        _
      // Predicated region
      $region17: #{resnets_forward.10} parent=11 // pred_check
        %p192 = pneg %p111
      $region18: #{resnets_forward.10} parent=11 // pred_check_branch
        %194 = sbr.rel (%p192) target = $region20
      $region19: #{resnets_forward.10} parent=11 // pred_region
        %p195 = scmp.lt.s32.totalorder %s21, 0
        %s196 = scalar_select %p195, %s21, 0
        %s197 = scalar_lea.vmem %s2, %s196
      $region20: #{resnets_forward.10} parent=11 // pred_fallthru
        _
      // Predicated region
      $region21: #{resnets_forward.10} parent=11 // pred_check
        %p198 = pneg %p137
      $region22: #{resnets_forward.10} parent=11 // pred_check_branch
        %200 = sbr.rel (%p198) target = $region24
      $region23: #{resnets_forward.10} parent=11 // pred_region
        %p201 = scmp.lt.s32.totalorder %s21, 0
        %s202 = scalar_select %p201, %s21, 0
        %s203 = scalar_lea.vmem %s3, %s202
      $region24: #{resnets_forward.10} parent=11 // pred_fallthru
        _
    $region12: #{resnets_forward.10} parent=5 // pred_fallthru
      _
    %p204 = scmp.lt.s32.totalorder %s10, 2
    // Predicated region
    $region25: #{resnets_forward.10} parent=5 // pred_check
      %p205 = pneg %p204
    $region26: #{resnets_forward.10} parent=5 // pred_check_branch
      %207 = sbr.rel (%p205) target = $region28
    $region27: #{resnets_forward.10} parent=5 // pred_region
      // Predicated region
      $region29: #{resnets_forward.10} parent=27 // pred_check
        %p208 = pneg %p51
      $region30: #{resnets_forward.10} parent=27 // pred_check_branch
        %210 = sbr.rel (%p208) target = $region32
      $region31: #{resnets_forward.10} parent=27 // pred_region
        %s211 = smul.u32 32, %s17
        %p212 = scmp.lt.s32.totalorder %s211, 63
        %s213 = scalar_select %p212, %s211, 63
        %p214 = scmp.lt.s32.totalorder %s19, 0
        %s215 = scalar_select %p214, %s19, 0
        %s216 = sadd.s32 %s215, %s213
        %s217 = smul.addr %s216, 4
        %s218 = scalar_lea.vmem %s0, %s217
        %s219 = smul.u32 32, %s17
      $region32: #{resnets_forward.10} parent=27 // pred_fallthru
        _
    $region28: #{resnets_forward.10} parent=5 // pred_fallthru
      _
    %p220 = scmp.le.s32.totalorder 1, %s10
    %p221 = scmp.lt.s32.totalorder %s10, 3
    %p222 = pnand %p220, %p221
    %p223 = pneg %p222
    // Predicated region
    $region33: #{resnets_forward.10} parent=5 // pred_check
      _
    $region34: #{resnets_forward.10} parent=5 // pred_check_branch
      %225 = sbr.rel (%p222) target = $region36
    $region35: #{resnets_forward.10} parent=5 // pred_region
      %s226 = ssub.s32 %s10, 1
      %s227 = smul.u32 32, %s20
      %p228 = scmp.lt.s32.totalorder %s227, 63
      %s229 = scalar_select %p228, %s227, 63
      %p230 = scmp.lt.s32.totalorder %s22, 0
      %s231 = scalar_select %p230, %s22, 0
      %s232 = sadd.s32 %s231, %s229
      %s233 = smul.addr %s232, 4
      %s234 = scalar_lea.vmem %s0, %s233
      %p235 = pneg %p57
      %p236 = pneg %p54
      %s237 = smul.u32 16, %s22
      %p238 = scmp.lt.s32.totalorder %s237, 15
      %s239 = scalar_select %p238, %s237, 15
      %p240 = scmp.lt.s32.totalorder %s21, 0
      %s241 = scalar_select %p240, %s21, 0
      %s242 = sadd.s32 %s241, %s239
      %s243 = smul.addr %s242, 4
      %s244 = scalar_lea.vmem %s1, %s243
      %p245 = pneg %p85
      %p246 = pneg %p82
      %p247 = scmp.lt.s32.totalorder %s21, 0
      %s248 = scalar_select %p247, %s21, 0
      %s249 = scalar_lea.vmem %s2, %s248
      %p250 = pneg %p111
      %p251 = pneg %p108
      %p252 = scmp.lt.s32.totalorder %s21, 0
      %s253 = scalar_select %p252, %s21, 0
      %s254 = scalar_lea.vmem %s3, %s253
      %p255 = pneg %p137
      %p256 = pneg %p134
      %p257 = pneg %p165
      %p258 = pneg %p162
      %s259 = smul.u32 32, %s20
      %p260 = scmp.lt.s32.totalorder %s259, 63
      %s261 = scalar_select %p260, %s259, 63
      %p262 = scmp.lt.s32.totalorder %s21, 0
      %s263 = scalar_select %p262, %s21, 0
      %s264 = sadd.s32 %s263, %s261
      %s265 = smul.addr %s264, 4
      %s266 = scalar_lea.vmem %s4, %s265
      %s267 = smul.u32 32, %s20
      %p268 = scmp.lt.s32.totalorder %s267, 63
      %s269 = scalar_select %p268, %s267, 63
      %p270 = scmp.lt.s32.totalorder %s22, 0
      %s271 = scalar_select %p270, %s22, 0
      %s272 = sadd.s32 %s271, %s269
      %s273 = smul.addr %s272, 4
      %s274 = scalar_lea.vmem %s0, %s273
      %s275 = smul.u32 32, %s20
      %s276 = smul.u32 16, %s22
      %p277 = scmp.lt.s32.totalorder %s276, 15
      %s278 = scalar_select %p277, %s276, 15
      %p279 = scmp.lt.s32.totalorder %s21, 0
      %s280 = scalar_select %p279, %s21, 0
      %s281 = sadd.s32 %s280, %s278
      %s282 = smul.addr %s281, 4
      %s283 = scalar_lea.vmem %s1, %s282
      %s284 = smul.u32 16, %s22
      %p285 = scmp.lt.s32.totalorder %s21, 0
      %s286 = scalar_select %p285, %s21, 0
      %s287 = scalar_lea.vmem %s2, %s286
      %p288 = scmp.lt.s32.totalorder %s21, 0
      %s289 = scalar_select %p288, %s21, 0
      %s290 = scalar_lea.vmem %s3, %s289
      %s291 = smul.u32 32, %s20
      %p292 = scmp.lt.s32.totalorder %s291, 63
      %s293 = scalar_select %p292, %s291, 63
      %p294 = scmp.lt.s32.totalorder %s21, 0
      %s295 = scalar_select %p294, %s21, 0
      %s296 = sadd.s32 %s295, %s293
      %s297 = smul.addr %s296, 4
      %s298 = scalar_lea.vmem %s4, %s297
      %s299 = smul.u32 32, %s20
      %p300 = scmp.eq.s32.totalorder %s22, 0
      // Predicated region
      $region37: #{resnets_forward.10} parent=35 // pred_check
        %p301 = pneg %p300
      $region38: #{resnets_forward.10} parent=35 // pred_check_branch
        %303 = sbr.rel (%p301) target = $region40
      $region39: #{resnets_forward.10} parent=35 // pred_region
        %304 = vst [vmem:[#allocation2] sm:$0xff] 0.0
        %305 = vst [vmem:[#allocation2 + $0x8] sm:$0xff] 0.0
        %306 = vst [vmem:[#allocation2 + $0x10] sm:$0xff] 0.0
        %307 = vst [vmem:[#allocation2 + $0x18] sm:$0xff] 0.0
        %308 = vst [vmem:[#allocation2 + $0x20] sm:$0xff] 0.0
        %309 = vst [vmem:[#allocation2 + $0x28] sm:$0xff] 0.0
        %310 = vst [vmem:[#allocation2 + $0x30] sm:$0xff] 0.0
        %311 = vst [vmem:[#allocation2 + $0x38] sm:$0xff] 0.0
        %312 = vst [vmem:[#allocation2 + $0x40] sm:$0xff] 0.0
        %313 = vst [vmem:[#allocation2 + $0x48] sm:$0xff] 0.0
        %314 = vst [vmem:[#allocation2 + $0x50] sm:$0xff] 0.0
        %315 = vst [vmem:[#allocation2 + $0x58] sm:$0xff] 0.0
        %316 = vst [vmem:[#allocation2 + $0x60] sm:$0xff] 0.0
        %317 = vst [vmem:[#allocation2 + $0x68] sm:$0xff] 0.0
        %318 = vst [vmem:[#allocation2 + $0x70] sm:$0xff] 0.0
        %319 = vst [vmem:[#allocation2 + $0x78] sm:$0xff] 0.0
        %320 = vst [vmem:[#allocation2 + $0x80] sm:$0xff] 0.0
        %321 = vst [vmem:[#allocation2 + $0x88] sm:$0xff] 0.0
        %322 = vst [vmem:[#allocation2 + $0x90] sm:$0xff] 0.0
        %323 = vst [vmem:[#allocation2 + $0x98] sm:$0xff] 0.0
        %324 = vst [vmem:[#allocation2 + $0xa0] sm:$0xff] 0.0
        %325 = vst [vmem:[#allocation2 + $0xa8] sm:$0xff] 0.0
        %326 = vst [vmem:[#allocation2 + $0xb0] sm:$0xff] 0.0
        %327 = vst [vmem:[#allocation2 + $0xb8] sm:$0xff] 0.0
        %328 = vst [vmem:[#allocation2 + $0xc0] sm:$0xff] 0.0
        %329 = vst [vmem:[#allocation2 + $0xc8] sm:$0xff] 0.0
        %330 = vst [vmem:[#allocation2 + $0xd0] sm:$0xff] 0.0
        %331 = vst [vmem:[#allocation2 + $0xd8] sm:$0xff] 0.0
        %332 = vst [vmem:[#allocation2 + $0xe0] sm:$0xff] 0.0
        %333 = vst [vmem:[#allocation2 + $0xe8] sm:$0xff] 0.0
        %334 = vst [vmem:[#allocation2 + $0xf0] sm:$0xff] 0.0
        %335 = vst [vmem:[#allocation2 + $0xf8] sm:$0xff] 0.0
      $region40: #{resnets_forward.10} parent=35 // pred_fallthru
        _
      %v336 = vld [vmem:[#allocation2] sm:$0xff]
      %v337 = vld [vmem:[#allocation2 + $0x8] sm:$0xff]
      %v338 = vld [vmem:[#allocation2 + $0x10] sm:$0xff]
      %v339 = vld [vmem:[#allocation2 + $0x18] sm:$0xff]
      %v340 = vld [vmem:[#allocation2 + $0x20] sm:$0xff]
      %v341 = vld [vmem:[#allocation2 + $0x28] sm:$0xff]
      %v342 = vld [vmem:[#allocation2 + $0x30] sm:$0xff]
      %v343 = vld [vmem:[#allocation2 + $0x38] sm:$0xff]
      %v344 = vld [vmem:[#allocation2 + $0x40] sm:$0xff]
      %v345 = vld [vmem:[#allocation2 + $0x48] sm:$0xff]
      %v346 = vld [vmem:[#allocation2 + $0x50] sm:$0xff]
      %v347 = vld [vmem:[#allocation2 + $0x58] sm:$0xff]
      %v348 = vld [vmem:[#allocation2 + $0x60] sm:$0xff]
      %v349 = vld [vmem:[#allocation2 + $0x68] sm:$0xff]
      %v350 = vld [vmem:[#allocation2 + $0x70] sm:$0xff]
      %v351 = vld [vmem:[#allocation2 + $0x78] sm:$0xff]
      %v352 = vld [vmem:[#allocation2 + $0x80] sm:$0xff]
      %v353 = vld [vmem:[#allocation2 + $0x88] sm:$0xff]
      %v354 = vld [vmem:[#allocation2 + $0x90] sm:$0xff]
      %v355 = vld [vmem:[#allocation2 + $0x98] sm:$0xff]
      %v356 = vld [vmem:[#allocation2 + $0xa0] sm:$0xff]
      %v357 = vld [vmem:[#allocation2 + $0xa8] sm:$0xff]
      %v358 = vld [vmem:[#allocation2 + $0xb0] sm:$0xff]
      %v359 = vld [vmem:[#allocation2 + $0xb8] sm:$0xff]
      %v360 = vld [vmem:[#allocation2 + $0xc0] sm:$0xff]
      %v361 = vld [vmem:[#allocation2 + $0xc8] sm:$0xff]
      %v362 = vld [vmem:[#allocation2 + $0xd0] sm:$0xff]
      %v363 = vld [vmem:[#allocation2 + $0xd8] sm:$0xff]
      %v364 = vld [vmem:[#allocation2 + $0xe0] sm:$0xff]
      %v365 = vld [vmem:[#allocation2 + $0xe8] sm:$0xff]
      %v366 = vld [vmem:[#allocation2 + $0xf0] sm:$0xff]
      %v367 = vld [vmem:[#allocation2 + $0xf8] sm:$0xff]
      %v368 = vld [vmem:[%s274] sm:$0xf]
      %v369 = vld [vmem:[%s274 + $0x4] sm:$0xf]
      %v370 = vld [vmem:[%s274 + $0x8] sm:$0xf]
      %v371 = vld [vmem:[%s274 + $0xc] sm:$0xf]
      %v372 = vld [vmem:[%s274 + $0x10] sm:$0xf]
      %v373 = vld [vmem:[%s274 + $0x14] sm:$0xf]
      %v374 = vld [vmem:[%s274 + $0x18] sm:$0xf]
      %v375 = vld [vmem:[%s274 + $0x1c] sm:$0xf]
      %v376 = vld [vmem:[%s274 + $0x20] sm:$0xf]
      %v377 = vld [vmem:[%s274 + $0x24] sm:$0xf]
      %v378 = vld [vmem:[%s274 + $0x28] sm:$0xf]
      %v379 = vld [vmem:[%s274 + $0x2c] sm:$0xf]
      %v380 = vld [vmem:[%s274 + $0x30] sm:$0xf]
      %v381 = vld [vmem:[%s274 + $0x34] sm:$0xf]
      %v382 = vld [vmem:[%s274 + $0x38] sm:$0xf]
      %v383 = vld [vmem:[%s274 + $0x3c] sm:$0xf]
      %v384 = vld [vmem:[%s274 + $0x40] sm:$0xf]
      %v385 = vld [vmem:[%s274 + $0x44] sm:$0xf]
      %v386 = vld [vmem:[%s274 + $0x48] sm:$0xf]
      %v387 = vld [vmem:[%s274 + $0x4c] sm:$0xf]
      %v388 = vld [vmem:[%s274 + $0x50] sm:$0xf]
      %v389 = vld [vmem:[%s274 + $0x54] sm:$0xf]
      %v390 = vld [vmem:[%s274 + $0x58] sm:$0xf]
      %v391 = vld [vmem:[%s274 + $0x5c] sm:$0xf]
      %v392 = vld [vmem:[%s274 + $0x60] sm:$0xf]
      %v393 = vld [vmem:[%s274 + $0x64] sm:$0xf]
      %v394 = vld [vmem:[%s274 + $0x68] sm:$0xf]
      %v395 = vld [vmem:[%s274 + $0x6c] sm:$0xf]
      %v396 = vld [vmem:[%s274 + $0x70] sm:$0xf]
      %v397 = vld [vmem:[%s274 + $0x74] sm:$0xf]
      %v398 = vld [vmem:[%s274 + $0x78] sm:$0xf]
      %v399 = vld [vmem:[%s274 + $0x7c] sm:$0xf]
      %v400 = vld [vmem:[%s283] sm:$0xf]
      %v401 = vld [vmem:[%s283 + $0x4] sm:$0xf]
      %v402 = vld [vmem:[%s283 + $0x8] sm:$0xf]
      %v403 = vld [vmem:[%s283 + $0xc] sm:$0xf]
      %v404 = vld [vmem:[%s283 + $0x10] sm:$0xf]
      %v405 = vld [vmem:[%s283 + $0x14] sm:$0xf]
      %v406 = vld [vmem:[%s283 + $0x18] sm:$0xf]
      %v407 = vld [vmem:[%s283 + $0x1c] sm:$0xf]
      %v408 = vld [vmem:[%s283 + $0x20] sm:$0xf]
      %v409 = vld [vmem:[%s283 + $0x24] sm:$0xf]
      %v410 = vld [vmem:[%s283 + $0x28] sm:$0xf]
      %v411 = vld [vmem:[%s283 + $0x2c] sm:$0xf]
      %v412 = vld [vmem:[%s283 + $0x30] sm:$0xf]
      %v413 = vld [vmem:[%s283 + $0x34] sm:$0xf]
      %v414 = vld [vmem:[%s283 + $0x38] sm:$0xf]
      %v415 = vld [vmem:[%s283 + $0x3c] sm:$0xf]
      %v448 = vunpack.c.l.b16 %v368
      %v449 = vunpack.c.l.b16 %v369
      %v450 = vunpack.c.l.b16 %v370
      %v451 = vunpack.c.l.b16 %v371
      %v452 = vunpack.c.l.b16 %v372
      %v453 = vunpack.c.l.b16 %v373
      %v454 = vunpack.c.l.b16 %v374
      %v455 = vunpack.c.l.b16 %v375
      %v456 = vunpack.c.l.b16 %v376
      %v457 = vunpack.c.l.b16 %v377
      %v458 = vunpack.c.l.b16 %v378
      %v459 = vunpack.c.l.b16 %v379
      %v460 = vunpack.c.l.b16 %v380
      %v461 = vunpack.c.l.b16 %v381
      %v462 = vunpack.c.l.b16 %v382
      %v463 = vunpack.c.l.b16 %v383
      %v464 = vunpack.c.l.b16 %v384
      %v465 = vunpack.c.l.b16 %v385
      %v466 = vunpack.c.l.b16 %v386
      %v467 = vunpack.c.l.b16 %v387
      %v468 = vunpack.c.l.b16 %v388
      %v469 = vunpack.c.l.b16 %v389
      %v470 = vunpack.c.l.b16 %v390
      %v471 = vunpack.c.l.b16 %v391
      %v472 = vunpack.c.l.b16 %v392
      %v473 = vunpack.c.l.b16 %v393
      %v474 = vunpack.c.l.b16 %v394
      %v475 = vunpack.c.l.b16 %v395
      %v476 = vunpack.c.l.b16 %v396
      %v477 = vunpack.c.l.b16 %v397
      %v478 = vunpack.c.l.b16 %v398
      %v479 = vunpack.c.l.b16 %v399
      %v480 = vpack.c.b16 %v449, %v448
      %v481 = vpack.c.b16 %v451, %v450
      %v482 = vpack.c.b16 %v453, %v452
      %v483 = vpack.c.b16 %v455, %v454
      %v484 = vpack.c.b16 %v457, %v456
      %v485 = vpack.c.b16 %v459, %v458
      %v486 = vpack.c.b16 %v461, %v460
      %v487 = vpack.c.b16 %v463, %v462
      %v488 = vpack.c.b16 %v465, %v464
      %v489 = vpack.c.b16 %v467, %v466
      %v490 = vpack.c.b16 %v469, %v468
      %v491 = vpack.c.b16 %v471, %v470
      %v492 = vpack.c.b16 %v473, %v472
      %v493 = vpack.c.b16 %v475, %v474
      %v494 = vpack.c.b16 %v477, %v476
      %v495 = vpack.c.b16 %v479, %v478
      %v528 = vunpack.c.l.b16 %v400
      %v529 = vunpack.c.l.b16 %v401
      %v530 = vunpack.c.l.b16 %v402
      %v531 = vunpack.c.l.b16 %v403
      %v532 = vunpack.c.l.b16 %v404
      %v533 = vunpack.c.l.b16 %v405
      %v534 = vunpack.c.l.b16 %v406
      %v535 = vunpack.c.l.b16 %v407
      %v536 = vunpack.c.l.b16 %v408
      %v537 = vunpack.c.l.b16 %v409
      %v538 = vunpack.c.l.b16 %v410
      %v539 = vunpack.c.l.b16 %v411
      %v540 = vunpack.c.l.b16 %v412
      %v541 = vunpack.c.l.b16 %v413
      %v542 = vunpack.c.l.b16 %v414
      %v543 = vunpack.c.l.b16 %v415
      %v544 = vpack.c.b16 %v529, %v528
      %v545 = vpack.c.b16 %v531, %v530
      %v546 = vpack.c.b16 %v533, %v532
      %v547 = vpack.c.b16 %v535, %v534
      %v548 = vpack.c.b16 %v537, %v536
      %v549 = vpack.c.b16 %v539, %v538
      %v550 = vpack.c.b16 %v541, %v540
      %v551 = vpack.c.b16 %v543, %v542
      %560 = vmatpush.bf16.msra.mxu0 %v551
      %561 = vmatpush.bf16.msra.mxu0 %v550
      %562 = vmatpush.bf16.msra.mxu0 %v549
      %563 = vmatpush.bf16.msra.mxu0 %v548
      %564 = vmatpush.bf16.msra.mxu0 %v547
      %565 = vmatpush.bf16.msra.mxu0 %v546
      %566 = vmatpush.bf16.msra.mxu0 %v545
      %567 = vmatpush.bf16.msra.mxu0 %v544
      %568 = vmatmul.bf16.gmra.mxu0 %v480
      %v569 = vpop.f32.mrf.mxu0
      %v570 = vadd.f32 0.0, %v569
      %v571 = vpop.f32.mrf.mxu0
      %v572 = vadd.f32 0.0, %v571
      %573 = vmatmul.bf16.gmra.mxu0 %v481
      %v574 = vpop.f32.mrf.mxu0
      %v575 = vadd.f32 0.0, %v574
      %v576 = vpop.f32.mrf.mxu0
      %v577 = vadd.f32 0.0, %v576
      %578 = vmatmul.bf16.gmra.mxu0 %v482
      %v579 = vpop.f32.mrf.mxu0
      %v580 = vadd.f32 0.0, %v579
      %v581 = vpop.f32.mrf.mxu0
      %v582 = vadd.f32 0.0, %v581
      %583 = vmatmul.bf16.gmra.mxu0 %v483
      %v584 = vpop.f32.mrf.mxu0
      %v585 = vadd.f32 0.0, %v584
      %v586 = vpop.f32.mrf.mxu0
      %v587 = vadd.f32 0.0, %v586
      %588 = vmatmul.bf16.gmra.mxu0 %v484
      %v589 = vpop.f32.mrf.mxu0
      %v590 = vadd.f32 0.0, %v589
      %v591 = vpop.f32.mrf.mxu0
      %v592 = vadd.f32 0.0, %v591
      %593 = vmatmul.bf16.gmra.mxu0 %v485
      %v594 = vpop.f32.mrf.mxu0
      %v595 = vadd.f32 0.0, %v594
      %v596 = vpop.f32.mrf.mxu0
      %v597 = vadd.f32 0.0, %v596
      %598 = vmatmul.bf16.gmra.mxu0 %v486
      %v599 = vpop.f32.mrf.mxu0
      %v600 = vadd.f32 0.0, %v599
      %v601 = vpop.f32.mrf.mxu0
      %v602 = vadd.f32 0.0, %v601
      %603 = vmatmul.bf16.gmra.mxu0 %v487
      %v604 = vpop.f32.mrf.mxu0
      %v605 = vadd.f32 0.0, %v604
      %v606 = vpop.f32.mrf.mxu0
      %v607 = vadd.f32 0.0, %v606
      %608 = vmatmul.bf16.gmra.mxu0 %v488
      %v609 = vpop.f32.mrf.mxu0
      %v610 = vadd.f32 0.0, %v609
      %v611 = vpop.f32.mrf.mxu0
      %v612 = vadd.f32 0.0, %v611
      %613 = vmatmul.bf16.gmra.mxu0 %v489
      %v614 = vpop.f32.mrf.mxu0
      %v615 = vadd.f32 0.0, %v614
      %v616 = vpop.f32.mrf.mxu0
      %v617 = vadd.f32 0.0, %v616
      %618 = vmatmul.bf16.gmra.mxu0 %v490
      %v619 = vpop.f32.mrf.mxu0
      %v620 = vadd.f32 0.0, %v619
      %v621 = vpop.f32.mrf.mxu0
      %v622 = vadd.f32 0.0, %v621
      %623 = vmatmul.bf16.gmra.mxu0 %v491
      %v624 = vpop.f32.mrf.mxu0
      %v625 = vadd.f32 0.0, %v624
      %v626 = vpop.f32.mrf.mxu0
      %v627 = vadd.f32 0.0, %v626
      %628 = vmatmul.bf16.gmra.mxu0 %v492
      %v629 = vpop.f32.mrf.mxu0
      %v630 = vadd.f32 0.0, %v629
      %v631 = vpop.f32.mrf.mxu0
      %v632 = vadd.f32 0.0, %v631
      %633 = vmatmul.bf16.gmra.mxu0 %v493
      %v634 = vpop.f32.mrf.mxu0
      %v635 = vadd.f32 0.0, %v634
      %v636 = vpop.f32.mrf.mxu0
      %v637 = vadd.f32 0.0, %v636
      %638 = vmatmul.bf16.gmra.mxu0 %v494
      %v639 = vpop.f32.mrf.mxu0
      %v640 = vadd.f32 0.0, %v639
      %v641 = vpop.f32.mrf.mxu0
      %v642 = vadd.f32 0.0, %v641
      %643 = vmatmul.bf16.gmra.mxu0 %v495
      %v644 = vpop.f32.mrf.mxu0
      %v645 = vadd.f32 0.0, %v644
      %v646 = vpop.f32.mrf.mxu0
      %v647 = vadd.f32 0.0, %v646
      %648 = vdwg.mxu0
      %v649 = vadd.f32 %v336, %v570
      %v650 = vadd.f32 %v337, %v572
      %v651 = vadd.f32 %v338, %v575
      %v652 = vadd.f32 %v339, %v577
      %v653 = vadd.f32 %v340, %v580
      %v654 = vadd.f32 %v341, %v582
      %v655 = vadd.f32 %v342, %v585
      %v656 = vadd.f32 %v343, %v587
      %v657 = vadd.f32 %v344, %v590
      %v658 = vadd.f32 %v345, %v592
      %v659 = vadd.f32 %v346, %v595
      %v660 = vadd.f32 %v347, %v597
      %v661 = vadd.f32 %v348, %v600
      %v662 = vadd.f32 %v349, %v602
      %v663 = vadd.f32 %v350, %v605
      %v664 = vadd.f32 %v351, %v607
      %v665 = vadd.f32 %v352, %v610
      %v666 = vadd.f32 %v353, %v612
      %v667 = vadd.f32 %v354, %v615
      %v668 = vadd.f32 %v355, %v617
      %v669 = vadd.f32 %v356, %v620
      %v670 = vadd.f32 %v357, %v622
      %v671 = vadd.f32 %v358, %v625
      %v672 = vadd.f32 %v359, %v627
      %v673 = vadd.f32 %v360, %v630
      %v674 = vadd.f32 %v361, %v632
      %v675 = vadd.f32 %v362, %v635
      %v676 = vadd.f32 %v363, %v637
      %v677 = vadd.f32 %v364, %v640
      %v678 = vadd.f32 %v365, %v642
      %v679 = vadd.f32 %v366, %v645
      %v680 = vadd.f32 %v367, %v647
      %681 = vst [vmem:[#allocation2] sm:$0xff] %v649
      %682 = vst [vmem:[#allocation2 + $0x8] sm:$0xff] %v650
      %683 = vst [vmem:[#allocation2 + $0x10] sm:$0xff] %v651
      %684 = vst [vmem:[#allocation2 + $0x18] sm:$0xff] %v652
      %685 = vst [vmem:[#allocation2 + $0x20] sm:$0xff] %v653
      %686 = vst [vmem:[#allocation2 + $0x28] sm:$0xff] %v654
      %687 = vst [vmem:[#allocation2 + $0x30] sm:$0xff] %v655
      %688 = vst [vmem:[#allocation2 + $0x38] sm:$0xff] %v656
      %689 = vst [vmem:[#allocation2 + $0x40] sm:$0xff] %v657
      %690 = vst [vmem:[#allocation2 + $0x48] sm:$0xff] %v658
      %691 = vst [vmem:[#allocation2 + $0x50] sm:$0xff] %v659
      %692 = vst [vmem:[#allocation2 + $0x58] sm:$0xff] %v660
      %693 = vst [vmem:[#allocation2 + $0x60] sm:$0xff] %v661
      %694 = vst [vmem:[#allocation2 + $0x68] sm:$0xff] %v662
      %695 = vst [vmem:[#allocation2 + $0x70] sm:$0xff] %v663
      %696 = vst [vmem:[#allocation2 + $0x78] sm:$0xff] %v664
      %697 = vst [vmem:[#allocation2 + $0x80] sm:$0xff] %v665
      %698 = vst [vmem:[#allocation2 + $0x88] sm:$0xff] %v666
      %699 = vst [vmem:[#allocation2 + $0x90] sm:$0xff] %v667
      %700 = vst [vmem:[#allocation2 + $0x98] sm:$0xff] %v668
      %701 = vst [vmem:[#allocation2 + $0xa0] sm:$0xff] %v669
      %702 = vst [vmem:[#allocation2 + $0xa8] sm:$0xff] %v670
      %703 = vst [vmem:[#allocation2 + $0xb0] sm:$0xff] %v671
      %704 = vst [vmem:[#allocation2 + $0xb8] sm:$0xff] %v672
      %705 = vst [vmem:[#allocation2 + $0xc0] sm:$0xff] %v673
      %706 = vst [vmem:[#allocation2 + $0xc8] sm:$0xff] %v674
      %707 = vst [vmem:[#allocation2 + $0xd0] sm:$0xff] %v675
      %708 = vst [vmem:[#allocation2 + $0xd8] sm:$0xff] %v676
      %709 = vst [vmem:[#allocation2 + $0xe0] sm:$0xff] %v677
      %710 = vst [vmem:[#allocation2 + $0xe8] sm:$0xff] %v678
      %711 = vst [vmem:[#allocation2 + $0xf0] sm:$0xff] %v679
      %712 = vst [vmem:[#allocation2 + $0xf8] sm:$0xff] %v680
      // Predicated region
      $region41: #{resnets_forward.10} parent=35 // pred_check
        %p713 = pneg %p300
      $region42: #{resnets_forward.10} parent=35 // pred_check_branch
        %715 = sbr.rel (%p713) target = $region44
      $region43: #{resnets_forward.10} parent=35 // pred_region
        %v716 = vld [vmem:[#allocation2] sm:$0xff]
        %v717 = vld [vmem:[#allocation2 + $0x8] sm:$0xff]
        %v718 = vld [vmem:[#allocation2 + $0x10] sm:$0xff]
        %v719 = vld [vmem:[#allocation2 + $0x18] sm:$0xff]
        %v720 = vld [vmem:[#allocation2 + $0x20] sm:$0xff]
        %v721 = vld [vmem:[#allocation2 + $0x28] sm:$0xff]
        %v722 = vld [vmem:[#allocation2 + $0x30] sm:$0xff]
        %v723 = vld [vmem:[#allocation2 + $0x38] sm:$0xff]
        %v724 = vld [vmem:[#allocation2 + $0x40] sm:$0xff]
        %v725 = vld [vmem:[#allocation2 + $0x48] sm:$0xff]
        %v726 = vld [vmem:[#allocation2 + $0x50] sm:$0xff]
        %v727 = vld [vmem:[#allocation2 + $0x58] sm:$0xff]
        %v728 = vld [vmem:[#allocation2 + $0x60] sm:$0xff]
        %v729 = vld [vmem:[#allocation2 + $0x68] sm:$0xff]
        %v730 = vld [vmem:[#allocation2 + $0x70] sm:$0xff]
        %v731 = vld [vmem:[#allocation2 + $0x78] sm:$0xff]
        %v732 = vld [vmem:[#allocation2 + $0x80] sm:$0xff]
        %v733 = vld [vmem:[#allocation2 + $0x88] sm:$0xff]
        %v734 = vld [vmem:[#allocation2 + $0x90] sm:$0xff]
        %v735 = vld [vmem:[#allocation2 + $0x98] sm:$0xff]
        %v736 = vld [vmem:[#allocation2 + $0xa0] sm:$0xff]
        %v737 = vld [vmem:[#allocation2 + $0xa8] sm:$0xff]
        %v738 = vld [vmem:[#allocation2 + $0xb0] sm:$0xff]
        %v739 = vld [vmem:[#allocation2 + $0xb8] sm:$0xff]
        %v740 = vld [vmem:[#allocation2 + $0xc0] sm:$0xff]
        %v741 = vld [vmem:[#allocation2 + $0xc8] sm:$0xff]
        %v742 = vld [vmem:[#allocation2 + $0xd0] sm:$0xff]
        %v743 = vld [vmem:[#allocation2 + $0xd8] sm:$0xff]
        %v744 = vld [vmem:[#allocation2 + $0xe0] sm:$0xff]
        %v745 = vld [vmem:[#allocation2 + $0xe8] sm:$0xff]
        %v746 = vld [vmem:[#allocation2 + $0xf0] sm:$0xff]
        %v747 = vld [vmem:[#allocation2 + $0xf8] sm:$0xff]
        %v748 = vld [vmem:[%s287] sm:$0x1]
        %v750 = vperm.slane %v748, 0
        %v752 = vmul.f32 %v716, %v750
        %v753 = vmul.f32 %v717, %v750
        %v754 = vmul.f32 %v718, %v750
        %v755 = vmul.f32 %v719, %v750
        %v756 = vmul.f32 %v720, %v750
        %v757 = vmul.f32 %v721, %v750
        %v758 = vmul.f32 %v722, %v750
        %v759 = vmul.f32 %v723, %v750
        %v760 = vmul.f32 %v724, %v750
        %v761 = vmul.f32 %v725, %v750
        %v762 = vmul.f32 %v726, %v750
        %v763 = vmul.f32 %v727, %v750
        %v764 = vmul.f32 %v728, %v750
        %v765 = vmul.f32 %v729, %v750
        %v766 = vmul.f32 %v730, %v750
        %v767 = vmul.f32 %v731, %v750
        %v768 = vmul.f32 %v732, %v750
        %v769 = vmul.f32 %v733, %v750
        %v770 = vmul.f32 %v734, %v750
        %v771 = vmul.f32 %v735, %v750
        %v772 = vmul.f32 %v736, %v750
        %v773 = vmul.f32 %v737, %v750
        %v774 = vmul.f32 %v738, %v750
        %v775 = vmul.f32 %v739, %v750
        %v776 = vmul.f32 %v740, %v750
        %v777 = vmul.f32 %v741, %v750
        %v778 = vmul.f32 %v742, %v750
        %v779 = vmul.f32 %v743, %v750
        %v780 = vmul.f32 %v744, %v750
        %v781 = vmul.f32 %v745, %v750
        %v782 = vmul.f32 %v746, %v750
        %v783 = vmul.f32 %v747, %v750
        %v784 = vld [vmem:[%s290] sm:$0x1]
        %v786 = vperm.slane %v784, 0
        %v788 = vadd.f32 %v752, %v786
        %v789 = vadd.f32 %v753, %v786
        %v790 = vadd.f32 %v754, %v786
        %v791 = vadd.f32 %v755, %v786
        %v792 = vadd.f32 %v756, %v786
        %v793 = vadd.f32 %v757, %v786
        %v794 = vadd.f32 %v758, %v786
        %v795 = vadd.f32 %v759, %v786
        %v796 = vadd.f32 %v760, %v786
        %v797 = vadd.f32 %v761, %v786
        %v798 = vadd.f32 %v762, %v786
        %v799 = vadd.f32 %v763, %v786
        %v800 = vadd.f32 %v764, %v786
        %v801 = vadd.f32 %v765, %v786
        %v802 = vadd.f32 %v766, %v786
        %v803 = vadd.f32 %v767, %v786
        %v804 = vadd.f32 %v768, %v786
        %v805 = vadd.f32 %v769, %v786
        %v806 = vadd.f32 %v770, %v786
        %v807 = vadd.f32 %v771, %v786
        %v808 = vadd.f32 %v772, %v786
        %v809 = vadd.f32 %v773, %v786
        %v810 = vadd.f32 %v774, %v786
        %v811 = vadd.f32 %v775, %v786
        %v812 = vadd.f32 %v776, %v786
        %v813 = vadd.f32 %v777, %v786
        %v814 = vadd.f32 %v778, %v786
        %v815 = vadd.f32 %v779, %v786
        %v816 = vadd.f32 %v780, %v786
        %v817 = vadd.f32 %v781, %v786
        %v818 = vadd.f32 %v782, %v786
        %v819 = vadd.f32 %v783, %v786
        %v820 = vmax.f32 %v788, 0.0
        %v821 = vmax.f32 %v789, 0.0
        %v822 = vmax.f32 %v790, 0.0
        %v823 = vmax.f32 %v791, 0.0
        %v824 = vmax.f32 %v792, 0.0
        %v825 = vmax.f32 %v793, 0.0
        %v826 = vmax.f32 %v794, 0.0
        %v827 = vmax.f32 %v795, 0.0
        %v828 = vmax.f32 %v796, 0.0
        %v829 = vmax.f32 %v797, 0.0
        %v830 = vmax.f32 %v798, 0.0
        %v831 = vmax.f32 %v799, 0.0
        %v832 = vmax.f32 %v800, 0.0
        %v833 = vmax.f32 %v801, 0.0
        %v834 = vmax.f32 %v802, 0.0
        %v835 = vmax.f32 %v803, 0.0
        %v836 = vmax.f32 %v804, 0.0
        %v837 = vmax.f32 %v805, 0.0
        %v838 = vmax.f32 %v806, 0.0
        %v839 = vmax.f32 %v807, 0.0
        %v840 = vmax.f32 %v808, 0.0
        %v841 = vmax.f32 %v809, 0.0
        %v842 = vmax.f32 %v810, 0.0
        %v843 = vmax.f32 %v811, 0.0
        %v844 = vmax.f32 %v812, 0.0
        %v845 = vmax.f32 %v813, 0.0
        %v846 = vmax.f32 %v814, 0.0
        %v847 = vmax.f32 %v815, 0.0
        %v848 = vmax.f32 %v816, 0.0
        %v849 = vmax.f32 %v817, 0.0
        %v850 = vmax.f32 %v818, 0.0
        %v851 = vmax.f32 %v819, 0.0
        %v852 = vpack.c.bf16 %v820, %v820
        %v853 = vpack.c.bf16 %v821, %v821
        %v854 = vpack.c.bf16 %v822, %v822
        %v855 = vpack.c.bf16 %v823, %v823
        %v856 = vpack.c.bf16 %v824, %v824
        %v857 = vpack.c.bf16 %v825, %v825
        %v858 = vpack.c.bf16 %v826, %v826
        %v859 = vpack.c.bf16 %v827, %v827
        %v860 = vpack.c.bf16 %v828, %v828
        %v861 = vpack.c.bf16 %v829, %v829
        %v862 = vpack.c.bf16 %v830, %v830
        %v863 = vpack.c.bf16 %v831, %v831
        %v864 = vpack.c.bf16 %v832, %v832
        %v865 = vpack.c.bf16 %v833, %v833
        %v866 = vpack.c.bf16 %v834, %v834
        %v867 = vpack.c.bf16 %v835, %v835
        %v868 = vpack.c.bf16 %v836, %v836
        %v869 = vpack.c.bf16 %v837, %v837
        %v870 = vpack.c.bf16 %v838, %v838
        %v871 = vpack.c.bf16 %v839, %v839
        %v872 = vpack.c.bf16 %v840, %v840
        %v873 = vpack.c.bf16 %v841, %v841
        %v874 = vpack.c.bf16 %v842, %v842
        %v875 = vpack.c.bf16 %v843, %v843
        %v876 = vpack.c.bf16 %v844, %v844
        %v877 = vpack.c.bf16 %v845, %v845
        %v878 = vpack.c.bf16 %v846, %v846
        %v879 = vpack.c.bf16 %v847, %v847
        %v880 = vpack.c.bf16 %v848, %v848
        %v881 = vpack.c.bf16 %v849, %v849
        %v882 = vpack.c.bf16 %v850, %v850
        %v883 = vpack.c.bf16 %v851, %v851
        %884 = vst [vmem:[%s298] sm:$0xf] %v852
        %885 = vst [vmem:[%s298 + $0x4] sm:$0xf] %v853
        %886 = vst [vmem:[%s298 + $0x8] sm:$0xf] %v854
        %887 = vst [vmem:[%s298 + $0xc] sm:$0xf] %v855
        %888 = vst [vmem:[%s298 + $0x10] sm:$0xf] %v856
        %889 = vst [vmem:[%s298 + $0x14] sm:$0xf] %v857
        %890 = vst [vmem:[%s298 + $0x18] sm:$0xf] %v858
        %891 = vst [vmem:[%s298 + $0x1c] sm:$0xf] %v859
        %892 = vst [vmem:[%s298 + $0x20] sm:$0xf] %v860
        %893 = vst [vmem:[%s298 + $0x24] sm:$0xf] %v861
        %894 = vst [vmem:[%s298 + $0x28] sm:$0xf] %v862
        %895 = vst [vmem:[%s298 + $0x2c] sm:$0xf] %v863
        %896 = vst [vmem:[%s298 + $0x30] sm:$0xf] %v864
        %897 = vst [vmem:[%s298 + $0x34] sm:$0xf] %v865
        %898 = vst [vmem:[%s298 + $0x38] sm:$0xf] %v866
        %899 = vst [vmem:[%s298 + $0x3c] sm:$0xf] %v867
        %900 = vst [vmem:[%s298 + $0x40] sm:$0xf] %v868
        %901 = vst [vmem:[%s298 + $0x44] sm:$0xf] %v869
        %902 = vst [vmem:[%s298 + $0x48] sm:$0xf] %v870
        %903 = vst [vmem:[%s298 + $0x4c] sm:$0xf] %v871
        %904 = vst [vmem:[%s298 + $0x50] sm:$0xf] %v872
        %905 = vst [vmem:[%s298 + $0x54] sm:$0xf] %v873
        %906 = vst [vmem:[%s298 + $0x58] sm:$0xf] %v874
        %907 = vst [vmem:[%s298 + $0x5c] sm:$0xf] %v875
        %908 = vst [vmem:[%s298 + $0x60] sm:$0xf] %v876
        %909 = vst [vmem:[%s298 + $0x64] sm:$0xf] %v877
        %910 = vst [vmem:[%s298 + $0x68] sm:$0xf] %v878
        %911 = vst [vmem:[%s298 + $0x6c] sm:$0xf] %v879
        %912 = vst [vmem:[%s298 + $0x70] sm:$0xf] %v880
        %913 = vst [vmem:[%s298 + $0x74] sm:$0xf] %v881
        %914 = vst [vmem:[%s298 + $0x78] sm:$0xf] %v882
        %915 = vst [vmem:[%s298 + $0x7c] sm:$0xf] %v883
      $region44: #{resnets_forward.10} parent=35 // pred_fallthru
        _
      %s916 = smul.u32 32, %s20
      %p917 = scmp.lt.s32.totalorder %s916, 63
      %s918 = scalar_select %p917, %s916, 63
      %p919 = scmp.lt.s32.totalorder %s21, 0
      %s920 = scalar_select %p919, %s21, 0
      %s921 = sadd.s32 %s920, %s918
      %s922 = smul.addr %s921, 4
      %s923 = scalar_lea.vmem %s4, %s922
      // Predicated region
      $region45: #{resnets_forward.10} parent=35 // pred_check
        %p924 = pneg %p162
      $region46: #{resnets_forward.10} parent=35 // pred_check_branch
        %926 = sbr.rel (%p924) target = $region48
      $region47: #{resnets_forward.10} parent=35 // pred_region
        %s927 = smul.u32 32, %s20
      $region48: #{resnets_forward.10} parent=35 // pred_fallthru
        _
    $region36: #{resnets_forward.10} parent=5 // pred_fallthru
      _
    %p928 = scmp.le.s32.totalorder 2, %s10
    // Predicated region
    $region49: #{resnets_forward.10} parent=5 // pred_check
      %p929 = pneg %p928
    $region50: #{resnets_forward.10} parent=5 // pred_check_branch
      %931 = sbr.rel (%p929) target = $region52
    $region51: #{resnets_forward.10} parent=5 // pred_region
      %s932 = ssub.s32 %s10, 2
      // Predicated region
      $region53: #{resnets_forward.10} parent=51 // pred_check
        %p933 = pneg %p168
      $region54: #{resnets_forward.10} parent=51 // pred_check_branch
        %935 = sbr.rel (%p933) target = $region56
      $region55: #{resnets_forward.10} parent=51 // pred_region
        %s936 = smul.u32 32, %s23
        %p937 = scmp.lt.s32.totalorder %s936, 63
        %s938 = scalar_select %p937, %s936, 63
        %p939 = scmp.lt.s32.totalorder %s24, 0
        %s940 = scalar_select %p939, %s24, 0
        %s941 = sadd.s32 %s940, %s938
        %s942 = smul.addr %s941, 4
        %s943 = scalar_lea.vmem %s4, %s942
      $region56: #{resnets_forward.10} parent=51 // pred_fallthru
        _
    $region52: #{resnets_forward.10} parent=5 // pred_fallthru
      _
  $region6: #{resnets_forward.10} parent=0 // loop_footer
    %s14 = sadd.s32 1, %s10
  $region7: #{resnets_forward.10} parent=0 // loop_footer_branch
    %9 = sbr.rel target = $region3
  $region8: #{resnets_forward.10} parent=0 // loop_exit
    _

// kernel: resnets_forward.13
$region0: #{resnets_forward.13}
  #allocation0 [shape = 'u32[]', space=smem, size = 0x4, offset = 0x4, fixed_abs, tag = 'smem constant byte address 0x4 - core index']
  #allocation1 [shape = 'u32[72,128]{1,0:T(1,128)}', space=vmem, size = 0x9000, scoped, tag = 'internal scratch']
  #allocation2 [shape = 'f32[128,128]{1,0:T(8,128)}', space=vmem, size = 0x10000, scoped, tag = 'scratch operand']
  %s0 = inlined_call_operand.vmem [shape: bf16[128,128], index: 0, kind: input, shape index: {}]
  %s1 = inlined_call_operand.vmem [shape: bf16[128,128], index: 1, kind: input, shape index: {}]
  %s2 = inlined_call_operand.vmem [shape: f32[1,128], index: 2, kind: input, shape index: {}]
  %s3 = inlined_call_operand.vmem [shape: f32[1,128], index: 3, kind: input, shape index: {}]
  %s4 = inlined_call_operand.vmem [shape: bf16[128,128], index: 4, kind: output, shape index: {}]
  %s5 = sld [smem:[#allocation0]]
  $region34: #{resnets_forward.13} parent=0
    _
  %s7 = ssub.s32 1, %s5
  %s8 = scalar_select 0, %s7, %s5
  // Predicated region
  $region2: #{resnets_forward.13} parent=0 // pred_check
    _
  $region3: #{resnets_forward.13} parent=0 // pred_check_branch
    %10 = sbr.rel (0) target = $region5
  $region4: #{resnets_forward.13} parent=0 // pred_region
    _
  $region5: #{resnets_forward.13} parent=0 // pred_fallthru
    _
  // Predicated region
  $region6: #{resnets_forward.13} parent=0 // pred_check
    _
  $region7: #{resnets_forward.13} parent=0 // pred_check_branch
    %12 = sbr.rel (0) target = $region9
  $region8: #{resnets_forward.13} parent=0 // pred_region
    _
  $region9: #{resnets_forward.13} parent=0 // pred_fallthru
    _
  // Predicated region
  $region10: #{resnets_forward.13} parent=0 // pred_check
    _
  $region11: #{resnets_forward.13} parent=0 // pred_check_branch
    %14 = sbr.rel (0) target = $region13
  $region12: #{resnets_forward.13} parent=0 // pred_region
    _
  $region13: #{resnets_forward.13} parent=0 // pred_fallthru
    _
  // Predicated region
  $region14: #{resnets_forward.13} parent=0 // pred_check
    _
  $region15: #{resnets_forward.13} parent=0 // pred_check_branch
    %16 = sbr.rel (0) target = $region17
  $region16: #{resnets_forward.13} parent=0 // pred_region
    _
  $region17: #{resnets_forward.13} parent=0 // pred_fallthru
    _
  %p17 = scmp.eq.s32.totalorder 0, 0
  // Predicated region
  $region18: #{resnets_forward.13} parent=0 // pred_check
    %p18 = pneg %p17
  $region19: #{resnets_forward.13} parent=0 // pred_check_branch
    %20 = sbr.rel (%p18) target = $region21
  $region20: #{resnets_forward.13} parent=0 // pred_region
    %21 = vst [vmem:[#allocation2] sm:$0xff] 0.0
    %22 = vst [vmem:[#allocation2 + $0x8] sm:$0xff] 0.0
    %23 = vst [vmem:[#allocation2 + $0x10] sm:$0xff] 0.0
    %24 = vst [vmem:[#allocation2 + $0x18] sm:$0xff] 0.0
    %25 = vst [vmem:[#allocation2 + $0x20] sm:$0xff] 0.0
    %26 = vst [vmem:[#allocation2 + $0x28] sm:$0xff] 0.0
    %27 = vst [vmem:[#allocation2 + $0x30] sm:$0xff] 0.0
    %28 = vst [vmem:[#allocation2 + $0x38] sm:$0xff] 0.0
    %29 = vst [vmem:[#allocation2 + $0x40] sm:$0xff] 0.0
    %30 = vst [vmem:[#allocation2 + $0x48] sm:$0xff] 0.0
    %31 = vst [vmem:[#allocation2 + $0x50] sm:$0xff] 0.0
    %32 = vst [vmem:[#allocation2 + $0x58] sm:$0xff] 0.0
    %33 = vst [vmem:[#allocation2 + $0x60] sm:$0xff] 0.0
    %34 = vst [vmem:[#allocation2 + $0x68] sm:$0xff] 0.0
    %35 = vst [vmem:[#allocation2 + $0x70] sm:$0xff] 0.0
    %36 = vst [vmem:[#allocation2 + $0x78] sm:$0xff] 0.0
  $region21: #{resnets_forward.13} parent=0 // pred_fallthru
    _
  %v37 = vld [vmem:[#allocation2] sm:$0xff]
  %v38 = vld [vmem:[#allocation2 + $0x8] sm:$0xff]
  %v39 = vld [vmem:[#allocation2 + $0x10] sm:$0xff]
  %v40 = vld [vmem:[#allocation2 + $0x18] sm:$0xff]
  %v41 = vld [vmem:[#allocation2 + $0x20] sm:$0xff]
  %v42 = vld [vmem:[#allocation2 + $0x28] sm:$0xff]
  %v43 = vld [vmem:[#allocation2 + $0x30] sm:$0xff]
  %v44 = vld [vmem:[#allocation2 + $0x38] sm:$0xff]
  %v45 = vld [vmem:[#allocation2 + $0x40] sm:$0xff]
  %v46 = vld [vmem:[#allocation2 + $0x48] sm:$0xff]
  %v47 = vld [vmem:[#allocation2 + $0x50] sm:$0xff]
  %v48 = vld [vmem:[#allocation2 + $0x58] sm:$0xff]
  %v49 = vld [vmem:[#allocation2 + $0x60] sm:$0xff]
  %v50 = vld [vmem:[#allocation2 + $0x68] sm:$0xff]
  %v51 = vld [vmem:[#allocation2 + $0x70] sm:$0xff]
  %v52 = vld [vmem:[#allocation2 + $0x78] sm:$0xff]
  %v53 = vld [vmem:[%s0] sm:$0xf]
  %v54 = vld [vmem:[%s0 + $0x4] sm:$0xf]
  %v55 = vld [vmem:[%s0 + $0x8] sm:$0xf]
  %v56 = vld [vmem:[%s0 + $0xc] sm:$0xf]
  %v57 = vld [vmem:[%s0 + $0x10] sm:$0xf]
  %v58 = vld [vmem:[%s0 + $0x14] sm:$0xf]
  %v59 = vld [vmem:[%s0 + $0x18] sm:$0xf]
  %v60 = vld [vmem:[%s0 + $0x1c] sm:$0xf]
  %v61 = vld [vmem:[%s0 + $0x20] sm:$0xf]
  %v62 = vld [vmem:[%s0 + $0x24] sm:$0xf]
  %v63 = vld [vmem:[%s0 + $0x28] sm:$0xf]
  %v64 = vld [vmem:[%s0 + $0x2c] sm:$0xf]
  %v65 = vld [vmem:[%s0 + $0x30] sm:$0xf]
  %v66 = vld [vmem:[%s0 + $0x34] sm:$0xf]
  %v67 = vld [vmem:[%s0 + $0x38] sm:$0xf]
  %v68 = vld [vmem:[%s0 + $0x3c] sm:$0xf]
  %v69 = vld [vmem:[%s1] sm:$0xf]
  %v70 = vld [vmem:[%s1 + $0x4] sm:$0xf]
  %v71 = vld [vmem:[%s1 + $0x8] sm:$0xf]
  %v72 = vld [vmem:[%s1 + $0xc] sm:$0xf]
  %v73 = vld [vmem:[%s1 + $0x10] sm:$0xf]
  %v74 = vld [vmem:[%s1 + $0x14] sm:$0xf]
  %v75 = vld [vmem:[%s1 + $0x18] sm:$0xf]
  %v76 = vld [vmem:[%s1 + $0x1c] sm:$0xf]
  %v77 = vld [vmem:[%s1 + $0x20] sm:$0xf]
  %v78 = vld [vmem:[%s1 + $0x24] sm:$0xf]
  %v79 = vld [vmem:[%s1 + $0x28] sm:$0xf]
  %v80 = vld [vmem:[%s1 + $0x2c] sm:$0xf]
  %v81 = vld [vmem:[%s1 + $0x30] sm:$0xf]
  %v82 = vld [vmem:[%s1 + $0x34] sm:$0xf]
  %v83 = vld [vmem:[%s1 + $0x38] sm:$0xf]
  %v84 = vld [vmem:[%s1 + $0x3c] sm:$0xf]
  %v101 = vunpack.c.l.b16 %v53
  %v102 = vunpack.c.l.b16 %v54
  %v103 = vunpack.c.l.b16 %v55
  %v104 = vunpack.c.l.b16 %v56
  %v105 = vunpack.c.l.b16 %v57
  %v106 = vunpack.c.l.b16 %v58
  %v107 = vunpack.c.l.b16 %v59
  %v108 = vunpack.c.l.b16 %v60
  %v109 = vunpack.c.l.b16 %v61
  %v110 = vunpack.c.l.b16 %v62
  %v111 = vunpack.c.l.b16 %v63
  %v112 = vunpack.c.l.b16 %v64
  %v113 = vunpack.c.l.b16 %v65
  %v114 = vunpack.c.l.b16 %v66
  %v115 = vunpack.c.l.b16 %v67
  %v116 = vunpack.c.l.b16 %v68
  %v117 = vpack.c.b16 %v102, %v101
  %v118 = vpack.c.b16 %v104, %v103
  %v119 = vpack.c.b16 %v106, %v105
  %v120 = vpack.c.b16 %v108, %v107
  %v121 = vpack.c.b16 %v110, %v109
  %v122 = vpack.c.b16 %v112, %v111
  %v123 = vpack.c.b16 %v114, %v113
  %v124 = vpack.c.b16 %v116, %v115
  %v149 = vunpack.c.l.b16 %v69
  %v150 = vunpack.c.l.b16 %v70
  %v151 = vunpack.c.l.b16 %v71
  %v152 = vunpack.c.l.b16 %v72
  %v153 = vunpack.c.l.b16 %v73
  %v154 = vunpack.c.l.b16 %v74
  %v155 = vunpack.c.l.b16 %v75
  %v156 = vunpack.c.l.b16 %v76
  %v157 = vunpack.c.l.b16 %v77
  %v158 = vunpack.c.l.b16 %v78
  %v159 = vunpack.c.l.b16 %v79
  %v160 = vunpack.c.l.b16 %v80
  %v161 = vunpack.c.l.b16 %v81
  %v162 = vunpack.c.l.b16 %v82
  %v163 = vunpack.c.l.b16 %v83
  %v164 = vunpack.c.l.b16 %v84
  %v165 = vpack.c.b16 %v150, %v149
  %v166 = vpack.c.b16 %v152, %v151
  %v167 = vpack.c.b16 %v154, %v153
  %v168 = vpack.c.b16 %v156, %v155
  %v169 = vpack.c.b16 %v158, %v157
  %v170 = vpack.c.b16 %v160, %v159
  %v171 = vpack.c.b16 %v162, %v161
  %v172 = vpack.c.b16 %v164, %v163
  %181 = vmatpush.bf16.msra.mxu0 %v172
  %182 = vmatpush.bf16.msra.mxu0 %v171
  %183 = vmatpush.bf16.msra.mxu0 %v170
  %184 = vmatpush.bf16.msra.mxu0 %v169
  %185 = vmatpush.bf16.msra.mxu0 %v168
  %186 = vmatpush.bf16.msra.mxu0 %v167
  %187 = vmatpush.bf16.msra.mxu0 %v166
  %188 = vmatpush.bf16.msra.mxu0 %v165
  %189 = vmatmul.bf16.gmra.mxu0 %v117
  %v190 = vpop.f32.mrf.mxu0
  %v191 = vadd.f32 0.0, %v190
  %v192 = vpop.f32.mrf.mxu0
  %v193 = vadd.f32 0.0, %v192
  %194 = vmatmul.bf16.gmra.mxu0 %v118
  %v195 = vpop.f32.mrf.mxu0
  %v196 = vadd.f32 0.0, %v195
  %v197 = vpop.f32.mrf.mxu0
  %v198 = vadd.f32 0.0, %v197
  %199 = vmatmul.bf16.gmra.mxu0 %v119
  %v200 = vpop.f32.mrf.mxu0
  %v201 = vadd.f32 0.0, %v200
  %v202 = vpop.f32.mrf.mxu0
  %v203 = vadd.f32 0.0, %v202
  %204 = vmatmul.bf16.gmra.mxu0 %v120
  %v205 = vpop.f32.mrf.mxu0
  %v206 = vadd.f32 0.0, %v205
  %v207 = vpop.f32.mrf.mxu0
  %v208 = vadd.f32 0.0, %v207
  %209 = vmatmul.bf16.gmra.mxu0 %v121
  %v210 = vpop.f32.mrf.mxu0
  %v211 = vadd.f32 0.0, %v210
  %v212 = vpop.f32.mrf.mxu0
  %v213 = vadd.f32 0.0, %v212
  %214 = vmatmul.bf16.gmra.mxu0 %v122
  %v215 = vpop.f32.mrf.mxu0
  %v216 = vadd.f32 0.0, %v215
  %v217 = vpop.f32.mrf.mxu0
  %v218 = vadd.f32 0.0, %v217
  %219 = vmatmul.bf16.gmra.mxu0 %v123
  %v220 = vpop.f32.mrf.mxu0
  %v221 = vadd.f32 0.0, %v220
  %v222 = vpop.f32.mrf.mxu0
  %v223 = vadd.f32 0.0, %v222
  %224 = vmatmul.bf16.gmra.mxu0 %v124
  %v225 = vpop.f32.mrf.mxu0
  %v226 = vadd.f32 0.0, %v225
  %v227 = vpop.f32.mrf.mxu0
  %v228 = vadd.f32 0.0, %v227
  %229 = vdwg.mxu0
  %v230 = vadd.f32 %v37, %v191
  %v231 = vadd.f32 %v38, %v193
  %v232 = vadd.f32 %v39, %v196
  %v233 = vadd.f32 %v40, %v198
  %v234 = vadd.f32 %v41, %v201
  %v235 = vadd.f32 %v42, %v203
  %v236 = vadd.f32 %v43, %v206
  %v237 = vadd.f32 %v44, %v208
  %v238 = vadd.f32 %v45, %v211
  %v239 = vadd.f32 %v46, %v213
  %v240 = vadd.f32 %v47, %v216
  %v241 = vadd.f32 %v48, %v218
  %v242 = vadd.f32 %v49, %v221
  %v243 = vadd.f32 %v50, %v223
  %v244 = vadd.f32 %v51, %v226
  %v245 = vadd.f32 %v52, %v228
  %246 = vst [vmem:[#allocation2] sm:$0xff] %v230
  %247 = vst [vmem:[#allocation2 + $0x8] sm:$0xff] %v231
  %248 = vst [vmem:[#allocation2 + $0x10] sm:$0xff] %v232
  %249 = vst [vmem:[#allocation2 + $0x18] sm:$0xff] %v233
  %250 = vst [vmem:[#allocation2 + $0x20] sm:$0xff] %v234
  %251 = vst [vmem:[#allocation2 + $0x28] sm:$0xff] %v235
  %252 = vst [vmem:[#allocation2 + $0x30] sm:$0xff] %v236
  %253 = vst [vmem:[#allocation2 + $0x38] sm:$0xff] %v237
  %254 = vst [vmem:[#allocation2 + $0x40] sm:$0xff] %v238
  %255 = vst [vmem:[#allocation2 + $0x48] sm:$0xff] %v239
  %256 = vst [vmem:[#allocation2 + $0x50] sm:$0xff] %v240
  %257 = vst [vmem:[#allocation2 + $0x58] sm:$0xff] %v241
  %258 = vst [vmem:[#allocation2 + $0x60] sm:$0xff] %v242
  %259 = vst [vmem:[#allocation2 + $0x68] sm:$0xff] %v243
  %260 = vst [vmem:[#allocation2 + $0x70] sm:$0xff] %v244
  %261 = vst [vmem:[#allocation2 + $0x78] sm:$0xff] %v245
  // Predicated region
  $region22: #{resnets_forward.13} parent=0 // pred_check
    %p262 = pneg %p17
  $region23: #{resnets_forward.13} parent=0 // pred_check_branch
    %264 = sbr.rel (%p262) target = $region25
  $region24: #{resnets_forward.13} parent=0 // pred_region
    %v265 = vld [vmem:[#allocation2] sm:$0xff]
    %v266 = vld [vmem:[#allocation2 + $0x8] sm:$0xff]
    %v267 = vld [vmem:[#allocation2 + $0x10] sm:$0xff]
    %v268 = vld [vmem:[#allocation2 + $0x18] sm:$0xff]
    %v269 = vld [vmem:[#allocation2 + $0x20] sm:$0xff]
    %v270 = vld [vmem:[#allocation2 + $0x28] sm:$0xff]
    %v271 = vld [vmem:[#allocation2 + $0x30] sm:$0xff]
    %v272 = vld [vmem:[#allocation2 + $0x38] sm:$0xff]
    %v273 = vld [vmem:[#allocation2 + $0x40] sm:$0xff]
    %v274 = vld [vmem:[#allocation2 + $0x48] sm:$0xff]
    %v275 = vld [vmem:[#allocation2 + $0x50] sm:$0xff]
    %v276 = vld [vmem:[#allocation2 + $0x58] sm:$0xff]
    %v277 = vld [vmem:[#allocation2 + $0x60] sm:$0xff]
    %v278 = vld [vmem:[#allocation2 + $0x68] sm:$0xff]
    %v279 = vld [vmem:[#allocation2 + $0x70] sm:$0xff]
    %v280 = vld [vmem:[#allocation2 + $0x78] sm:$0xff]
    %v281 = vld [vmem:[%s2] sm:$0x1]
    %v283 = vperm.slane %v281, 0
    %v285 = vmul.f32 %v265, %v283
    %v286 = vmul.f32 %v266, %v283
    %v287 = vmul.f32 %v267, %v283
    %v288 = vmul.f32 %v268, %v283
    %v289 = vmul.f32 %v269, %v283
    %v290 = vmul.f32 %v270, %v283
    %v291 = vmul.f32 %v271, %v283
    %v292 = vmul.f32 %v272, %v283
    %v293 = vmul.f32 %v273, %v283
    %v294 = vmul.f32 %v274, %v283
    %v295 = vmul.f32 %v275, %v283
    %v296 = vmul.f32 %v276, %v283
    %v297 = vmul.f32 %v277, %v283
    %v298 = vmul.f32 %v278, %v283
    %v299 = vmul.f32 %v279, %v283
    %v300 = vmul.f32 %v280, %v283
    %v301 = vld [vmem:[%s3] sm:$0x1]
    %v303 = vperm.slane %v301, 0
    %v305 = vadd.f32 %v285, %v303
    %v306 = vadd.f32 %v286, %v303
    %v307 = vadd.f32 %v287, %v303
    %v308 = vadd.f32 %v288, %v303
    %v309 = vadd.f32 %v289, %v303
    %v310 = vadd.f32 %v290, %v303
    %v311 = vadd.f32 %v291, %v303
    %v312 = vadd.f32 %v292, %v303
    %v313 = vadd.f32 %v293, %v303
    %v314 = vadd.f32 %v294, %v303
    %v315 = vadd.f32 %v295, %v303
    %v316 = vadd.f32 %v296, %v303
    %v317 = vadd.f32 %v297, %v303
    %v318 = vadd.f32 %v298, %v303
    %v319 = vadd.f32 %v299, %v303
    %v320 = vadd.f32 %v300, %v303
    %v321 = vmax.f32 %v305, 0.0
    %v322 = vmax.f32 %v306, 0.0
    %v323 = vmax.f32 %v307, 0.0
    %v324 = vmax.f32 %v308, 0.0
    %v325 = vmax.f32 %v309, 0.0
    %v326 = vmax.f32 %v310, 0.0
    %v327 = vmax.f32 %v311, 0.0
    %v328 = vmax.f32 %v312, 0.0
    %v329 = vmax.f32 %v313, 0.0
    %v330 = vmax.f32 %v314, 0.0
    %v331 = vmax.f32 %v315, 0.0
    %v332 = vmax.f32 %v316, 0.0
    %v333 = vmax.f32 %v317, 0.0
    %v334 = vmax.f32 %v318, 0.0
    %v335 = vmax.f32 %v319, 0.0
    %v336 = vmax.f32 %v320, 0.0
    %v337 = vpack.c.bf16 %v321, %v321
    %v338 = vpack.c.bf16 %v322, %v322
    %v339 = vpack.c.bf16 %v323, %v323
    %v340 = vpack.c.bf16 %v324, %v324
    %v341 = vpack.c.bf16 %v325, %v325
    %v342 = vpack.c.bf16 %v326, %v326
    %v343 = vpack.c.bf16 %v327, %v327
    %v344 = vpack.c.bf16 %v328, %v328
    %v345 = vpack.c.bf16 %v329, %v329
    %v346 = vpack.c.bf16 %v330, %v330
    %v347 = vpack.c.bf16 %v331, %v331
    %v348 = vpack.c.bf16 %v332, %v332
    %v349 = vpack.c.bf16 %v333, %v333
    %v350 = vpack.c.bf16 %v334, %v334
    %v351 = vpack.c.bf16 %v335, %v335
    %v352 = vpack.c.bf16 %v336, %v336
    %353 = vst [vmem:[%s4] sm:$0xf] %v337
    %354 = vst [vmem:[%s4 + $0x4] sm:$0xf] %v338
    %355 = vst [vmem:[%s4 + $0x8] sm:$0xf] %v339
    %356 = vst [vmem:[%s4 + $0xc] sm:$0xf] %v340
    %357 = vst [vmem:[%s4 + $0x10] sm:$0xf] %v341
    %358 = vst [vmem:[%s4 + $0x14] sm:$0xf] %v342
    %359 = vst [vmem:[%s4 + $0x18] sm:$0xf] %v343
    %360 = vst [vmem:[%s4 + $0x1c] sm:$0xf] %v344
    %361 = vst [vmem:[%s4 + $0x20] sm:$0xf] %v345
    %362 = vst [vmem:[%s4 + $0x24] sm:$0xf] %v346
    %363 = vst [vmem:[%s4 + $0x28] sm:$0xf] %v347
    %364 = vst [vmem:[%s4 + $0x2c] sm:$0xf] %v348
    %365 = vst [vmem:[%s4 + $0x30] sm:$0xf] %v349
    %366 = vst [vmem:[%s4 + $0x34] sm:$0xf] %v350
    %367 = vst [vmem:[%s4 + $0x38] sm:$0xf] %v351
    %368 = vst [vmem:[%s4 + $0x3c] sm:$0xf] %v352
  $region25: #{resnets_forward.13} parent=0 // pred_fallthru
    _
  // Predicated region
  $region26: #{resnets_forward.13} parent=0 // pred_check
    _
  $region27: #{resnets_forward.13} parent=0 // pred_check_branch
    %370 = sbr.rel (0) target = $region29
  $region28: #{resnets_forward.13} parent=0 // pred_region
    _
  $region29: #{resnets_forward.13} parent=0 // pred_fallthru
    _
  // Predicated region
  $region30: #{resnets_forward.13} parent=0 // pred_check
    _
  $region31: #{resnets_forward.13} parent=0 // pred_check_branch
    %372 = sbr.rel (0) target = $region33
  $region32: #{resnets_forward.13} parent=0 // pred_region
    _
  $region33: #{resnets_forward.13} parent=0 // pred_fallthru
    _

// kernel: resnets_forward.12
$region0: #{resnets_forward.12}
  #allocation0 [shape = 'u32[]', space=smem, size = 0x4, offset = 0x4, fixed_abs, tag = 'smem constant byte address 0x4 - core index']
  #allocation1 [shape = 'u32[72,128]{1,0:T(1,128)}', space=vmem, size = 0x9000, scoped, tag = 'internal scratch']
  %s0 = inlined_call_operand.vmem [shape: bf16[9,128,16], index: 0, kind: input, shape index: {}]
  %s1 = inlined_call_operand.vmem [shape: bf16[128,16], index: 1, kind: output, shape index: {}]
  %s2 = sld [smem:[#allocation0]]
  $region14: #{resnets_forward.12} parent=0
    _
  %s4 = ssub.s32 1, %s2
  %s5 = scalar_select 0, %s4, %s2
  // Predicated region
  $region2: #{resnets_forward.12} parent=0 // pred_check
    _
  $region3: #{resnets_forward.12} parent=0 // pred_check_branch
    %7 = sbr.rel (0) target = $region5
  $region4: #{resnets_forward.12} parent=0 // pred_region
    _
  $region5: #{resnets_forward.12} parent=0 // pred_fallthru
    _
  %v8 = vld [vmem:[%s0] sm:$0xf]
  %v9 = vld [vmem:[%s0 + $0x4] sm:$0xf]
  %v10 = vld [vmem:[%s0 + $0x8] sm:$0xf]
  %v11 = vld [vmem:[%s0 + $0xc] sm:$0xf]
  %v12 = vld [vmem:[%s0 + $0x10] sm:$0xf]
  %v13 = vld [vmem:[%s0 + $0x14] sm:$0xf]
  %v14 = vld [vmem:[%s0 + $0x18] sm:$0xf]
  %v15 = vld [vmem:[%s0 + $0x1c] sm:$0xf]
  %v16 = vld [vmem:[%s0 + $0x20] sm:$0xf]
  %v17 = vld [vmem:[%s0 + $0x24] sm:$0xf]
  %v18 = vld [vmem:[%s0 + $0x28] sm:$0xf]
  %v19 = vld [vmem:[%s0 + $0x2c] sm:$0xf]
  %v20 = vld [vmem:[%s0 + $0x30] sm:$0xf]
  %v21 = vld [vmem:[%s0 + $0x34] sm:$0xf]
  %v22 = vld [vmem:[%s0 + $0x38] sm:$0xf]
  %v23 = vld [vmem:[%s0 + $0x3c] sm:$0xf]
  %v24 = vld [vmem:[%s0 + $0x40] sm:$0xf]
  %v25 = vld [vmem:[%s0 + $0x44] sm:$0xf]
  %v26 = vld [vmem:[%s0 + $0x48] sm:$0xf]
  %v27 = vld [vmem:[%s0 + $0x4c] sm:$0xf]
  %v28 = vld [vmem:[%s0 + $0x50] sm:$0xf]
  %v29 = vld [vmem:[%s0 + $0x54] sm:$0xf]
  %v30 = vld [vmem:[%s0 + $0x58] sm:$0xf]
  %v31 = vld [vmem:[%s0 + $0x5c] sm:$0xf]
  %v32 = vld [vmem:[%s0 + $0x60] sm:$0xf]
  %v33 = vld [vmem:[%s0 + $0x64] sm:$0xf]
  %v34 = vld [vmem:[%s0 + $0x68] sm:$0xf]
  %v35 = vld [vmem:[%s0 + $0x6c] sm:$0xf]
  %v36 = vld [vmem:[%s0 + $0x70] sm:$0xf]
  %v37 = vld [vmem:[%s0 + $0x74] sm:$0xf]
  %v38 = vld [vmem:[%s0 + $0x78] sm:$0xf]
  %v39 = vld [vmem:[%s0 + $0x7c] sm:$0xf]
  %v40 = vld [vmem:[%s0 + $0x80] sm:$0xf]
  %v41 = vld [vmem:[%s0 + $0x84] sm:$0xf]
  %v42 = vld [vmem:[%s0 + $0x88] sm:$0xf]
  %v43 = vld [vmem:[%s0 + $0x8c] sm:$0xf]
  %v44 = vld [vmem:[%s0 + $0x90] sm:$0xf]
  %v45 = vld [vmem:[%s0 + $0x94] sm:$0xf]
  %v46 = vld [vmem:[%s0 + $0x98] sm:$0xf]
  %v47 = vld [vmem:[%s0 + $0x9c] sm:$0xf]
  %v48 = vld [vmem:[%s0 + $0xa0] sm:$0xf]
  %v49 = vld [vmem:[%s0 + $0xa4] sm:$0xf]
  %v50 = vld [vmem:[%s0 + $0xa8] sm:$0xf]
  %v51 = vld [vmem:[%s0 + $0xac] sm:$0xf]
  %v52 = vld [vmem:[%s0 + $0xb0] sm:$0xf]
  %v53 = vld [vmem:[%s0 + $0xb4] sm:$0xf]
  %v54 = vld [vmem:[%s0 + $0xb8] sm:$0xf]
  %v55 = vld [vmem:[%s0 + $0xbc] sm:$0xf]
  %v56 = vld [vmem:[%s0 + $0xc0] sm:$0xf]
  %v57 = vld [vmem:[%s0 + $0xc4] sm:$0xf]
  %v58 = vld [vmem:[%s0 + $0xc8] sm:$0xf]
  %v59 = vld [vmem:[%s0 + $0xcc] sm:$0xf]
  %v60 = vld [vmem:[%s0 + $0xd0] sm:$0xf]
  %v61 = vld [vmem:[%s0 + $0xd4] sm:$0xf]
  %v62 = vld [vmem:[%s0 + $0xd8] sm:$0xf]
  %v63 = vld [vmem:[%s0 + $0xdc] sm:$0xf]
  %v64 = vld [vmem:[%s0 + $0xe0] sm:$0xf]
  %v65 = vld [vmem:[%s0 + $0xe4] sm:$0xf]
  %v66 = vld [vmem:[%s0 + $0xe8] sm:$0xf]
  %v67 = vld [vmem:[%s0 + $0xec] sm:$0xf]
  %v68 = vld [vmem:[%s0 + $0xf0] sm:$0xf]
  %v69 = vld [vmem:[%s0 + $0xf4] sm:$0xf]
  %v70 = vld [vmem:[%s0 + $0xf8] sm:$0xf]
  %v71 = vld [vmem:[%s0 + $0xfc] sm:$0xf]
  %v72 = vld [vmem:[%s0 + $0x100] sm:$0xf]
  %v73 = vld [vmem:[%s0 + $0x104] sm:$0xf]
  %v74 = vld [vmem:[%s0 + $0x108] sm:$0xf]
  %v75 = vld [vmem:[%s0 + $0x10c] sm:$0xf]
  %v76 = vld [vmem:[%s0 + $0x110] sm:$0xf]
  %v77 = vld [vmem:[%s0 + $0x114] sm:$0xf]
  %v78 = vld [vmem:[%s0 + $0x118] sm:$0xf]
  %v79 = vld [vmem:[%s0 + $0x11c] sm:$0xf]
  %v80 = vld [vmem:[%s0 + $0x120] sm:$0xf]
  %v81 = vld [vmem:[%s0 + $0x124] sm:$0xf]
  %v82 = vld [vmem:[%s0 + $0x128] sm:$0xf]
  %v83 = vld [vmem:[%s0 + $0x12c] sm:$0xf]
  %v84 = vld [vmem:[%s0 + $0x130] sm:$0xf]
  %v85 = vld [vmem:[%s0 + $0x134] sm:$0xf]
  %v86 = vld [vmem:[%s0 + $0x138] sm:$0xf]
  %v87 = vld [vmem:[%s0 + $0x13c] sm:$0xf]
  %v88 = vld [vmem:[%s0 + $0x140] sm:$0xf]
  %v89 = vld [vmem:[%s0 + $0x144] sm:$0xf]
  %v90 = vld [vmem:[%s0 + $0x148] sm:$0xf]
  %v91 = vld [vmem:[%s0 + $0x14c] sm:$0xf]
  %v92 = vld [vmem:[%s0 + $0x150] sm:$0xf]
  %v93 = vld [vmem:[%s0 + $0x154] sm:$0xf]
  %v94 = vld [vmem:[%s0 + $0x158] sm:$0xf]
  %v95 = vld [vmem:[%s0 + $0x15c] sm:$0xf]
  %v96 = vld [vmem:[%s0 + $0x160] sm:$0xf]
  %v97 = vld [vmem:[%s0 + $0x164] sm:$0xf]
  %v98 = vld [vmem:[%s0 + $0x168] sm:$0xf]
  %v99 = vld [vmem:[%s0 + $0x16c] sm:$0xf]
  %v100 = vld [vmem:[%s0 + $0x170] sm:$0xf]
  %v101 = vld [vmem:[%s0 + $0x174] sm:$0xf]
  %v102 = vld [vmem:[%s0 + $0x178] sm:$0xf]
  %v103 = vld [vmem:[%s0 + $0x17c] sm:$0xf]
  %v104 = vld [vmem:[%s0 + $0x180] sm:$0xf]
  %v105 = vld [vmem:[%s0 + $0x184] sm:$0xf]
  %v106 = vld [vmem:[%s0 + $0x188] sm:$0xf]
  %v107 = vld [vmem:[%s0 + $0x18c] sm:$0xf]
  %v108 = vld [vmem:[%s0 + $0x190] sm:$0xf]
  %v109 = vld [vmem:[%s0 + $0x194] sm:$0xf]
  %v110 = vld [vmem:[%s0 + $0x198] sm:$0xf]
  %v111 = vld [vmem:[%s0 + $0x19c] sm:$0xf]
  %v112 = vld [vmem:[%s0 + $0x1a0] sm:$0xf]
  %v113 = vld [vmem:[%s0 + $0x1a4] sm:$0xf]
  %v114 = vld [vmem:[%s0 + $0x1a8] sm:$0xf]
  %v115 = vld [vmem:[%s0 + $0x1ac] sm:$0xf]
  %v116 = vld [vmem:[%s0 + $0x1b0] sm:$0xf]
  %v117 = vld [vmem:[%s0 + $0x1b4] sm:$0xf]
  %v118 = vld [vmem:[%s0 + $0x1b8] sm:$0xf]
  %v119 = vld [vmem:[%s0 + $0x1bc] sm:$0xf]
  %v120 = vld [vmem:[%s0 + $0x1c0] sm:$0xf]
  %v121 = vld [vmem:[%s0 + $0x1c4] sm:$0xf]
  %v122 = vld [vmem:[%s0 + $0x1c8] sm:$0xf]
  %v123 = vld [vmem:[%s0 + $0x1cc] sm:$0xf]
  %v124 = vld [vmem:[%s0 + $0x1d0] sm:$0xf]
  %v125 = vld [vmem:[%s0 + $0x1d4] sm:$0xf]
  %v126 = vld [vmem:[%s0 + $0x1d8] sm:$0xf]
  %v127 = vld [vmem:[%s0 + $0x1dc] sm:$0xf]
  %v128 = vld [vmem:[%s0 + $0x1e0] sm:$0xf]
  %v129 = vld [vmem:[%s0 + $0x1e4] sm:$0xf]
  %v130 = vld [vmem:[%s0 + $0x1e8] sm:$0xf]
  %v131 = vld [vmem:[%s0 + $0x1ec] sm:$0xf]
  %v132 = vld [vmem:[%s0 + $0x1f0] sm:$0xf]
  %v133 = vld [vmem:[%s0 + $0x1f4] sm:$0xf]
  %v134 = vld [vmem:[%s0 + $0x1f8] sm:$0xf]
  %v135 = vld [vmem:[%s0 + $0x1fc] sm:$0xf]
  %v136 = vld [vmem:[%s0 + $0x200] sm:$0xf]
  %v137 = vld [vmem:[%s0 + $0x204] sm:$0xf]
  %v138 = vld [vmem:[%s0 + $0x208] sm:$0xf]
  %v139 = vld [vmem:[%s0 + $0x20c] sm:$0xf]
  %v140 = vld [vmem:[%s0 + $0x210] sm:$0xf]
  %v141 = vld [vmem:[%s0 + $0x214] sm:$0xf]
  %v142 = vld [vmem:[%s0 + $0x218] sm:$0xf]
  %v143 = vld [vmem:[%s0 + $0x21c] sm:$0xf]
  %v144 = vld [vmem:[%s0 + $0x220] sm:$0xf]
  %v145 = vld [vmem:[%s0 + $0x224] sm:$0xf]
  %v146 = vld [vmem:[%s0 + $0x228] sm:$0xf]
  %v147 = vld [vmem:[%s0 + $0x22c] sm:$0xf]
  %v148 = vld [vmem:[%s0 + $0x230] sm:$0xf]
  %v149 = vld [vmem:[%s0 + $0x234] sm:$0xf]
  %v150 = vld [vmem:[%s0 + $0x238] sm:$0xf]
  %v151 = vld [vmem:[%s0 + $0x23c] sm:$0xf]
  %v152 = vunpack.c.l.bf16 %v8
  %v153 = vunpack.c.l.bf16 %v9
  %v154 = vunpack.c.l.bf16 %v10
  %v155 = vunpack.c.l.bf16 %v11
  %v156 = vunpack.c.l.bf16 %v12
  %v157 = vunpack.c.l.bf16 %v13
  %v158 = vunpack.c.l.bf16 %v14
  %v159 = vunpack.c.l.bf16 %v15
  %v160 = vunpack.c.l.bf16 %v16
  %v161 = vunpack.c.l.bf16 %v17
  %v162 = vunpack.c.l.bf16 %v18
  %v163 = vunpack.c.l.bf16 %v19
  %v164 = vunpack.c.l.bf16 %v20
  %v165 = vunpack.c.l.bf16 %v21
  %v166 = vunpack.c.l.bf16 %v22
  %v167 = vunpack.c.l.bf16 %v23
  %v168 = vunpack.c.l.bf16 %v24
  %v169 = vunpack.c.l.bf16 %v25
  %v170 = vunpack.c.l.bf16 %v26
  %v171 = vunpack.c.l.bf16 %v27
  %v172 = vunpack.c.l.bf16 %v28
  %v173 = vunpack.c.l.bf16 %v29
  %v174 = vunpack.c.l.bf16 %v30
  %v175 = vunpack.c.l.bf16 %v31
  %v176 = vunpack.c.l.bf16 %v32
  %v177 = vunpack.c.l.bf16 %v33
  %v178 = vunpack.c.l.bf16 %v34
  %v179 = vunpack.c.l.bf16 %v35
  %v180 = vunpack.c.l.bf16 %v36
  %v181 = vunpack.c.l.bf16 %v37
  %v182 = vunpack.c.l.bf16 %v38
  %v183 = vunpack.c.l.bf16 %v39
  %v184 = vunpack.c.l.bf16 %v40
  %v185 = vunpack.c.l.bf16 %v41
  %v186 = vunpack.c.l.bf16 %v42
  %v187 = vunpack.c.l.bf16 %v43
  %v188 = vunpack.c.l.bf16 %v44
  %v189 = vunpack.c.l.bf16 %v45
  %v190 = vunpack.c.l.bf16 %v46
  %v191 = vunpack.c.l.bf16 %v47
  %v192 = vunpack.c.l.bf16 %v48
  %v193 = vunpack.c.l.bf16 %v49
  %v194 = vunpack.c.l.bf16 %v50
  %v195 = vunpack.c.l.bf16 %v51
  %v196 = vunpack.c.l.bf16 %v52
  %v197 = vunpack.c.l.bf16 %v53
  %v198 = vunpack.c.l.bf16 %v54
  %v199 = vunpack.c.l.bf16 %v55
  %v200 = vunpack.c.l.bf16 %v56
  %v201 = vunpack.c.l.bf16 %v57
  %v202 = vunpack.c.l.bf16 %v58
  %v203 = vunpack.c.l.bf16 %v59
  %v204 = vunpack.c.l.bf16 %v60
  %v205 = vunpack.c.l.bf16 %v61
  %v206 = vunpack.c.l.bf16 %v62
  %v207 = vunpack.c.l.bf16 %v63
  %v208 = vunpack.c.l.bf16 %v64
  %v209 = vunpack.c.l.bf16 %v65
  %v210 = vunpack.c.l.bf16 %v66
  %v211 = vunpack.c.l.bf16 %v67
  %v212 = vunpack.c.l.bf16 %v68
  %v213 = vunpack.c.l.bf16 %v69
  %v214 = vunpack.c.l.bf16 %v70
  %v215 = vunpack.c.l.bf16 %v71
  %v216 = vunpack.c.l.bf16 %v72
  %v217 = vunpack.c.l.bf16 %v73
  %v218 = vunpack.c.l.bf16 %v74
  %v219 = vunpack.c.l.bf16 %v75
  %v220 = vunpack.c.l.bf16 %v76
  %v221 = vunpack.c.l.bf16 %v77
  %v222 = vunpack.c.l.bf16 %v78
  %v223 = vunpack.c.l.bf16 %v79
  %v224 = vunpack.c.l.bf16 %v80
  %v225 = vunpack.c.l.bf16 %v81
  %v226 = vunpack.c.l.bf16 %v82
  %v227 = vunpack.c.l.bf16 %v83
  %v228 = vunpack.c.l.bf16 %v84
  %v229 = vunpack.c.l.bf16 %v85
  %v230 = vunpack.c.l.bf16 %v86
  %v231 = vunpack.c.l.bf16 %v87
  %v232 = vunpack.c.l.bf16 %v88
  %v233 = vunpack.c.l.bf16 %v89
  %v234 = vunpack.c.l.bf16 %v90
  %v235 = vunpack.c.l.bf16 %v91
  %v236 = vunpack.c.l.bf16 %v92
  %v237 = vunpack.c.l.bf16 %v93
  %v238 = vunpack.c.l.bf16 %v94
  %v239 = vunpack.c.l.bf16 %v95
  %v240 = vunpack.c.l.bf16 %v96
  %v241 = vunpack.c.l.bf16 %v97
  %v242 = vunpack.c.l.bf16 %v98
  %v243 = vunpack.c.l.bf16 %v99
  %v244 = vunpack.c.l.bf16 %v100
  %v245 = vunpack.c.l.bf16 %v101
  %v246 = vunpack.c.l.bf16 %v102
  %v247 = vunpack.c.l.bf16 %v103
  %v248 = vunpack.c.l.bf16 %v104
  %v249 = vunpack.c.l.bf16 %v105
  %v250 = vunpack.c.l.bf16 %v106
  %v251 = vunpack.c.l.bf16 %v107
  %v252 = vunpack.c.l.bf16 %v108
  %v253 = vunpack.c.l.bf16 %v109
  %v254 = vunpack.c.l.bf16 %v110
  %v255 = vunpack.c.l.bf16 %v111
  %v256 = vunpack.c.l.bf16 %v112
  %v257 = vunpack.c.l.bf16 %v113
  %v258 = vunpack.c.l.bf16 %v114
  %v259 = vunpack.c.l.bf16 %v115
  %v260 = vunpack.c.l.bf16 %v116
  %v261 = vunpack.c.l.bf16 %v117
  %v262 = vunpack.c.l.bf16 %v118
  %v263 = vunpack.c.l.bf16 %v119
  %v264 = vunpack.c.l.bf16 %v120
  %v265 = vunpack.c.l.bf16 %v121
  %v266 = vunpack.c.l.bf16 %v122
  %v267 = vunpack.c.l.bf16 %v123
  %v268 = vunpack.c.l.bf16 %v124
  %v269 = vunpack.c.l.bf16 %v125
  %v270 = vunpack.c.l.bf16 %v126
  %v271 = vunpack.c.l.bf16 %v127
  %v272 = vunpack.c.l.bf16 %v128
  %v273 = vunpack.c.l.bf16 %v129
  %v274 = vunpack.c.l.bf16 %v130
  %v275 = vunpack.c.l.bf16 %v131
  %v276 = vunpack.c.l.bf16 %v132
  %v277 = vunpack.c.l.bf16 %v133
  %v278 = vunpack.c.l.bf16 %v134
  %v279 = vunpack.c.l.bf16 %v135
  %v280 = vunpack.c.l.bf16 %v136
  %v281 = vunpack.c.l.bf16 %v137
  %v282 = vunpack.c.l.bf16 %v138
  %v283 = vunpack.c.l.bf16 %v139
  %v284 = vunpack.c.l.bf16 %v140
  %v285 = vunpack.c.l.bf16 %v141
  %v286 = vunpack.c.l.bf16 %v142
  %v287 = vunpack.c.l.bf16 %v143
  %v288 = vunpack.c.l.bf16 %v144
  %v289 = vunpack.c.l.bf16 %v145
  %v290 = vunpack.c.l.bf16 %v146
  %v291 = vunpack.c.l.bf16 %v147
  %v292 = vunpack.c.l.bf16 %v148
  %v293 = vunpack.c.l.bf16 %v149
  %v294 = vunpack.c.l.bf16 %v150
  %v295 = vunpack.c.l.bf16 %v151
  %vm296 = vcmask 130048
  %v297 = vsel %vm296, %v152, -inf
  %v298 = vsel %vm296, %v168, -inf
  %v299 = vmax.f32 %v297, %v298
  %v300 = vsel %vm296, %v184, -inf
  %v301 = vmax.f32 %v299, %v300
  %v302 = vsel %vm296, %v200, -inf
  %v303 = vmax.f32 %v301, %v302
  %v304 = vsel %vm296, %v216, -inf
  %v305 = vmax.f32 %v303, %v304
  %v306 = vsel %vm296, %v232, -inf
  %v307 = vmax.f32 %v305, %v306
  %v308 = vsel %vm296, %v248, -inf
  %v309 = vmax.f32 %v307, %v308
  %v310 = vsel %vm296, %v264, -inf
  %v311 = vmax.f32 %v309, %v310
  %v312 = vsel %vm296, %v280, -inf
  %v313 = vmax.f32 %v311, %v312
  %v314 = vsel %vm296, %v153, -inf
  %v315 = vsel %vm296, %v169, -inf
  %v316 = vmax.f32 %v314, %v315
  %v317 = vsel %vm296, %v185, -inf
  %v318 = vmax.f32 %v316, %v317
  %v319 = vsel %vm296, %v201, -inf
  %v320 = vmax.f32 %v318, %v319
  %v321 = vsel %vm296, %v217, -inf
  %v322 = vmax.f32 %v320, %v321
  %v323 = vsel %vm296, %v233, -inf
  %v324 = vmax.f32 %v322, %v323
  %v325 = vsel %vm296, %v249, -inf
  %v326 = vmax.f32 %v324, %v325
  %v327 = vsel %vm296, %v265, -inf
  %v328 = vmax.f32 %v326, %v327
  %v329 = vsel %vm296, %v281, -inf
  %v330 = vmax.f32 %v328, %v329
  %v331 = vsel %vm296, %v154, -inf
  %v332 = vsel %vm296, %v170, -inf
  %v333 = vmax.f32 %v331, %v332
  %v334 = vsel %vm296, %v186, -inf
  %v335 = vmax.f32 %v333, %v334
  %v336 = vsel %vm296, %v202, -inf
  %v337 = vmax.f32 %v335, %v336
  %v338 = vsel %vm296, %v218, -inf
  %v339 = vmax.f32 %v337, %v338
  %v340 = vsel %vm296, %v234, -inf
  %v341 = vmax.f32 %v339, %v340
  %v342 = vsel %vm296, %v250, -inf
  %v343 = vmax.f32 %v341, %v342
  %v344 = vsel %vm296, %v266, -inf
  %v345 = vmax.f32 %v343, %v344
  %v346 = vsel %vm296, %v282, -inf
  %v347 = vmax.f32 %v345, %v346
  %v348 = vsel %vm296, %v155, -inf
  %v349 = vsel %vm296, %v171, -inf
  %v350 = vmax.f32 %v348, %v349
  %v351 = vsel %vm296, %v187, -inf
  %v352 = vmax.f32 %v350, %v351
  %v353 = vsel %vm296, %v203, -inf
  %v354 = vmax.f32 %v352, %v353
  %v355 = vsel %vm296, %v219, -inf
  %v356 = vmax.f32 %v354, %v355
  %v357 = vsel %vm296, %v235, -inf
  %v358 = vmax.f32 %v356, %v357
  %v359 = vsel %vm296, %v251, -inf
  %v360 = vmax.f32 %v358, %v359
  %v361 = vsel %vm296, %v267, -inf
  %v362 = vmax.f32 %v360, %v361
  %v363 = vsel %vm296, %v283, -inf
  %v364 = vmax.f32 %v362, %v363
  %v365 = vsel %vm296, %v156, -inf
  %v366 = vsel %vm296, %v172, -inf
  %v367 = vmax.f32 %v365, %v366
  %v368 = vsel %vm296, %v188, -inf
  %v369 = vmax.f32 %v367, %v368
  %v370 = vsel %vm296, %v204, -inf
  %v371 = vmax.f32 %v369, %v370
  %v372 = vsel %vm296, %v220, -inf
  %v373 = vmax.f32 %v371, %v372
  %v374 = vsel %vm296, %v236, -inf
  %v375 = vmax.f32 %v373, %v374
  %v376 = vsel %vm296, %v252, -inf
  %v377 = vmax.f32 %v375, %v376
  %v378 = vsel %vm296, %v268, -inf
  %v379 = vmax.f32 %v377, %v378
  %v380 = vsel %vm296, %v284, -inf
  %v381 = vmax.f32 %v379, %v380
  %v382 = vsel %vm296, %v157, -inf
  %v383 = vsel %vm296, %v173, -inf
  %v384 = vmax.f32 %v382, %v383
  %v385 = vsel %vm296, %v189, -inf
  %v386 = vmax.f32 %v384, %v385
  %v387 = vsel %vm296, %v205, -inf
  %v388 = vmax.f32 %v386, %v387
  %v389 = vsel %vm296, %v221, -inf
  %v390 = vmax.f32 %v388, %v389
  %v391 = vsel %vm296, %v237, -inf
  %v392 = vmax.f32 %v390, %v391
  %v393 = vsel %vm296, %v253, -inf
  %v394 = vmax.f32 %v392, %v393
  %v395 = vsel %vm296, %v269, -inf
  %v396 = vmax.f32 %v394, %v395
  %v397 = vsel %vm296, %v285, -inf
  %v398 = vmax.f32 %v396, %v397
  %v399 = vsel %vm296, %v158, -inf
  %v400 = vsel %vm296, %v174, -inf
  %v401 = vmax.f32 %v399, %v400
  %v402 = vsel %vm296, %v190, -inf
  %v403 = vmax.f32 %v401, %v402
  %v404 = vsel %vm296, %v206, -inf
  %v405 = vmax.f32 %v403, %v404
  %v406 = vsel %vm296, %v222, -inf
  %v407 = vmax.f32 %v405, %v406
  %v408 = vsel %vm296, %v238, -inf
  %v409 = vmax.f32 %v407, %v408
  %v410 = vsel %vm296, %v254, -inf
  %v411 = vmax.f32 %v409, %v410
  %v412 = vsel %vm296, %v270, -inf
  %v413 = vmax.f32 %v411, %v412
  %v414 = vsel %vm296, %v286, -inf
  %v415 = vmax.f32 %v413, %v414
  %v416 = vsel %vm296, %v159, -inf
  %v417 = vsel %vm296, %v175, -inf
  %v418 = vmax.f32 %v416, %v417
  %v419 = vsel %vm296, %v191, -inf
  %v420 = vmax.f32 %v418, %v419
  %v421 = vsel %vm296, %v207, -inf
  %v422 = vmax.f32 %v420, %v421
  %v423 = vsel %vm296, %v223, -inf
  %v424 = vmax.f32 %v422, %v423
  %v425 = vsel %vm296, %v239, -inf
  %v426 = vmax.f32 %v424, %v425
  %v427 = vsel %vm296, %v255, -inf
  %v428 = vmax.f32 %v426, %v427
  %v429 = vsel %vm296, %v271, -inf
  %v430 = vmax.f32 %v428, %v429
  %v431 = vsel %vm296, %v287, -inf
  %v432 = vmax.f32 %v430, %v431
  %v433 = vsel %vm296, %v160, -inf
  %v434 = vsel %vm296, %v176, -inf
  %v435 = vmax.f32 %v433, %v434
  %v436 = vsel %vm296, %v192, -inf
  %v437 = vmax.f32 %v435, %v436
  %v438 = vsel %vm296, %v208, -inf
  %v439 = vmax.f32 %v437, %v438
  %v440 = vsel %vm296, %v224, -inf
  %v441 = vmax.f32 %v439, %v440
  %v442 = vsel %vm296, %v240, -inf
  %v443 = vmax.f32 %v441, %v442
  %v444 = vsel %vm296, %v256, -inf
  %v445 = vmax.f32 %v443, %v444
  %v446 = vsel %vm296, %v272, -inf
  %v447 = vmax.f32 %v445, %v446
  %v448 = vsel %vm296, %v288, -inf
  %v449 = vmax.f32 %v447, %v448
  %v450 = vsel %vm296, %v161, -inf
  %v451 = vsel %vm296, %v177, -inf
  %v452 = vmax.f32 %v450, %v451
  %v453 = vsel %vm296, %v193, -inf
  %v454 = vmax.f32 %v452, %v453
  %v455 = vsel %vm296, %v209, -inf
  %v456 = vmax.f32 %v454, %v455
  %v457 = vsel %vm296, %v225, -inf
  %v458 = vmax.f32 %v456, %v457
  %v459 = vsel %vm296, %v241, -inf
  %v460 = vmax.f32 %v458, %v459
  %v461 = vsel %vm296, %v257, -inf
  %v462 = vmax.f32 %v460, %v461
  %v463 = vsel %vm296, %v273, -inf
  %v464 = vmax.f32 %v462, %v463
  %v465 = vsel %vm296, %v289, -inf
  %v466 = vmax.f32 %v464, %v465
  %v467 = vsel %vm296, %v162, -inf
  %v468 = vsel %vm296, %v178, -inf
  %v469 = vmax.f32 %v467, %v468
  %v470 = vsel %vm296, %v194, -inf
  %v471 = vmax.f32 %v469, %v470
  %v472 = vsel %vm296, %v210, -inf
  %v473 = vmax.f32 %v471, %v472
  %v474 = vsel %vm296, %v226, -inf
  %v475 = vmax.f32 %v473, %v474
  %v476 = vsel %vm296, %v242, -inf
  %v477 = vmax.f32 %v475, %v476
  %v478 = vsel %vm296, %v258, -inf
  %v479 = vmax.f32 %v477, %v478
  %v480 = vsel %vm296, %v274, -inf
  %v481 = vmax.f32 %v479, %v480
  %v482 = vsel %vm296, %v290, -inf
  %v483 = vmax.f32 %v481, %v482
  %v484 = vsel %vm296, %v163, -inf
  %v485 = vsel %vm296, %v179, -inf
  %v486 = vmax.f32 %v484, %v485
  %v487 = vsel %vm296, %v195, -inf
  %v488 = vmax.f32 %v486, %v487
  %v489 = vsel %vm296, %v211, -inf
  %v490 = vmax.f32 %v488, %v489
  %v491 = vsel %vm296, %v227, -inf
  %v492 = vmax.f32 %v490, %v491
  %v493 = vsel %vm296, %v243, -inf
  %v494 = vmax.f32 %v492, %v493
  %v495 = vsel %vm296, %v259, -inf
  %v496 = vmax.f32 %v494, %v495
  %v497 = vsel %vm296, %v275, -inf
  %v498 = vmax.f32 %v496, %v497
  %v499 = vsel %vm296, %v291, -inf
  %v500 = vmax.f32 %v498, %v499
  %v501 = vsel %vm296, %v164, -inf
  %v502 = vsel %vm296, %v180, -inf
  %v503 = vmax.f32 %v501, %v502
  %v504 = vsel %vm296, %v196, -inf
  %v505 = vmax.f32 %v503, %v504
  %v506 = vsel %vm296, %v212, -inf
  %v507 = vmax.f32 %v505, %v506
  %v508 = vsel %vm296, %v228, -inf
  %v509 = vmax.f32 %v507, %v508
  %v510 = vsel %vm296, %v244, -inf
  %v511 = vmax.f32 %v509, %v510
  %v512 = vsel %vm296, %v260, -inf
  %v513 = vmax.f32 %v511, %v512
  %v514 = vsel %vm296, %v276, -inf
  %v515 = vmax.f32 %v513, %v514
  %v516 = vsel %vm296, %v292, -inf
  %v517 = vmax.f32 %v515, %v516
  %v518 = vsel %vm296, %v165, -inf
  %v519 = vsel %vm296, %v181, -inf
  %v520 = vmax.f32 %v518, %v519
  %v521 = vsel %vm296, %v197, -inf
  %v522 = vmax.f32 %v520, %v521
  %v523 = vsel %vm296, %v213, -inf
  %v524 = vmax.f32 %v522, %v523
  %v525 = vsel %vm296, %v229, -inf
  %v526 = vmax.f32 %v524, %v525
  %v527 = vsel %vm296, %v245, -inf
  %v528 = vmax.f32 %v526, %v527
  %v529 = vsel %vm296, %v261, -inf
  %v530 = vmax.f32 %v528, %v529
  %v531 = vsel %vm296, %v277, -inf
  %v532 = vmax.f32 %v530, %v531
  %v533 = vsel %vm296, %v293, -inf
  %v534 = vmax.f32 %v532, %v533
  %v535 = vsel %vm296, %v166, -inf
  %v536 = vsel %vm296, %v182, -inf
  %v537 = vmax.f32 %v535, %v536
  %v538 = vsel %vm296, %v198, -inf
  %v539 = vmax.f32 %v537, %v538
  %v540 = vsel %vm296, %v214, -inf
  %v541 = vmax.f32 %v539, %v540
  %v542 = vsel %vm296, %v230, -inf
  %v543 = vmax.f32 %v541, %v542
  %v544 = vsel %vm296, %v246, -inf
  %v545 = vmax.f32 %v543, %v544
  %v546 = vsel %vm296, %v262, -inf
  %v547 = vmax.f32 %v545, %v546
  %v548 = vsel %vm296, %v278, -inf
  %v549 = vmax.f32 %v547, %v548
  %v550 = vsel %vm296, %v294, -inf
  %v551 = vmax.f32 %v549, %v550
  %v552 = vsel %vm296, %v167, -inf
  %v553 = vsel %vm296, %v183, -inf
  %v554 = vmax.f32 %v552, %v553
  %v555 = vsel %vm296, %v199, -inf
  %v556 = vmax.f32 %v554, %v555
  %v557 = vsel %vm296, %v215, -inf
  %v558 = vmax.f32 %v556, %v557
  %v559 = vsel %vm296, %v231, -inf
  %v560 = vmax.f32 %v558, %v559
  %v561 = vsel %vm296, %v247, -inf
  %v562 = vmax.f32 %v560, %v561
  %v563 = vsel %vm296, %v263, -inf
  %v564 = vmax.f32 %v562, %v563
  %v565 = vsel %vm296, %v279, -inf
  %v566 = vmax.f32 %v564, %v565
  %v567 = vsel %vm296, %v295, -inf
  %v568 = vmax.f32 %v566, %v567
  %v569 = vpack.c.bf16 %v313, %v313
  %v570 = vpack.c.bf16 %v330, %v330
  %v571 = vpack.c.bf16 %v347, %v347
  %v572 = vpack.c.bf16 %v364, %v364
  %v573 = vpack.c.bf16 %v381, %v381
  %v574 = vpack.c.bf16 %v398, %v398
  %v575 = vpack.c.bf16 %v415, %v415
  %v576 = vpack.c.bf16 %v432, %v432
  %v577 = vpack.c.bf16 %v449, %v449
  %v578 = vpack.c.bf16 %v466, %v466
  %v579 = vpack.c.bf16 %v483, %v483
  %v580 = vpack.c.bf16 %v500, %v500
  %v581 = vpack.c.bf16 %v517, %v517
  %v582 = vpack.c.bf16 %v534, %v534
  %v583 = vpack.c.bf16 %v551, %v551
  %v584 = vpack.c.bf16 %v568, %v568
  %vm585 = vcmask 125952
  %586 = vst.msk [vmem:[%s1] sm:$0xf] %vm585, %v569
  %587 = vst.msk [vmem:[%s1 + $0x4] sm:$0xf] %vm585, %v570
  %588 = vst.msk [vmem:[%s1 + $0x8] sm:$0xf] %vm585, %v571
  %589 = vst.msk [vmem:[%s1 + $0xc] sm:$0xf] %vm585, %v572
  %590 = vst.msk [vmem:[%s1 + $0x10] sm:$0xf] %vm585, %v573
  %591 = vst.msk [vmem:[%s1 + $0x14] sm:$0xf] %vm585, %v574
  %592 = vst.msk [vmem:[%s1 + $0x18] sm:$0xf] %vm585, %v575
  %593 = vst.msk [vmem:[%s1 + $0x1c] sm:$0xf] %vm585, %v576
  %594 = vst.msk [vmem:[%s1 + $0x20] sm:$0xf] %vm585, %v577
  %595 = vst.msk [vmem:[%s1 + $0x24] sm:$0xf] %vm585, %v578
  %596 = vst.msk [vmem:[%s1 + $0x28] sm:$0xf] %vm585, %v579
  %597 = vst.msk [vmem:[%s1 + $0x2c] sm:$0xf] %vm585, %v580
  %598 = vst.msk [vmem:[%s1 + $0x30] sm:$0xf] %vm585, %v581
  %599 = vst.msk [vmem:[%s1 + $0x34] sm:$0xf] %vm585, %v582
  %600 = vst.msk [vmem:[%s1 + $0x38] sm:$0xf] %vm585, %v583
  %601 = vst.msk [vmem:[%s1 + $0x3c] sm:$0xf] %vm585, %v584
  // Predicated region
  $region6: #{resnets_forward.12} parent=0 // pred_check
    _
  $region7: #{resnets_forward.12} parent=0 // pred_check_branch
    %603 = sbr.rel (0) target = $region9
  $region8: #{resnets_forward.12} parent=0 // pred_region
    _
  $region9: #{resnets_forward.12} parent=0 // pred_fallthru
    _
  // Predicated region
  $region10: #{resnets_forward.12} parent=0 // pred_check
    _
  $region11: #{resnets_forward.12} parent=0 // pred_check_branch
    %605 = sbr.rel (0) target = $region13
  $region12: #{resnets_forward.12} parent=0 // pred_region
    _
  $region13: #{resnets_forward.12} parent=0 // pred_fallthru
    _

// kernel: resnets_forward.19
$region0: #{resnets_forward.19}
  #allocation0 [shape = 'u32[]', space=smem, size = 0x4, offset = 0x4, fixed_abs, tag = 'smem constant byte address 0x4 - core index']
  #allocation1 [shape = 'u32[72,128]{1,0:T(1,128)}', space=vmem, size = 0x9000, scoped, tag = 'internal scratch']
  %s0 = inlined_call_operand.vmem [shape: bf16[2,64,16], index: 0, kind: input, shape index: {}]
  %s1 = inlined_call_operand.vmem [shape: f32[16,128], index: 1, kind: input, shape index: {}]
  %s2 = inlined_call_operand.vmem [shape: f32[1,128], index: 2, kind: input, shape index: {}]
  %s3 = inlined_call_operand.hbm [shape: f32[2,1,128], index: 3, kind: output, shape index: {}]
  %s4 = sld [smem:[#allocation0]]
  $region45: #{resnets_forward.19} parent=0
    _
  %s6 = ssub.s32 1, %s4
  %s7 = scalar_select 0, %s6, %s4
  $region1: #{resnets_forward.19} parent=0
    #allocation2 [shape = 'u8[1024]{0}', space=vmem, size = 0x400, scoped, tag = 'output window, operand 0']
    #allocation3 [shape = 's32[2]{0}', space=sflag, size = 0x8, scoped, tag = 'scoped memory for resnets_forward.19']
    %8 = vsyncpa [#allocation3], 0
    %s9 = scalar_lea.sflag [#allocation3], 1
    %10 = vsyncpa %s9, 0
    loop: start=0, step=1, limit=4
    $region2: #{resnets_forward.19} parent=1 // loop_pre_header
      _
    $region3: #{resnets_forward.19} parent=1 // loop_header
      %s12 = sphi 0, %s16
      %p13 = scmp.ge.s32.totalorder %s12, 4
      %s22 = sphi 0, %s24
      %s25 = sphi 0, %s22
      %s26 = sphi 0, %s25
      %s42 = sphi 0, %s26
      %s46 = sphi 0, %s46
      %s48 = sphi 0, %s46
      %s49 = sphi 0, %s48
      %s63 = sphi 0, %s49
      %s67 = sphi 0, %s67
      %s69 = sphi 0, %s67
      %s70 = sphi 0, %s69
      %s84 = sphi 0, %s70
      %s90 = sphi 0, %s92
      %s93 = sphi 0, %s90
      %s94 = sphi 0, %s93
      %s110 = sphi 0, %s94
    $region4: #{resnets_forward.19} parent=1 // loop_header_branch
      %15 = sbr.rel (%p13) target = $region8
    $region5: #{resnets_forward.19} parent=1 // loop_body
      %s17 = ssub.s32 %s12, 1
      %s18 = ssub.s32 %s12, 2
      %s19 = sadd.s32 %s12, 1
      %s20 = ssub.s32 %s12, %s19
      %p21 = scmp.eq.s32.totalorder %s20, 0
      %s23 = sadd.s32 %s22, 1
      %s24 = scalar_select %p21, %s22, %s23
      %p27 = pneg %p21
      %p28 = scmp.eq.s32.totalorder %s12, 1
      %p29 = por %p27, %p28
      %p30 = scmp.ne.s32.totalorder %s22, %s25
      %p31 = scmp.eq.s32.totalorder %s12, 0
      %p32 = por %p30, %p31
      %p33 = scmp.ne.s32.totalorder %s22, %s25
      %p34 = scmp.eq.s32.totalorder %s17, 1
      %p35 = por %p33, %p34
      %p36 = scmp.ne.s32.totalorder %s25, %s26
      %p37 = scmp.eq.s32.totalorder %s17, 0
      %p38 = por %p36, %p37
      %p39 = scmp.ne.s32.totalorder %s25, %s26
      %p40 = scmp.eq.s32.totalorder %s18, 1
      %p41 = por %p39, %p40
      %p43 = scmp.ne.s32.totalorder %s26, %s42
      %p44 = scmp.eq.s32.totalorder %s18, 0
      %p45 = por %p43, %p44
      %s47 = sadd.s32 %s46, 1
      %p50 = scmp.eq.s32.totalorder %s12, 1
      %p51 = scmp.ne.s32.totalorder %s46, %s48
      %p52 = scmp.eq.s32.totalorder %s12, 0
      %p53 = por %p51, %p52
      %p54 = scmp.ne.s32.totalorder %s46, %s48
      %p55 = scmp.eq.s32.totalorder %s17, 1
      %p56 = por %p54, %p55
      %p57 = scmp.ne.s32.totalorder %s48, %s49
      %p58 = scmp.eq.s32.totalorder %s17, 0
      %p59 = por %p57, %p58
      %p60 = scmp.ne.s32.totalorder %s48, %s49
      %p61 = scmp.eq.s32.totalorder %s18, 1
      %p62 = por %p60, %p61
      %p64 = scmp.ne.s32.totalorder %s49, %s63
      %p65 = scmp.eq.s32.totalorder %s18, 0
      %p66 = por %p64, %p65
      %s68 = sadd.s32 %s67, 1
      %p71 = scmp.eq.s32.totalorder %s12, 1
      %p72 = scmp.ne.s32.totalorder %s67, %s69
      %p73 = scmp.eq.s32.totalorder %s12, 0
      %p74 = por %p72, %p73
      %p75 = scmp.ne.s32.totalorder %s67, %s69
      %p76 = scmp.eq.s32.totalorder %s17, 1
      %p77 = por %p75, %p76
      %p78 = scmp.ne.s32.totalorder %s69, %s70
      %p79 = scmp.eq.s32.totalorder %s17, 0
      %p80 = por %p78, %p79
      %p81 = scmp.ne.s32.totalorder %s69, %s70
      %p82 = scmp.eq.s32.totalorder %s18, 1
      %p83 = por %p81, %p82
      %p85 = scmp.ne.s32.totalorder %s70, %s84
      %p86 = scmp.eq.s32.totalorder %s18, 0
      %p87 = por %p85, %p86
      %s88 = ssub.s32 %s12, %s19
      %p89 = scmp.eq.s32.totalorder %s88, 0
      %s91 = sadd.s32 %s90, 1
      %s92 = scalar_select %p89, %s90, %s91
      %p95 = pneg %p89
      %p96 = scmp.eq.s32.totalorder %s12, 1
      %p97 = por %p95, %p96
      %p98 = scmp.ne.s32.totalorder %s90, %s93
      %p99 = scmp.eq.s32.totalorder %s12, 0
      %p100 = por %p98, %p99
      %p101 = scmp.ne.s32.totalorder %s90, %s93
      %p102 = scmp.eq.s32.totalorder %s17, 1
      %p103 = por %p101, %p102
      %p104 = scmp.ne.s32.totalorder %s93, %s94
      %p105 = scmp.eq.s32.totalorder %s17, 0
      %p106 = por %p104, %p105
      %p107 = scmp.ne.s32.totalorder %s93, %s94
      %p108 = scmp.eq.s32.totalorder %s18, 1
      %p109 = por %p107, %p108
      %p111 = scmp.ne.s32.totalorder %s94, %s110
      %p112 = scmp.eq.s32.totalorder %s18, 0
      %p113 = por %p111, %p112
      %p114 = scmp.le.s32.totalorder 1, %s12
      %p115 = scmp.lt.s32.totalorder %s12, 3
      %p116 = pnand %p114, %p115
      %p117 = pneg %p116
      // Predicated region
      $region9: #{resnets_forward.19} parent=5 // pred_check
        _
      $region10: #{resnets_forward.19} parent=5 // pred_check_branch
        %119 = sbr.rel (%p116) target = $region12
      $region11: #{resnets_forward.19} parent=5 // pred_region
        %s120 = ssub.s32 %s12, 1
        // Predicated region
        $region13: #{resnets_forward.19} parent=11 // pred_check
          %p121 = pneg %p59
        $region14: #{resnets_forward.19} parent=11 // pred_check_branch
          %123 = sbr.rel (%p121) target = $region16
        $region15: #{resnets_forward.19} parent=11 // pred_region
          _
        $region16: #{resnets_forward.19} parent=11 // pred_fallthru
          _
        // Predicated region
        $region17: #{resnets_forward.19} parent=11 // pred_check
          %p124 = pneg %p80
        $region18: #{resnets_forward.19} parent=11 // pred_check_branch
          %126 = sbr.rel (%p124) target = $region20
        $region19: #{resnets_forward.19} parent=11 // pred_region
          _
        $region20: #{resnets_forward.19} parent=11 // pred_fallthru
          _
      $region12: #{resnets_forward.19} parent=5 // pred_fallthru
        _
      %p127 = scmp.lt.s32.totalorder %s12, 2
      // Predicated region
      $region21: #{resnets_forward.19} parent=5 // pred_check
        %p128 = pneg %p127
      $region22: #{resnets_forward.19} parent=5 // pred_check_branch
        %130 = sbr.rel (%p128) target = $region24
      $region23: #{resnets_forward.19} parent=5 // pred_region
        // Predicated region
        $region25: #{resnets_forward.19} parent=23 // pred_check
          %p131 = pneg %p32
        $region26: #{resnets_forward.19} parent=23 // pred_check_branch
          %133 = sbr.rel (%p131) target = $region28
        $region27: #{resnets_forward.19} parent=23 // pred_region
          %p134 = scmp.lt.s32.totalorder %s12, 1
          %s135 = scalar_select %p134, %s12, 1
          %s136 = smul.addr %s135, 8
          %s137 = smul.addr %s136, 4
          %s138 = scalar_lea.vmem %s0, %s137
        $region28: #{resnets_forward.19} parent=23 // pred_fallthru
          _
      $region24: #{resnets_forward.19} parent=5 // pred_fallthru
        _
      %p139 = scmp.le.s32.totalorder 1, %s12
      %p140 = scmp.lt.s32.totalorder %s12, 3
      %p141 = pnand %p139, %p140
      %p142 = pneg %p141
      // Predicated region
      $region29: #{resnets_forward.19} parent=5 // pred_check
        _
      $region30: #{resnets_forward.19} parent=5 // pred_check_branch
        %144 = sbr.rel (%p141) target = $region32
      $region31: #{resnets_forward.19} parent=5 // pred_region
        %s145 = ssub.s32 %s12, 1
        %p146 = scmp.lt.s32.totalorder %s17, 1
        %s147 = scalar_select %p146, %s17, 1
        %s148 = smul.addr %s147, 8
        %s149 = smul.addr %s148, 4
        %s150 = scalar_lea.vmem %s0, %s149
        %p151 = pneg %p38
        %p152 = pneg %p35
        %p153 = pneg %p59
        %p154 = pneg %p56
        %p155 = pneg %p80
        %p156 = pneg %p77
        %p157 = pneg %p106
        %p158 = pneg %p103
        %s159 = sand.u32 %s93, 1
        %s160 = scalar_lea.sflag [#allocation3], %s159
        %s161 = sand.u32 %s93, 1
        %s162 = scalar_lea.vmem [#allocation2], %s161
        %p163 = scmp.lt.s32.totalorder %s17, 1
        %s164 = scalar_select %p163, %s17, 1
        %s165 = smul.addr %s164, 8
        %s166 = smul.addr %s165, 4
        %s167 = scalar_lea.vmem %s0, %s166
        %v168 = vld [vmem:[%s167] sm:$0xf]
        %v169 = vld [vmem:[%s167 + $0x4] sm:$0xf]
        %v170 = vld [vmem:[%s167 + $0x8] sm:$0xf]
        %v171 = vld [vmem:[%s167 + $0xc] sm:$0xf]
        %v172 = vld [vmem:[%s167 + $0x10] sm:$0xf]
        %v173 = vld [vmem:[%s167 + $0x14] sm:$0xf]
        %v174 = vld [vmem:[%s167 + $0x18] sm:$0xf]
        %v175 = vld [vmem:[%s167 + $0x1c] sm:$0xf]
        %v176 = vunpack.c.l.bf16 %v168
        %v177 = vunpack.c.l.bf16 %v169
        %v178 = vunpack.c.l.bf16 %v170
        %v179 = vunpack.c.l.bf16 %v171
        %v180 = vunpack.c.l.bf16 %v172
        %v181 = vunpack.c.l.bf16 %v173
        %v182 = vunpack.c.l.bf16 %v174
        %v183 = vunpack.c.l.bf16 %v175
        %vm184 = vcmask 130048
        %v185 = vsel %vm184, %v176, 0.0
        %v186 = vsel %vm184, %v177, 0.0
        %v187 = vadd.f32 %v185, %v186
        %v188 = vsel %vm184, %v178, 0.0
        %v189 = vadd.f32 %v187, %v188
        %v190 = vsel %vm184, %v179, 0.0
        %v191 = vadd.f32 %v189, %v190
        %v192 = vsel %vm184, %v180, 0.0
        %v193 = vadd.f32 %v191, %v192
        %v194 = vsel %vm184, %v181, 0.0
        %v195 = vadd.f32 %v193, %v194
        %v196 = vsel %vm184, %v182, 0.0
        %v197 = vadd.f32 %v195, %v196
        %v198 = vsel %vm184, %v183, 0.0
        %v199 = vadd.f32 %v197, %v198
        %v200 = vrot.slane %v199, 4
        %v201 = vadd.f32 %v199, %v200
        %v202 = vrot.slane %v201, 2
        %v203 = vadd.f32 %v201, %v202
        %v204 = vrot.slane %v203, 1
        %v205 = vadd.f32 %v203, %v204
        %v206 = vrcp.pop 64.0
        %v207 = vmul.f32 64.0, %v206
        %v208 = vsub.f32 1.0, %v207
        %v209 = vmul.f32 %v206, %v208
        %v210 = vadd.f32 %v206, %v209
        %vm211 = vweird.f32 %v206
        %v212 = vsel %vm211, %v206, %v210
        %v213 = vmul.f32 %v205, %v212
        %v214 = vld [vmem:[%s1] sm:$0xff]
        %v215 = vld [vmem:[%s1 + $0x8] sm:$0xff]
        %v216 = vld [vmem:[%s2] sm:$0x1]
        %v218 = vsel %vm184, %v213, 0
        %220 = vmatpush.msra.mxu0 0.0
        %221 = vmatpush.msra.mxu0 0.0
        %222 = vmatpush.msra.mxu0 0.0
        %223 = vmatpush.msra.mxu0 0.0
        %224 = vmatpush.msra.mxu0 0.0
        %225 = vmatpush.msra.mxu0 0.0
        %226 = vmatpush.msra.mxu0 0.0
        %227 = vmatpush.msra.mxu0 0.0
        %228 = vmatpush.msra.mxu0 0.0
        %229 = vmatpush.msra.mxu0 0.0
        %230 = vmatpush.msra.mxu0 0.0
        %231 = vmatpush.msra.mxu0 0.0
        %232 = vmatpush.msra.mxu0 0.0
        %233 = vmatpush.msra.mxu0 0.0
        %234 = vmatpush.msra.mxu0 %v215
        %235 = vmatpush.msra.mxu0 %v214
        %236 = vmatmul.f32.gmra.mxu0 %v218
        %v237 = vpop.f32.mrf.mxu0
        %v238 = vadd.f32 %v216, %v237
        %239 = vdwg.mxu0
        %240 = vst [vmem:[%s162] sm:$0x1] %v238
        %s241 = sand.u32 %s93, 1
        %s242 = scalar_lea.sflag [#allocation3], %s241
        %s243 = sand.u32 %s93, 1
        %s244 = scalar_lea.vmem [#allocation2], %s243
        // Predicated region
        $region33: #{resnets_forward.19} parent=31 // pred_check
          %p245 = pneg %p103
        $region34: #{resnets_forward.19} parent=31 // pred_check_branch
          %247 = sbr.rel (%p245) target = $region36
        $region35: #{resnets_forward.19} parent=31 // pred_region
          %249 = vsyncadd %s242, 0
          %s250 = scalar_lea.hbm %s3, %s17
          %s252 = sshll.u32 %s244, 4
          %s253 = int_to_ptr.vmem [resolvable:$true] %s252
          %s254 = sshll.u32 %s250, 4
          %s255 = int_to_ptr.hbm [resolvable:$true] %s254
          %257 = dma.vmem_to_hbm [thread:$0]  %s253, 16, %s255, %s242
        $region36: #{resnets_forward.19} parent=31 // pred_fallthru
          _
      $region32: #{resnets_forward.19} parent=5 // pred_fallthru
        _
      %p258 = scmp.le.s32.totalorder 2, %s12
      // Predicated region
      $region37: #{resnets_forward.19} parent=5 // pred_check
        %p259 = pneg %p258
      $region38: #{resnets_forward.19} parent=5 // pred_check_branch
        %261 = sbr.rel (%p259) target = $region40
      $region39: #{resnets_forward.19} parent=5 // pred_region
        %s262 = ssub.s32 %s12, 2
        // Predicated region
        $region41: #{resnets_forward.19} parent=39 // pred_check
          %p263 = pneg %p109
        $region42: #{resnets_forward.19} parent=39 // pred_check_branch
          %265 = sbr.rel (%p263) target = $region44
        $region43: #{resnets_forward.19} parent=39 // pred_region
          %s266 = sand.u32 %s94, 1
          %s267 = scalar_lea.sflag [#allocation3], %s266
          %s268 = sand.u32 %s94, 1
          %s269 = scalar_lea.vmem [#allocation2], %s268
          %271 = dma.done %s267, 16
        $region44: #{resnets_forward.19} parent=39 // pred_fallthru
          _
      $region40: #{resnets_forward.19} parent=5 // pred_fallthru
        _
    $region6: #{resnets_forward.19} parent=1 // loop_footer
      %s16 = sadd.s32 1, %s12
    $region7: #{resnets_forward.19} parent=1 // loop_footer_branch
      %11 = sbr.rel target = $region3
    $region8: #{resnets_forward.19} parent=1 // loop_exit
      _
    %272 = vsyncpa [#allocation3], 1
    %s273 = scalar_lea.sflag [#allocation3], 1
    %274 = vsyncpa %s273, 1

// kernel: resnets_forward.15
$region0: #{resnets_forward.15}
  #allocation0 [shape = 'u32[]', space=smem, size = 0x4, offset = 0x4, fixed_abs, tag = 'smem constant byte address 0x4 - core index']
  #allocation1 [shape = 'u32[72,128]{1,0:T(1,128)}', space=vmem, size = 0x9000, scoped, tag = 'internal scratch']
  #allocation2 [shape = 'f32[128,128]{1,0:T(8,128)}', space=vmem, size = 0x10000, scoped, tag = 'scratch operand']
  %s0 = inlined_call_operand.vmem [shape: bf16[128,128], index: 0, kind: input, shape index: {}]
  %s1 = inlined_call_operand.vmem [shape: bf16[128,128], index: 1, kind: input, shape index: {}]
  %s2 = inlined_call_operand.vmem [shape: f32[1,128], index: 2, kind: input, shape index: {}]
  %s3 = inlined_call_operand.vmem [shape: f32[1,128], index: 3, kind: input, shape index: {}]
  %s4 = inlined_call_operand.vmem [shape: bf16[128,128], index: 4, kind: input, shape index: {}]
  %s5 = inlined_call_operand.vmem [shape: bf16[128,128], index: 5, kind: output, shape index: {}]
  %s6 = sld [smem:[#allocation0]]
  $region38: #{resnets_forward.15} parent=0
    _
  %s8 = ssub.s32 1, %s6
  %s9 = scalar_select 0, %s8, %s6
  // Predicated region
  $region2: #{resnets_forward.15} parent=0 // pred_check
    _
  $region3: #{resnets_forward.15} parent=0 // pred_check_branch
    %11 = sbr.rel (0) target = $region5
  $region4: #{resnets_forward.15} parent=0 // pred_region
    _
  $region5: #{resnets_forward.15} parent=0 // pred_fallthru
    _
  // Predicated region
  $region6: #{resnets_forward.15} parent=0 // pred_check
    _
  $region7: #{resnets_forward.15} parent=0 // pred_check_branch
    %13 = sbr.rel (0) target = $region9
  $region8: #{resnets_forward.15} parent=0 // pred_region
    _
  $region9: #{resnets_forward.15} parent=0 // pred_fallthru
    _
  // Predicated region
  $region10: #{resnets_forward.15} parent=0 // pred_check
    _
  $region11: #{resnets_forward.15} parent=0 // pred_check_branch
    %15 = sbr.rel (0) target = $region13
  $region12: #{resnets_forward.15} parent=0 // pred_region
    _
  $region13: #{resnets_forward.15} parent=0 // pred_fallthru
    _
  // Predicated region
  $region14: #{resnets_forward.15} parent=0 // pred_check
    _
  $region15: #{resnets_forward.15} parent=0 // pred_check_branch
    %17 = sbr.rel (0) target = $region17
  $region16: #{resnets_forward.15} parent=0 // pred_region
    _
  $region17: #{resnets_forward.15} parent=0 // pred_fallthru
    _
  // Predicated region
  $region18: #{resnets_forward.15} parent=0 // pred_check
    _
  $region19: #{resnets_forward.15} parent=0 // pred_check_branch
    %19 = sbr.rel (0) target = $region21
  $region20: #{resnets_forward.15} parent=0 // pred_region
    _
  $region21: #{resnets_forward.15} parent=0 // pred_fallthru
    _
  %p20 = scmp.eq.s32.totalorder 0, 0
  // Predicated region
  $region22: #{resnets_forward.15} parent=0 // pred_check
    %p21 = pneg %p20
  $region23: #{resnets_forward.15} parent=0 // pred_check_branch
    %23 = sbr.rel (%p21) target = $region25
  $region24: #{resnets_forward.15} parent=0 // pred_region
    %24 = vst [vmem:[#allocation2] sm:$0xff] 0.0
    %25 = vst [vmem:[#allocation2 + $0x8] sm:$0xff] 0.0
    %26 = vst [vmem:[#allocation2 + $0x10] sm:$0xff] 0.0
    %27 = vst [vmem:[#allocation2 + $0x18] sm:$0xff] 0.0
    %28 = vst [vmem:[#allocation2 + $0x20] sm:$0xff] 0.0
    %29 = vst [vmem:[#allocation2 + $0x28] sm:$0xff] 0.0
    %30 = vst [vmem:[#allocation2 + $0x30] sm:$0xff] 0.0
    %31 = vst [vmem:[#allocation2 + $0x38] sm:$0xff] 0.0
    %32 = vst [vmem:[#allocation2 + $0x40] sm:$0xff] 0.0
    %33 = vst [vmem:[#allocation2 + $0x48] sm:$0xff] 0.0
    %34 = vst [vmem:[#allocation2 + $0x50] sm:$0xff] 0.0
    %35 = vst [vmem:[#allocation2 + $0x58] sm:$0xff] 0.0
    %36 = vst [vmem:[#allocation2 + $0x60] sm:$0xff] 0.0
    %37 = vst [vmem:[#allocation2 + $0x68] sm:$0xff] 0.0
    %38 = vst [vmem:[#allocation2 + $0x70] sm:$0xff] 0.0
    %39 = vst [vmem:[#allocation2 + $0x78] sm:$0xff] 0.0
  $region25: #{resnets_forward.15} parent=0 // pred_fallthru
    _
  %v40 = vld [vmem:[#allocation2] sm:$0xff]
  %v41 = vld [vmem:[#allocation2 + $0x8] sm:$0xff]
  %v42 = vld [vmem:[#allocation2 + $0x10] sm:$0xff]
  %v43 = vld [vmem:[#allocation2 + $0x18] sm:$0xff]
  %v44 = vld [vmem:[#allocation2 + $0x20] sm:$0xff]
  %v45 = vld [vmem:[#allocation2 + $0x28] sm:$0xff]
  %v46 = vld [vmem:[#allocation2 + $0x30] sm:$0xff]
  %v47 = vld [vmem:[#allocation2 + $0x38] sm:$0xff]
  %v48 = vld [vmem:[#allocation2 + $0x40] sm:$0xff]
  %v49 = vld [vmem:[#allocation2 + $0x48] sm:$0xff]
  %v50 = vld [vmem:[#allocation2 + $0x50] sm:$0xff]
  %v51 = vld [vmem:[#allocation2 + $0x58] sm:$0xff]
  %v52 = vld [vmem:[#allocation2 + $0x60] sm:$0xff]
  %v53 = vld [vmem:[#allocation2 + $0x68] sm:$0xff]
  %v54 = vld [vmem:[#allocation2 + $0x70] sm:$0xff]
  %v55 = vld [vmem:[#allocation2 + $0x78] sm:$0xff]
  %v56 = vld [vmem:[%s0] sm:$0xf]
  %v57 = vld [vmem:[%s0 + $0x4] sm:$0xf]
  %v58 = vld [vmem:[%s0 + $0x8] sm:$0xf]
  %v59 = vld [vmem:[%s0 + $0xc] sm:$0xf]
  %v60 = vld [vmem:[%s0 + $0x10] sm:$0xf]
  %v61 = vld [vmem:[%s0 + $0x14] sm:$0xf]
  %v62 = vld [vmem:[%s0 + $0x18] sm:$0xf]
  %v63 = vld [vmem:[%s0 + $0x1c] sm:$0xf]
  %v64 = vld [vmem:[%s0 + $0x20] sm:$0xf]
  %v65 = vld [vmem:[%s0 + $0x24] sm:$0xf]
  %v66 = vld [vmem:[%s0 + $0x28] sm:$0xf]
  %v67 = vld [vmem:[%s0 + $0x2c] sm:$0xf]
  %v68 = vld [vmem:[%s0 + $0x30] sm:$0xf]
  %v69 = vld [vmem:[%s0 + $0x34] sm:$0xf]
  %v70 = vld [vmem:[%s0 + $0x38] sm:$0xf]
  %v71 = vld [vmem:[%s0 + $0x3c] sm:$0xf]
  %v72 = vld [vmem:[%s1] sm:$0xf]
  %v73 = vld [vmem:[%s1 + $0x4] sm:$0xf]
  %v74 = vld [vmem:[%s1 + $0x8] sm:$0xf]
  %v75 = vld [vmem:[%s1 + $0xc] sm:$0xf]
  %v76 = vld [vmem:[%s1 + $0x10] sm:$0xf]
  %v77 = vld [vmem:[%s1 + $0x14] sm:$0xf]
  %v78 = vld [vmem:[%s1 + $0x18] sm:$0xf]
  %v79 = vld [vmem:[%s1 + $0x1c] sm:$0xf]
  %v80 = vld [vmem:[%s1 + $0x20] sm:$0xf]
  %v81 = vld [vmem:[%s1 + $0x24] sm:$0xf]
  %v82 = vld [vmem:[%s1 + $0x28] sm:$0xf]
  %v83 = vld [vmem:[%s1 + $0x2c] sm:$0xf]
  %v84 = vld [vmem:[%s1 + $0x30] sm:$0xf]
  %v85 = vld [vmem:[%s1 + $0x34] sm:$0xf]
  %v86 = vld [vmem:[%s1 + $0x38] sm:$0xf]
  %v87 = vld [vmem:[%s1 + $0x3c] sm:$0xf]
  %v104 = vunpack.c.l.b16 %v56
  %v105 = vunpack.c.l.b16 %v57
  %v106 = vunpack.c.l.b16 %v58
  %v107 = vunpack.c.l.b16 %v59
  %v108 = vunpack.c.l.b16 %v60
  %v109 = vunpack.c.l.b16 %v61
  %v110 = vunpack.c.l.b16 %v62
  %v111 = vunpack.c.l.b16 %v63
  %v112 = vunpack.c.l.b16 %v64
  %v113 = vunpack.c.l.b16 %v65
  %v114 = vunpack.c.l.b16 %v66
  %v115 = vunpack.c.l.b16 %v67
  %v116 = vunpack.c.l.b16 %v68
  %v117 = vunpack.c.l.b16 %v69
  %v118 = vunpack.c.l.b16 %v70
  %v119 = vunpack.c.l.b16 %v71
  %v120 = vpack.c.b16 %v105, %v104
  %v121 = vpack.c.b16 %v107, %v106
  %v122 = vpack.c.b16 %v109, %v108
  %v123 = vpack.c.b16 %v111, %v110
  %v124 = vpack.c.b16 %v113, %v112
  %v125 = vpack.c.b16 %v115, %v114
  %v126 = vpack.c.b16 %v117, %v116
  %v127 = vpack.c.b16 %v119, %v118
  %v152 = vunpack.c.l.b16 %v72
  %v153 = vunpack.c.l.b16 %v73
  %v154 = vunpack.c.l.b16 %v74
  %v155 = vunpack.c.l.b16 %v75
  %v156 = vunpack.c.l.b16 %v76
  %v157 = vunpack.c.l.b16 %v77
  %v158 = vunpack.c.l.b16 %v78
  %v159 = vunpack.c.l.b16 %v79
  %v160 = vunpack.c.l.b16 %v80
  %v161 = vunpack.c.l.b16 %v81
  %v162 = vunpack.c.l.b16 %v82
  %v163 = vunpack.c.l.b16 %v83
  %v164 = vunpack.c.l.b16 %v84
  %v165 = vunpack.c.l.b16 %v85
  %v166 = vunpack.c.l.b16 %v86
  %v167 = vunpack.c.l.b16 %v87
  %v168 = vpack.c.b16 %v153, %v152
  %v169 = vpack.c.b16 %v155, %v154
  %v170 = vpack.c.b16 %v157, %v156
  %v171 = vpack.c.b16 %v159, %v158
  %v172 = vpack.c.b16 %v161, %v160
  %v173 = vpack.c.b16 %v163, %v162
  %v174 = vpack.c.b16 %v165, %v164
  %v175 = vpack.c.b16 %v167, %v166
  %184 = vmatpush.bf16.msra.mxu0 %v175
  %185 = vmatpush.bf16.msra.mxu0 %v174
  %186 = vmatpush.bf16.msra.mxu0 %v173
  %187 = vmatpush.bf16.msra.mxu0 %v172
  %188 = vmatpush.bf16.msra.mxu0 %v171
  %189 = vmatpush.bf16.msra.mxu0 %v170
  %190 = vmatpush.bf16.msra.mxu0 %v169
  %191 = vmatpush.bf16.msra.mxu0 %v168
  %192 = vmatmul.bf16.gmra.mxu0 %v120
  %v193 = vpop.f32.mrf.mxu0
  %v194 = vadd.f32 0.0, %v193
  %v195 = vpop.f32.mrf.mxu0
  %v196 = vadd.f32 0.0, %v195
  %197 = vmatmul.bf16.gmra.mxu0 %v121
  %v198 = vpop.f32.mrf.mxu0
  %v199 = vadd.f32 0.0, %v198
  %v200 = vpop.f32.mrf.mxu0
  %v201 = vadd.f32 0.0, %v200
  %202 = vmatmul.bf16.gmra.mxu0 %v122
  %v203 = vpop.f32.mrf.mxu0
  %v204 = vadd.f32 0.0, %v203
  %v205 = vpop.f32.mrf.mxu0
  %v206 = vadd.f32 0.0, %v205
  %207 = vmatmul.bf16.gmra.mxu0 %v123
  %v208 = vpop.f32.mrf.mxu0
  %v209 = vadd.f32 0.0, %v208
  %v210 = vpop.f32.mrf.mxu0
  %v211 = vadd.f32 0.0, %v210
  %212 = vmatmul.bf16.gmra.mxu0 %v124
  %v213 = vpop.f32.mrf.mxu0
  %v214 = vadd.f32 0.0, %v213
  %v215 = vpop.f32.mrf.mxu0
  %v216 = vadd.f32 0.0, %v215
  %217 = vmatmul.bf16.gmra.mxu0 %v125
  %v218 = vpop.f32.mrf.mxu0
  %v219 = vadd.f32 0.0, %v218
  %v220 = vpop.f32.mrf.mxu0
  %v221 = vadd.f32 0.0, %v220
  %222 = vmatmul.bf16.gmra.mxu0 %v126
  %v223 = vpop.f32.mrf.mxu0
  %v224 = vadd.f32 0.0, %v223
  %v225 = vpop.f32.mrf.mxu0
  %v226 = vadd.f32 0.0, %v225
  %227 = vmatmul.bf16.gmra.mxu0 %v127
  %v228 = vpop.f32.mrf.mxu0
  %v229 = vadd.f32 0.0, %v228
  %v230 = vpop.f32.mrf.mxu0
  %v231 = vadd.f32 0.0, %v230
  %232 = vdwg.mxu0
  %v233 = vadd.f32 %v40, %v194
  %v234 = vadd.f32 %v41, %v196
  %v235 = vadd.f32 %v42, %v199
  %v236 = vadd.f32 %v43, %v201
  %v237 = vadd.f32 %v44, %v204
  %v238 = vadd.f32 %v45, %v206
  %v239 = vadd.f32 %v46, %v209
  %v240 = vadd.f32 %v47, %v211
  %v241 = vadd.f32 %v48, %v214
  %v242 = vadd.f32 %v49, %v216
  %v243 = vadd.f32 %v50, %v219
  %v244 = vadd.f32 %v51, %v221
  %v245 = vadd.f32 %v52, %v224
  %v246 = vadd.f32 %v53, %v226
  %v247 = vadd.f32 %v54, %v229
  %v248 = vadd.f32 %v55, %v231
  %249 = vst [vmem:[#allocation2] sm:$0xff] %v233
  %250 = vst [vmem:[#allocation2 + $0x8] sm:$0xff] %v234
  %251 = vst [vmem:[#allocation2 + $0x10] sm:$0xff] %v235
  %252 = vst [vmem:[#allocation2 + $0x18] sm:$0xff] %v236
  %253 = vst [vmem:[#allocation2 + $0x20] sm:$0xff] %v237
  %254 = vst [vmem:[#allocation2 + $0x28] sm:$0xff] %v238
  %255 = vst [vmem:[#allocation2 + $0x30] sm:$0xff] %v239
  %256 = vst [vmem:[#allocation2 + $0x38] sm:$0xff] %v240
  %257 = vst [vmem:[#allocation2 + $0x40] sm:$0xff] %v241
  %258 = vst [vmem:[#allocation2 + $0x48] sm:$0xff] %v242
  %259 = vst [vmem:[#allocation2 + $0x50] sm:$0xff] %v243
  %260 = vst [vmem:[#allocation2 + $0x58] sm:$0xff] %v244
  %261 = vst [vmem:[#allocation2 + $0x60] sm:$0xff] %v245
  %262 = vst [vmem:[#allocation2 + $0x68] sm:$0xff] %v246
  %263 = vst [vmem:[#allocation2 + $0x70] sm:$0xff] %v247
  %264 = vst [vmem:[#allocation2 + $0x78] sm:$0xff] %v248
  // Predicated region
  $region26: #{resnets_forward.15} parent=0 // pred_check
    %p265 = pneg %p20
  $region27: #{resnets_forward.15} parent=0 // pred_check_branch
    %267 = sbr.rel (%p265) target = $region29
  $region28: #{resnets_forward.15} parent=0 // pred_region
    %v268 = vld [vmem:[#allocation2] sm:$0xff]
    %v269 = vld [vmem:[#allocation2 + $0x8] sm:$0xff]
    %v270 = vld [vmem:[#allocation2 + $0x10] sm:$0xff]
    %v271 = vld [vmem:[#allocation2 + $0x18] sm:$0xff]
    %v272 = vld [vmem:[#allocation2 + $0x20] sm:$0xff]
    %v273 = vld [vmem:[#allocation2 + $0x28] sm:$0xff]
    %v274 = vld [vmem:[#allocation2 + $0x30] sm:$0xff]
    %v275 = vld [vmem:[#allocation2 + $0x38] sm:$0xff]
    %v276 = vld [vmem:[#allocation2 + $0x40] sm:$0xff]
    %v277 = vld [vmem:[#allocation2 + $0x48] sm:$0xff]
    %v278 = vld [vmem:[#allocation2 + $0x50] sm:$0xff]
    %v279 = vld [vmem:[#allocation2 + $0x58] sm:$0xff]
    %v280 = vld [vmem:[#allocation2 + $0x60] sm:$0xff]
    %v281 = vld [vmem:[#allocation2 + $0x68] sm:$0xff]
    %v282 = vld [vmem:[#allocation2 + $0x70] sm:$0xff]
    %v283 = vld [vmem:[#allocation2 + $0x78] sm:$0xff]
    %v284 = vld [vmem:[%s2] sm:$0x1]
    %v286 = vperm.slane %v284, 0
    %v288 = vmul.f32 %v268, %v286
    %v289 = vmul.f32 %v269, %v286
    %v290 = vmul.f32 %v270, %v286
    %v291 = vmul.f32 %v271, %v286
    %v292 = vmul.f32 %v272, %v286
    %v293 = vmul.f32 %v273, %v286
    %v294 = vmul.f32 %v274, %v286
    %v295 = vmul.f32 %v275, %v286
    %v296 = vmul.f32 %v276, %v286
    %v297 = vmul.f32 %v277, %v286
    %v298 = vmul.f32 %v278, %v286
    %v299 = vmul.f32 %v279, %v286
    %v300 = vmul.f32 %v280, %v286
    %v301 = vmul.f32 %v281, %v286
    %v302 = vmul.f32 %v282, %v286
    %v303 = vmul.f32 %v283, %v286
    %v304 = vld [vmem:[%s3] sm:$0x1]
    %v306 = vperm.slane %v304, 0
    %v308 = vadd.f32 %v288, %v306
    %v309 = vadd.f32 %v289, %v306
    %v310 = vadd.f32 %v290, %v306
    %v311 = vadd.f32 %v291, %v306
    %v312 = vadd.f32 %v292, %v306
    %v313 = vadd.f32 %v293, %v306
    %v314 = vadd.f32 %v294, %v306
    %v315 = vadd.f32 %v295, %v306
    %v316 = vadd.f32 %v296, %v306
    %v317 = vadd.f32 %v297, %v306
    %v318 = vadd.f32 %v298, %v306
    %v319 = vadd.f32 %v299, %v306
    %v320 = vadd.f32 %v300, %v306
    %v321 = vadd.f32 %v301, %v306
    %v322 = vadd.f32 %v302, %v306
    %v323 = vadd.f32 %v303, %v306
    %v324 = vld [vmem:[%s4] sm:$0xf]
    %v325 = vld [vmem:[%s4 + $0x4] sm:$0xf]
    %v326 = vld [vmem:[%s4 + $0x8] sm:$0xf]
    %v327 = vld [vmem:[%s4 + $0xc] sm:$0xf]
    %v328 = vld [vmem:[%s4 + $0x10] sm:$0xf]
    %v329 = vld [vmem:[%s4 + $0x14] sm:$0xf]
    %v330 = vld [vmem:[%s4 + $0x18] sm:$0xf]
    %v331 = vld [vmem:[%s4 + $0x1c] sm:$0xf]
    %v332 = vld [vmem:[%s4 + $0x20] sm:$0xf]
    %v333 = vld [vmem:[%s4 + $0x24] sm:$0xf]
    %v334 = vld [vmem:[%s4 + $0x28] sm:$0xf]
    %v335 = vld [vmem:[%s4 + $0x2c] sm:$0xf]
    %v336 = vld [vmem:[%s4 + $0x30] sm:$0xf]
    %v337 = vld [vmem:[%s4 + $0x34] sm:$0xf]
    %v338 = vld [vmem:[%s4 + $0x38] sm:$0xf]
    %v339 = vld [vmem:[%s4 + $0x3c] sm:$0xf]
    %v340 = vunpack.c.l.bf16 %v324
    %v341 = vunpack.c.l.bf16 %v325
    %v342 = vunpack.c.l.bf16 %v326
    %v343 = vunpack.c.l.bf16 %v327
    %v344 = vunpack.c.l.bf16 %v328
    %v345 = vunpack.c.l.bf16 %v329
    %v346 = vunpack.c.l.bf16 %v330
    %v347 = vunpack.c.l.bf16 %v331
    %v348 = vunpack.c.l.bf16 %v332
    %v349 = vunpack.c.l.bf16 %v333
    %v350 = vunpack.c.l.bf16 %v334
    %v351 = vunpack.c.l.bf16 %v335
    %v352 = vunpack.c.l.bf16 %v336
    %v353 = vunpack.c.l.bf16 %v337
    %v354 = vunpack.c.l.bf16 %v338
    %v355 = vunpack.c.l.bf16 %v339
    %v356 = vadd.f32 %v308, %v340
    %v357 = vadd.f32 %v309, %v341
    %v358 = vadd.f32 %v310, %v342
    %v359 = vadd.f32 %v311, %v343
    %v360 = vadd.f32 %v312, %v344
    %v361 = vadd.f32 %v313, %v345
    %v362 = vadd.f32 %v314, %v346
    %v363 = vadd.f32 %v315, %v347
    %v364 = vadd.f32 %v316, %v348
    %v365 = vadd.f32 %v317, %v349
    %v366 = vadd.f32 %v318, %v350
    %v367 = vadd.f32 %v319, %v351
    %v368 = vadd.f32 %v320, %v352
    %v369 = vadd.f32 %v321, %v353
    %v370 = vadd.f32 %v322, %v354
    %v371 = vadd.f32 %v323, %v355
    %v372 = vmax.f32 %v356, 0.0
    %v373 = vmax.f32 %v357, 0.0
    %v374 = vmax.f32 %v358, 0.0
    %v375 = vmax.f32 %v359, 0.0
    %v376 = vmax.f32 %v360, 0.0
    %v377 = vmax.f32 %v361, 0.0
    %v378 = vmax.f32 %v362, 0.0
    %v379 = vmax.f32 %v363, 0.0
    %v380 = vmax.f32 %v364, 0.0
    %v381 = vmax.f32 %v365, 0.0
    %v382 = vmax.f32 %v366, 0.0
    %v383 = vmax.f32 %v367, 0.0
    %v384 = vmax.f32 %v368, 0.0
    %v385 = vmax.f32 %v369, 0.0
    %v386 = vmax.f32 %v370, 0.0
    %v387 = vmax.f32 %v371, 0.0
    %v388 = vpack.c.bf16 %v372, %v372
    %v389 = vpack.c.bf16 %v373, %v373
    %v390 = vpack.c.bf16 %v374, %v374
    %v391 = vpack.c.bf16 %v375, %v375
    %v392 = vpack.c.bf16 %v376, %v376
    %v393 = vpack.c.bf16 %v377, %v377
    %v394 = vpack.c.bf16 %v378, %v378
    %v395 = vpack.c.bf16 %v379, %v379
    %v396 = vpack.c.bf16 %v380, %v380
    %v397 = vpack.c.bf16 %v381, %v381
    %v398 = vpack.c.bf16 %v382, %v382
    %v399 = vpack.c.bf16 %v383, %v383
    %v400 = vpack.c.bf16 %v384, %v384
    %v401 = vpack.c.bf16 %v385, %v385
    %v402 = vpack.c.bf16 %v386, %v386
    %v403 = vpack.c.bf16 %v387, %v387
    %404 = vst [vmem:[%s5] sm:$0xf] %v388
    %405 = vst [vmem:[%s5 + $0x4] sm:$0xf] %v389
    %406 = vst [vmem:[%s5 + $0x8] sm:$0xf] %v390
    %407 = vst [vmem:[%s5 + $0xc] sm:$0xf] %v391
    %408 = vst [vmem:[%s5 + $0x10] sm:$0xf] %v392
    %409 = vst [vmem:[%s5 + $0x14] sm:$0xf] %v393
    %410 = vst [vmem:[%s5 + $0x18] sm:$0xf] %v394
    %411 = vst [vmem:[%s5 + $0x1c] sm:$0xf] %v395
    %412 = vst [vmem:[%s5 + $0x20] sm:$0xf] %v396
    %413 = vst [vmem:[%s5 + $0x24] sm:$0xf] %v397
    %414 = vst [vmem:[%s5 + $0x28] sm:$0xf] %v398
    %415 = vst [vmem:[%s5 + $0x2c] sm:$0xf] %v399
    %416 = vst [vmem:[%s5 + $0x30] sm:$0xf] %v400
    %417 = vst [vmem:[%s5 + $0x34] sm:$0xf] %v401
    %418 = vst [vmem:[%s5 + $0x38] sm:$0xf] %v402
    %419 = vst [vmem:[%s5 + $0x3c] sm:$0xf] %v403
  $region29: #{resnets_forward.15} parent=0 // pred_fallthru
    _
  // Predicated region
  $region30: #{resnets_forward.15} parent=0 // pred_check
    _
  $region31: #{resnets_forward.15} parent=0 // pred_check_branch
    %421 = sbr.rel (0) target = $region33
  $region32: #{resnets_forward.15} parent=0 // pred_region
    _
  $region33: #{resnets_forward.15} parent=0 // pred_fallthru
    _
  // Predicated region
  $region34: #{resnets_forward.15} parent=0 // pred_check
    _
  $region35: #{resnets_forward.15} parent=0 // pred_check_branch
    %423 = sbr.rel (0) target = $region37
  $region36: #{resnets_forward.15} parent=0 // pred_region
    _
  $region37: #{resnets_forward.15} parent=0 // pred_fallthru
    _

</llo_original>
